<compile_context>
chip_gen: v5e
topology: v5e:2x2
jax: 0.10.0
libtpu: 0.0.40
codegen_flags: <defaults>
</compile_context>

<pallas_src>
import functools

import jax
import jax.numpy as jnp
from jax.experimental import pallas as pl
from jax.experimental.pallas import tpu as pltpu

LANES = 128


# ------------------------------ Pallas kernel -------------------------------

def _basic_block_kernel(x_ref, mask_ref, w1_ref, w2_ref, idw_ref,
                        s1_ref, b1_ref, s2_ref, b2_ref, o_ref,
                        *, W, TH, Cin, Cp):
    """Fused conv1+bn1+relu -> conv2+bn2+identity -> relu for one (batch, row-tile)."""
    Wp = W + 4                      # padded width of the input tile
    L1 = (TH + 2) * Wp - 2          # flat rows of out1 (incl. 1-row/col halo)
    L2 = TH * Wp - 4                # flat rows of this tile's output

    # Load once; keep all in-VMEM slicing in f32 (bf16 only as direct MXU operands).
    x_all = x_ref[...].astype(jnp.float32)          # ((TH+4)*Wp, Cin)

    # ---- conv1: 9 accumulating matmuls over shifted flat slices (in-kernel im2col) ----
    acc1 = None
    for kh in range(3):
        for kw in range(3):
            off = kh * Wp + kw
            lhs = jax.lax.slice(x_all, (off, 0), (off + L1, Cin)).astype(jnp.bfloat16)
            d = jnp.dot(lhs, w1_ref[kh * 3 + kw], preferred_element_type=jnp.float32)
            acc1 = d if acc1 is None else acc1 + d

    out1 = jnp.maximum(acc1 * s1_ref[...] + b1_ref[...], 0.0)
    # Zero the rows/cols that implement conv2's zero padding at the image border.
    out1 = out1 * mask_ref[...]

    # ---- conv2 ----
    acc2 = None
    for kh in range(3):
        for kw in range(3):
            off = kh * Wp + kw
            lhs = jax.lax.slice(out1, (off, 0), (off + L2, Cp)).astype(jnp.bfloat16)
            d = jnp.dot(lhs, w2_ref[kh * 3 + kw], preferred_element_type=jnp.float32)
            acc2 = d if acc2 is None else acc2 + d

    # ---- residual: identity taken from the resident input tile, lane-embedded ----
    r0 = 2 * Wp + 2
    resid = jax.lax.slice(x_all, (r0, 0), (r0 + L2, Cin)).astype(jnp.bfloat16)
    resid_t = jnp.dot(resid, idw_ref[...], preferred_element_type=jnp.float32)

    out = jnp.maximum(acc2 * s2_ref[...] + b2_ref[...] + resid_t, 0.0)
    o_ref[...] = out.astype(o_ref.dtype)


# ------------------------------- JAX wrapper ---------------------------------

def _bn_fold(gamma, beta, mean, var, eps=1e-5):
    scale = gamma / jnp.sqrt(var + eps)
    shift = beta - mean * scale
    return scale, shift


def _taps_from_convtranspose(w_t, cin_pad, cout_pad):
    """ConvTranspose2d weight (Cin, Cout, 3, 3) -> (9, cin_pad, cout_pad) bf16 taps.

    ConvTranspose2d(k=3, s=1, p=1) == cross-correlation with the spatially flipped,
    in/out-transposed kernel."""
    ci, co = w_t.shape[0], w_t.shape[1]
    w_cc = jnp.transpose(w_t[:, :, ::-1, ::-1], (2, 3, 0, 1)).reshape(9, ci, co)
    w_cc = jnp.pad(w_cc, ((0, 0), (0, cin_pad - ci), (0, cout_pad - co)))
    return w_cc.astype(jnp.bfloat16)


def _pad_channels(v, cp):
    c = v.shape[0]
    return jnp.pad(v, (0, cp - c)).reshape(1, cp).astype(jnp.float32)


@functools.partial(jax.jit, static_argnames=("row_tile",))
def basic_block_forward(x_nchw, params, row_tile=8):
    """Pallas BasicBlock.forward (stride=1, downsample=None, eval-mode BatchNorm)."""
    N, Cin, H, W = x_nchw.shape
    planes = params["w1"].shape[1]
    assert Cin == planes, "stride=1 / downsample=None requires inplanes == planes"

    TH = row_tile if (H % row_tile == 0) else H        # output rows per grid step
    T = H // TH
    Cp = ((planes + LANES - 1) // LANES) * LANES       # lane-dense output channels
    Wp = W + 4
    FLAT = (TH + 4) * Wp
    L1 = (TH + 2) * Wp - 2
    L2 = TH * Wp - 4

    # Host-side prep (cheap, XLA-fused): NCHW -> NHWC, spatial pad 2, haloed row tiles.
    x = jnp.transpose(x_nchw, (0, 2, 3, 1)).astype(jnp.float32)
    x_pad = jnp.pad(x, ((0, 0), (2, 2), (2, 2), (0, 0)))
    tiles = jnp.stack([x_pad[:, t * TH: t * TH + TH + 4] for t in range(T)], axis=1)
    x_tiles = tiles.reshape(N, T, FLAT, Cin).astype(jnp.bfloat16)

    # Per-tile 0/1 mask implementing conv2's zero padding at the image border.
    i1 = jnp.arange(TH + 2)[None, :, None]
    j1 = jnp.arange(Wp)[None, None, :]
    tt = jnp.arange(T)[:, None, None]
    col_ok = (j1 >= 1) & (j1 <= W)
    row_ok = ~(((tt == 0) & (i1 == 0)) | ((tt == T - 1) & (i1 == TH + 1)))
    mask = (col_ok & row_ok).astype(jnp.float32)
    mask = mask.reshape(T, (TH + 2) * Wp)[:, :L1].reshape(T, L1, 1)

    # Weights / folded BN params, channel-padded to Cp lanes.
    w1s = _taps_from_convtranspose(params["w1"], Cin, Cp)       # (9, Cin, Cp)
    w2s = _taps_from_convtranspose(params["w2"], Cp, Cp)        # (9, Cp,  Cp)
    idw = jnp.eye(Cin, Cp, dtype=jnp.float32).astype(jnp.bfloat16)
    s1, b1 = _bn_fold(params["g1"], params["beta1"], params["m1"], params["v1"])
    s2, b2 = _bn_fold(params["g2"], params["beta2"], params["m2"], params["v2"])
    s1, b1, s2, b2 = (_pad_channels(v, Cp) for v in (s1, b1, s2, b2))

    kernel = functools.partial(_basic_block_kernel, W=W, TH=TH, Cin=Cin, Cp=Cp)

    out_tiles = pl.pallas_call(
        kernel,
        out_shape=jax.ShapeDtypeStruct((N, T, L2, Cp), jnp.float32),
        grid=(N, T),
        in_specs=[
            pl.BlockSpec((None, None, FLAT, Cin), lambda n, t: (n, t, 0, 0)),  # x tiles
            pl.BlockSpec((None, L1, 1), lambda n, t: (t, 0, 0)),               # border mask
            pl.BlockSpec((9, Cin, Cp), lambda n, t: (0, 0, 0)),                # conv1 taps
            pl.BlockSpec((9, Cp, Cp), lambda n, t: (0, 0, 0)),                 # conv2 taps
            pl.BlockSpec((Cin, Cp), lambda n, t: (0, 0)),                      # identity embed
            pl.BlockSpec((1, Cp), lambda n, t: (0, 0)),                        # bn1 scale
            pl.BlockSpec((1, Cp), lambda n, t: (0, 0)),                        # bn1 shift
            pl.BlockSpec((1, Cp), lambda n, t: (0, 0)),                        # bn2 scale
            pl.BlockSpec((1, Cp), lambda n, t: (0, 0)),                        # bn2 shift
        ],
        out_specs=pl.BlockSpec((None, None, L2, Cp), lambda n, t: (n, t, 0, 0)),
        compiler_params=pltpu.CompilerParams(
            dimension_semantics=("parallel", "parallel"),
            vmem_limit_bytes=64 * 1024 * 1024),
    )(x_tiles, mask, w1s, w2s, idw, s1, b1, s2, b2)

    # Unflatten: (N, T, L2, Cp) -> NCHW, dropping garbage columns / padded channels.
    out_p = jnp.pad(out_tiles, ((0, 0), (0, 0), (0, TH * Wp - L2), (0, 0)))
    out_p = out_p.reshape(N, T, TH, Wp, Cp)[:, :, :, :W, :planes]
    out_nhwc = out_p.reshape(N, H, W, planes)
    return jnp.transpose(out_nhwc, (0, 3, 1, 2))


# ------------------------- pure-JAX reference check --------------------------

def ref_forward(x_nchw, params, eps=1e-5):
    """Reference with the same bf16 operand rounding as the kernel (f32 math otherwise)."""
    f32 = jnp.float32

    def rb(a):  # round to bf16 and back (matches the kernel's MXU input precision)
        return a.astype(jnp.bfloat16).astype(f32)

    x = rb(jnp.transpose(x_nchw, (0, 2, 3, 1)).astype(f32))

    def conv_t_as_conv(h, wt):
        wm = rb(jnp.transpose(wt[:, :, ::-1, ::-1], (2, 3, 0, 1)))   # HWIO
        return jax.lax.conv_general_dilated(
            h, wm, window_strides=(1, 1), padding=((1, 1), (1, 1)),
            dimension_numbers=("NHWC", "HWIO", "NHWC"))

    def bn(h, g, b, m, v):
        return (h - m) / jnp.sqrt(v + eps) * g + b

    out1 = jax.nn.relu(bn(conv_t_as_conv(x, params["w1"]),
                          params["g1"], params["beta1"], params["m1"], params["v1"]))
    out1 = rb(out1)
    out = bn(conv_t_as_conv(out1, params["w2"]),
             params["g2"], params["beta2"], params["m2"], params["v2"])
    out = jax.nn.relu(out + x)
    return jnp.transpose(out, (0, 3, 1, 2))


# ----------------------------------- main ------------------------------------

if __name__ == "__main__":
    key = jax.random.PRNGKey(0)
    N, C, H, W = 2, 4, 16, 16          # inplanes = planes = 4, stride = 1
    ks = jax.random.split(key, 12)

    params = {
        "w1": 0.1 * jax.random.normal(ks[0], (C, C, 3, 3), jnp.float32),
        "w2": 0.1 * jax.random.normal(ks[1], (C, C, 3, 3), jnp.float32),
        "g1": 1.0 + 0.1 * jax.random.normal(ks[2], (C,), jnp.float32),
        "beta1": 0.1 * jax.random.normal(ks[3], (C,), jnp.float32),
        "m1": 0.1 * jax.random.normal(ks[4], (C,), jnp.float32),
        "v1": 0.5 + jnp.abs(jax.random.normal(ks[5], (C,), jnp.float32)) * 0.2,
        "g2": 1.0 + 0.1 * jax.random.normal(ks[6], (C,), jnp.float32),
        "beta2": 0.1 * jax.random.normal(ks[7], (C,), jnp.float32),
        "m2": 0.1 * jax.random.normal(ks[8], (C,), jnp.float32),
        "v2": 0.5 + jnp.abs(jax.random.normal(ks[9], (C,), jnp.float32)) * 0.2,
    }
    x = jax.random.normal(ks[10], (N, C, H, W), jnp.float32)

    out = jax.block_until_ready(basic_block_forward(x, params))
    ref = jax.block_until_ready(ref_forward(x, params))

    assert out.shape == (N, C, H, W)
    err = float(jnp.max(jnp.abs(out - ref)))
    assert err < 1e-2, f"mismatch: max abs err {err}"
    print("KERNEL_OK")
</pallas_src>

<mosaic_0001>
module attributes {stable_mosaic.version = 11 : i64} {
  func.func @_basic_block_kernel(%arg0: i32, %arg1: i32, %arg2: memref<1x1x240x4xbf16, #tpu.memory_space<vmem>>, %arg3: memref<1x198x1xf32, #tpu.memory_space<vmem>>, %arg4: memref<9x4x128xbf16, #tpu.memory_space<vmem>>, %arg5: memref<9x128x128xbf16, #tpu.memory_space<vmem>>, %arg6: memref<4x128xbf16, #tpu.memory_space<vmem>>, %arg7: memref<1x128xf32, #tpu.memory_space<vmem>>, %arg8: memref<1x128xf32, #tpu.memory_space<vmem>>, %arg9: memref<1x128xf32, #tpu.memory_space<vmem>>, %arg10: memref<1x128xf32, #tpu.memory_space<vmem>>, %arg11: memref<1x1x156x128xf32, #tpu.memory_space<vmem>>) attributes {dimension_semantics = [#tpu.dimension_semantics<parallel>, #tpu.dimension_semantics<parallel>], iteration_bounds = array<i64: 2, 2>, scalar_prefetch = 0 : i64, scratch_operands = 0 : i64, tpu.core_type = #tpu.core_type<tc>, window_params = [{transform_indices = @transform_0, window_bounds = array<i64: 1, 1, 240, 4>}, {transform_indices = @transform_1, window_bounds = array<i64: 1, 198, 1>}, {pipeline_mode = #tpu.pipeline_mode<synchronous>, transform_indices = @transform_2, window_bounds = array<i64: 9, 4, 128>}, {pipeline_mode = #tpu.pipeline_mode<synchronous>, transform_indices = @transform_3, window_bounds = array<i64: 9, 128, 128>}, {pipeline_mode = #tpu.pipeline_mode<synchronous>, transform_indices = @transform_4, window_bounds = array<i64: 4, 128>}, {pipeline_mode = #tpu.pipeline_mode<synchronous>, transform_indices = @transform_5, window_bounds = array<i64: 1, 128>}, {pipeline_mode = #tpu.pipeline_mode<synchronous>, transform_indices = @transform_6, window_bounds = array<i64: 1, 128>}, {pipeline_mode = #tpu.pipeline_mode<synchronous>, transform_indices = @transform_7, window_bounds = array<i64: 1, 128>}, {pipeline_mode = #tpu.pipeline_mode<synchronous>, transform_indices = @transform_8, window_bounds = array<i64: 1, 128>}, {transform_indices = @transform_9, window_bounds = array<i64: 1, 1, 156, 128>}]} {
    %c0 = arith.constant 0 : index
    %c0_0 = arith.constant 0 : index
    %c0_1 = arith.constant 0 : index
    %c0_2 = arith.constant 0 : index
    %0 = vector.load %arg2[%c0, %c0_0, %c0_1, %c0_2] : memref<1x1x240x4xbf16, #tpu.memory_space<vmem>>, vector<1x1x240x4xbf16>
    %1 = vector.shape_cast %0 : vector<1x1x240x4xbf16> to vector<240x4xbf16>
    %2 = arith.extf %1 : vector<240x4xbf16> to vector<240x4xf32>
    %3 = vector.extract_strided_slice %2 {offsets = [0, 0], sizes = [198, 4], strides = [1, 1]} : vector<240x4xf32> to vector<198x4xf32>
    %4 = arith.truncf %3 : vector<198x4xf32> to vector<198x4xbf16>
    %c0_3 = arith.constant 0 : index
    %c0_4 = arith.constant 0 : index
    %c0_5 = arith.constant 0 : index
    %5 = vector.load %arg4[%c0_3, %c0_4, %c0_5] : memref<9x4x128xbf16, #tpu.memory_space<vmem>>, vector<1x4x128xbf16>
    %6 = vector.shape_cast %5 : vector<1x4x128xbf16> to vector<4x128xbf16>
    %cst = arith.constant dense<0.000000e+00> : vector<198x128xf32>
    %7 = tpu.matmul %4, %6, %cst {dimension_numbers = #tpu.dot_dimension_numbers<[1], [0], [0], [1], [0, 0, 1, 1], [], []>} : vector<198x4xbf16>, vector<4x128xbf16>, vector<198x128xf32> -> vector<198x128xf32>
    %8 = vector.extract_strided_slice %2 {offsets = [1, 0], sizes = [198, 4], strides = [1, 1]} : vector<240x4xf32> to vector<198x4xf32>
    %9 = arith.truncf %8 : vector<198x4xf32> to vector<198x4xbf16>
    %c1 = arith.constant 1 : index
    %c0_6 = arith.constant 0 : index
    %c0_7 = arith.constant 0 : index
    %10 = vector.load %arg4[%c1, %c0_6, %c0_7] : memref<9x4x128xbf16, #tpu.memory_space<vmem>>, vector<1x4x128xbf16>
    %11 = vector.shape_cast %10 : vector<1x4x128xbf16> to vector<4x128xbf16>
    %cst_8 = arith.constant dense<0.000000e+00> : vector<198x128xf32>
    %12 = tpu.matmul %9, %11, %cst_8 {dimension_numbers = #tpu.dot_dimension_numbers<[1], [0], [0], [1], [0, 0, 1, 1], [], []>} : vector<198x4xbf16>, vector<4x128xbf16>, vector<198x128xf32> -> vector<198x128xf32>
    %13 = arith.addf %7, %12 : vector<198x128xf32>
    %14 = vector.extract_strided_slice %2 {offsets = [2, 0], sizes = [198, 4], strides = [1, 1]} : vector<240x4xf32> to vector<198x4xf32>
    %15 = arith.truncf %14 : vector<198x4xf32> to vector<198x4xbf16>
    %c2 = arith.constant 2 : index
    %c0_9 = arith.constant 0 : index
    %c0_10 = arith.constant 0 : index
    %16 = vector.load %arg4[%c2, %c0_9, %c0_10] : memref<9x4x128xbf16, #tpu.memory_space<vmem>>, vector<1x4x128xbf16>
    %17 = vector.shape_cast %16 : vector<1x4x128xbf16> to vector<4x128xbf16>
    %cst_11 = arith.constant dense<0.000000e+00> : vector<198x128xf32>
    %18 = tpu.matmul %15, %17, %cst_11 {dimension_numbers = #tpu.dot_dimension_numbers<[1], [0], [0], [1], [0, 0, 1, 1], [], []>} : vector<198x4xbf16>, vector<4x128xbf16>, vector<198x128xf32> -> vector<198x128xf32>
    %19 = arith.addf %13, %18 : vector<198x128xf32>
    %20 = vector.extract_strided_slice %2 {offsets = [20, 0], sizes = [198, 4], strides = [1, 1]} : vector<240x4xf32> to vector<198x4xf32>
    %21 = arith.truncf %20 : vector<198x4xf32> to vector<198x4xbf16>
    %c3 = arith.constant 3 : index
    %c0_12 = arith.constant 0 : index
    %c0_13 = arith.constant 0 : index
    %22 = vector.load %arg4[%c3, %c0_12, %c0_13] : memref<9x4x128xbf16, #tpu.memory_space<vmem>>, vector<1x4x128xbf16>
    %23 = vector.shape_cast %22 : vector<1x4x128xbf16> to vector<4x128xbf16>
    %cst_14 = arith.constant dense<0.000000e+00> : vector<198x128xf32>
    %24 = tpu.matmul %21, %23, %cst_14 {dimension_numbers = #tpu.dot_dimension_numbers<[1], [0], [0], [1], [0, 0, 1, 1], [], []>} : vector<198x4xbf16>, vector<4x128xbf16>, vector<198x128xf32> -> vector<198x128xf32>
    %25 = arith.addf %19, %24 : vector<198x128xf32>
    %26 = vector.extract_strided_slice %2 {offsets = [21, 0], sizes = [198, 4], strides = [1, 1]} : vector<240x4xf32> to vector<198x4xf32>
    %27 = arith.truncf %26 : vector<198x4xf32> to vector<198x4xbf16>
    %c4 = arith.constant 4 : index
    %c0_15 = arith.constant 0 : index
    %c0_16 = arith.constant 0 : index
    %28 = vector.load %arg4[%c4, %c0_15, %c0_16] : memref<9x4x128xbf16, #tpu.memory_space<vmem>>, vector<1x4x128xbf16>
    %29 = vector.shape_cast %28 : vector<1x4x128xbf16> to vector<4x128xbf16>
    %cst_17 = arith.constant dense<0.000000e+00> : vector<198x128xf32>
    %30 = tpu.matmul %27, %29, %cst_17 {dimension_numbers = #tpu.dot_dimension_numbers<[1], [0], [0], [1], [0, 0, 1, 1], [], []>} : vector<198x4xbf16>, vector<4x128xbf16>, vector<198x128xf32> -> vector<198x128xf32>
    %31 = arith.addf %25, %30 : vector<198x128xf32>
    %32 = vector.extract_strided_slice %2 {offsets = [22, 0], sizes = [198, 4], strides = [1, 1]} : vector<240x4xf32> to vector<198x4xf32>
    %33 = arith.truncf %32 : vector<198x4xf32> to vector<198x4xbf16>
    %c5 = arith.constant 5 : index
    %c0_18 = arith.constant 0 : index
    %c0_19 = arith.constant 0 : index
    %34 = vector.load %arg4[%c5, %c0_18, %c0_19] : memref<9x4x128xbf16, #tpu.memory_space<vmem>>, vector<1x4x128xbf16>
    %35 = vector.shape_cast %34 : vector<1x4x128xbf16> to vector<4x128xbf16>
    %cst_20 = arith.constant dense<0.000000e+00> : vector<198x128xf32>
    %36 = tpu.matmul %33, %35, %cst_20 {dimension_numbers = #tpu.dot_dimension_numbers<[1], [0], [0], [1], [0, 0, 1, 1], [], []>} : vector<198x4xbf16>, vector<4x128xbf16>, vector<198x128xf32> -> vector<198x128xf32>
    %37 = arith.addf %31, %36 : vector<198x128xf32>
    %38 = vector.extract_strided_slice %2 {offsets = [40, 0], sizes = [198, 4], strides = [1, 1]} : vector<240x4xf32> to vector<198x4xf32>
    %39 = arith.truncf %38 : vector<198x4xf32> to vector<198x4xbf16>
    %c6 = arith.constant 6 : index
    %c0_21 = arith.constant 0 : index
    %c0_22 = arith.constant 0 : index
    %40 = vector.load %arg4[%c6, %c0_21, %c0_22] : memref<9x4x128xbf16, #tpu.memory_space<vmem>>, vector<1x4x128xbf16>
    %41 = vector.shape_cast %40 : vector<1x4x128xbf16> to vector<4x128xbf16>
    %cst_23 = arith.constant dense<0.000000e+00> : vector<198x128xf32>
    %42 = tpu.matmul %39, %41, %cst_23 {dimension_numbers = #tpu.dot_dimension_numbers<[1], [0], [0], [1], [0, 0, 1, 1], [], []>} : vector<198x4xbf16>, vector<4x128xbf16>, vector<198x128xf32> -> vector<198x128xf32>
    %43 = arith.addf %37, %42 : vector<198x128xf32>
    %44 = vector.extract_strided_slice %2 {offsets = [41, 0], sizes = [198, 4], strides = [1, 1]} : vector<240x4xf32> to vector<198x4xf32>
    %45 = arith.truncf %44 : vector<198x4xf32> to vector<198x4xbf16>
    %c7 = arith.constant 7 : index
    %c0_24 = arith.constant 0 : index
    %c0_25 = arith.constant 0 : index
    %46 = vector.load %arg4[%c7, %c0_24, %c0_25] : memref<9x4x128xbf16, #tpu.memory_space<vmem>>, vector<1x4x128xbf16>
    %47 = vector.shape_cast %46 : vector<1x4x128xbf16> to vector<4x128xbf16>
    %cst_26 = arith.constant dense<0.000000e+00> : vector<198x128xf32>
    %48 = tpu.matmul %45, %47, %cst_26 {dimension_numbers = #tpu.dot_dimension_numbers<[1], [0], [0], [1], [0, 0, 1, 1], [], []>} : vector<198x4xbf16>, vector<4x128xbf16>, vector<198x128xf32> -> vector<198x128xf32>
    %49 = arith.addf %43, %48 : vector<198x128xf32>
    %50 = vector.extract_strided_slice %2 {offsets = [42, 0], sizes = [198, 4], strides = [1, 1]} : vector<240x4xf32> to vector<198x4xf32>
    %51 = arith.truncf %50 : vector<198x4xf32> to vector<198x4xbf16>
    %c8 = arith.constant 8 : index
    %c0_27 = arith.constant 0 : index
    %c0_28 = arith.constant 0 : index
    %52 = vector.load %arg4[%c8, %c0_27, %c0_28] : memref<9x4x128xbf16, #tpu.memory_space<vmem>>, vector<1x4x128xbf16>
    %53 = vector.shape_cast %52 : vector<1x4x128xbf16> to vector<4x128xbf16>
    %cst_29 = arith.constant dense<0.000000e+00> : vector<198x128xf32>
    %54 = tpu.matmul %51, %53, %cst_29 {dimension_numbers = #tpu.dot_dimension_numbers<[1], [0], [0], [1], [0, 0, 1, 1], [], []>} : vector<198x4xbf16>, vector<4x128xbf16>, vector<198x128xf32> -> vector<198x128xf32>
    %55 = arith.addf %49, %54 : vector<198x128xf32>
    %c0_30 = arith.constant 0 : index
    %c0_31 = arith.constant 0 : index
    %56 = vector.load %arg7[%c0_30, %c0_31] : memref<1x128xf32, #tpu.memory_space<vmem>>, vector<1x128xf32>
    %57 = vector.broadcast %56 : vector<1x128xf32> to vector<198x128xf32>
    %58 = arith.mulf %55, %57 : vector<198x128xf32>
    %c0_32 = arith.constant 0 : index
    %c0_33 = arith.constant 0 : index
    %59 = vector.load %arg8[%c0_32, %c0_33] : memref<1x128xf32, #tpu.memory_space<vmem>>, vector<1x128xf32>
    %60 = vector.broadcast %59 : vector<1x128xf32> to vector<198x128xf32>
    %61 = arith.addf %58, %60 : vector<198x128xf32>
    %cst_34 = arith.constant 0.000000e+00 : f32
    %62 = vector.broadcast %cst_34 : f32 to vector<198x128xf32>
    %63 = arith.maximumf %61, %62 : vector<198x128xf32>
    %c0_35 = arith.constant 0 : index
    %c0_36 = arith.constant 0 : index
    %c0_37 = arith.constant 0 : index
    %64 = vector.load %arg3[%c0_35, %c0_36, %c0_37] : memref<1x198x1xf32, #tpu.memory_space<vmem>>, vector<1x198x1xf32>
    %65 = vector.shape_cast %64 : vector<1x198x1xf32> to vector<198x1xf32>
    %66 = vector.broadcast %65 : vector<198x1xf32> to vector<198x128xf32>
    %67 = arith.mulf %63, %66 : vector<198x128xf32>
    %68 = vector.extract_strided_slice %67 {offsets = [0, 0], sizes = [156, 128], strides = [1, 1]} : vector<198x128xf32> to vector<156x128xf32>
    %69 = arith.truncf %68 : vector<156x128xf32> to vector<156x128xbf16>
    %c0_38 = arith.constant 0 : index
    %c0_39 = arith.constant 0 : index
    %c0_40 = arith.constant 0 : index
    %70 = vector.load %arg5[%c0_38, %c0_39, %c0_40] : memref<9x128x128xbf16, #tpu.memory_space<vmem>>, vector<1x128x128xbf16>
    %71 = vector.shape_cast %70 : vector<1x128x128xbf16> to vector<128x128xbf16>
    %cst_41 = arith.constant dense<0.000000e+00> : vector<156x128xf32>
    %72 = tpu.matmul %69, %71, %cst_41 {dimension_numbers = #tpu.dot_dimension_numbers<[1], [0], [0], [1], [0, 0, 1, 1], [], []>} : vector<156x128xbf16>, vector<128x128xbf16>, vector<156x128xf32> -> vector<156x128xf32>
    %73 = vector.extract_strided_slice %67 {offsets = [1, 0], sizes = [156, 128], strides = [1, 1]} : vector<198x128xf32> to vector<156x128xf32>
    %74 = arith.truncf %73 : vector<156x128xf32> to vector<156x128xbf16>
    %c1_42 = arith.constant 1 : index
    %c0_43 = arith.constant 0 : index
    %c0_44 = arith.constant 0 : index
    %75 = vector.load %arg5[%c1_42, %c0_43, %c0_44] : memref<9x128x128xbf16, #tpu.memory_space<vmem>>, vector<1x128x128xbf16>
    %76 = vector.shape_cast %75 : vector<1x128x128xbf16> to vector<128x128xbf16>
    %cst_45 = arith.constant dense<0.000000e+00> : vector<156x128xf32>
    %77 = tpu.matmul %74, %76, %cst_45 {dimension_numbers = #tpu.dot_dimension_numbers<[1], [0], [0], [1], [0, 0, 1, 1], [], []>} : vector<156x128xbf16>, vector<128x128xbf16>, vector<156x128xf32> -> vector<156x128xf32>
    %78 = arith.addf %72, %77 : vector<156x128xf32>
    %79 = vector.extract_strided_slice %67 {offsets = [2, 0], sizes = [156, 128], strides = [1, 1]} : vector<198x128xf32> to vector<156x128xf32>
    %80 = arith.truncf %79 : vector<156x128xf32> to vector<156x128xbf16>
    %c2_46 = arith.constant 2 : index
    %c0_47 = arith.constant 0 : index
    %c0_48 = arith.constant 0 : index
    %81 = vector.load %arg5[%c2_46, %c0_47, %c0_48] : memref<9x128x128xbf16, #tpu.memory_space<vmem>>, vector<1x128x128xbf16>
    %82 = vector.shape_cast %81 : vector<1x128x128xbf16> to vector<128x128xbf16>
    %cst_49 = arith.constant dense<0.000000e+00> : vector<156x128xf32>
    %83 = tpu.matmul %80, %82, %cst_49 {dimension_numbers = #tpu.dot_dimension_numbers<[1], [0], [0], [1], [0, 0, 1, 1], [], []>} : vector<156x128xbf16>, vector<128x128xbf16>, vector<156x128xf32> -> vector<156x128xf32>
    %84 = arith.addf %78, %83 : vector<156x128xf32>
    %85 = vector.extract_strided_slice %67 {offsets = [20, 0], sizes = [156, 128], strides = [1, 1]} : vector<198x128xf32> to vector<156x128xf32>
    %86 = arith.truncf %85 : vector<156x128xf32> to vector<156x128xbf16>
    %c3_50 = arith.constant 3 : index
    %c0_51 = arith.constant 0 : index
    %c0_52 = arith.constant 0 : index
    %87 = vector.load %arg5[%c3_50, %c0_51, %c0_52] : memref<9x128x128xbf16, #tpu.memory_space<vmem>>, vector<1x128x128xbf16>
    %88 = vector.shape_cast %87 : vector<1x128x128xbf16> to vector<128x128xbf16>
    %cst_53 = arith.constant dense<0.000000e+00> : vector<156x128xf32>
    %89 = tpu.matmul %86, %88, %cst_53 {dimension_numbers = #tpu.dot_dimension_numbers<[1], [0], [0], [1], [0, 0, 1, 1], [], []>} : vector<156x128xbf16>, vector<128x128xbf16>, vector<156x128xf32> -> vector<156x128xf32>
    %90 = arith.addf %84, %89 : vector<156x128xf32>
    %91 = vector.extract_strided_slice %67 {offsets = [21, 0], sizes = [156, 128], strides = [1, 1]} : vector<198x128xf32> to vector<156x128xf32>
    %92 = arith.truncf %91 : vector<156x128xf32> to vector<156x128xbf16>
    %c4_54 = arith.constant 4 : index
    %c0_55 = arith.constant 0 : index
    %c0_56 = arith.constant 0 : index
    %93 = vector.load %arg5[%c4_54, %c0_55, %c0_56] : memref<9x128x128xbf16, #tpu.memory_space<vmem>>, vector<1x128x128xbf16>
    %94 = vector.shape_cast %93 : vector<1x128x128xbf16> to vector<128x128xbf16>
    %cst_57 = arith.constant dense<0.000000e+00> : vector<156x128xf32>
    %95 = tpu.matmul %92, %94, %cst_57 {dimension_numbers = #tpu.dot_dimension_numbers<[1], [0], [0], [1], [0, 0, 1, 1], [], []>} : vector<156x128xbf16>, vector<128x128xbf16>, vector<156x128xf32> -> vector<156x128xf32>
    %96 = arith.addf %90, %95 : vector<156x128xf32>
    %97 = vector.extract_strided_slice %67 {offsets = [22, 0], sizes = [156, 128], strides = [1, 1]} : vector<198x128xf32> to vector<156x128xf32>
    %98 = arith.truncf %97 : vector<156x128xf32> to vector<156x128xbf16>
    %c5_58 = arith.constant 5 : index
    %c0_59 = arith.constant 0 : index
    %c0_60 = arith.constant 0 : index
    %99 = vector.load %arg5[%c5_58, %c0_59, %c0_60] : memref<9x128x128xbf16, #tpu.memory_space<vmem>>, vector<1x128x128xbf16>
    %100 = vector.shape_cast %99 : vector<1x128x128xbf16> to vector<128x128xbf16>
    %cst_61 = arith.constant dense<0.000000e+00> : vector<156x128xf32>
    %101 = tpu.matmul %98, %100, %cst_61 {dimension_numbers = #tpu.dot_dimension_numbers<[1], [0], [0], [1], [0, 0, 1, 1], [], []>} : vector<156x128xbf16>, vector<128x128xbf16>, vector<156x128xf32> -> vector<156x128xf32>
    %102 = arith.addf %96, %101 : vector<156x128xf32>
    %103 = vector.extract_strided_slice %67 {offsets = [40, 0], sizes = [156, 128], strides = [1, 1]} : vector<198x128xf32> to vector<156x128xf32>
    %104 = arith.truncf %103 : vector<156x128xf32> to vector<156x128xbf16>
    %c6_62 = arith.constant 6 : index
    %c0_63 = arith.constant 0 : index
    %c0_64 = arith.constant 0 : index
    %105 = vector.load %arg5[%c6_62, %c0_63, %c0_64] : memref<9x128x128xbf16, #tpu.memory_space<vmem>>, vector<1x128x128xbf16>
    %106 = vector.shape_cast %105 : vector<1x128x128xbf16> to vector<128x128xbf16>
    %cst_65 = arith.constant dense<0.000000e+00> : vector<156x128xf32>
    %107 = tpu.matmul %104, %106, %cst_65 {dimension_numbers = #tpu.dot_dimension_numbers<[1], [0], [0], [1], [0, 0, 1, 1], [], []>} : vector<156x128xbf16>, vector<128x128xbf16>, vector<156x128xf32> -> vector<156x128xf32>
    %108 = arith.addf %102, %107 : vector<156x128xf32>
    %109 = vector.extract_strided_slice %67 {offsets = [41, 0], sizes = [156, 128], strides = [1, 1]} : vector<198x128xf32> to vector<156x128xf32>
    %110 = arith.truncf %109 : vector<156x128xf32> to vector<156x128xbf16>
    %c7_66 = arith.constant 7 : index
    %c0_67 = arith.constant 0 : index
    %c0_68 = arith.constant 0 : index
    %111 = vector.load %arg5[%c7_66, %c0_67, %c0_68] : memref<9x128x128xbf16, #tpu.memory_space<vmem>>, vector<1x128x128xbf16>
    %112 = vector.shape_cast %111 : vector<1x128x128xbf16> to vector<128x128xbf16>
    %cst_69 = arith.constant dense<0.000000e+00> : vector<156x128xf32>
    %113 = tpu.matmul %110, %112, %cst_69 {dimension_numbers = #tpu.dot_dimension_numbers<[1], [0], [0], [1], [0, 0, 1, 1], [], []>} : vector<156x128xbf16>, vector<128x128xbf16>, vector<156x128xf32> -> vector<156x128xf32>
    %114 = arith.addf %108, %113 : vector<156x128xf32>
    %115 = vector.extract_strided_slice %67 {offsets = [42, 0], sizes = [156, 128], strides = [1, 1]} : vector<198x128xf32> to vector<156x128xf32>
    %116 = arith.truncf %115 : vector<156x128xf32> to vector<156x128xbf16>
    %c8_70 = arith.constant 8 : index
    %c0_71 = arith.constant 0 : index
    %c0_72 = arith.constant 0 : index
    %117 = vector.load %arg5[%c8_70, %c0_71, %c0_72] : memref<9x128x128xbf16, #tpu.memory_space<vmem>>, vector<1x128x128xbf16>
    %118 = vector.shape_cast %117 : vector<1x128x128xbf16> to vector<128x128xbf16>
    %cst_73 = arith.constant dense<0.000000e+00> : vector<156x128xf32>
    %119 = tpu.matmul %116, %118, %cst_73 {dimension_numbers = #tpu.dot_dimension_numbers<[1], [0], [0], [1], [0, 0, 1, 1], [], []>} : vector<156x128xbf16>, vector<128x128xbf16>, vector<156x128xf32> -> vector<156x128xf32>
    %120 = arith.addf %114, %119 : vector<156x128xf32>
    %121 = vector.extract_strided_slice %2 {offsets = [42, 0], sizes = [156, 4], strides = [1, 1]} : vector<240x4xf32> to vector<156x4xf32>
    %122 = arith.truncf %121 : vector<156x4xf32> to vector<156x4xbf16>
    %c0_74 = arith.constant 0 : index
    %c0_75 = arith.constant 0 : index
    %123 = vector.load %arg6[%c0_74, %c0_75] : memref<4x128xbf16, #tpu.memory_space<vmem>>, vector<4x128xbf16>
    %cst_76 = arith.constant dense<0.000000e+00> : vector<156x128xf32>
    %124 = tpu.matmul %122, %123, %cst_76 {dimension_numbers = #tpu.dot_dimension_numbers<[1], [0], [0], [1], [0, 0, 1, 1], [], []>} : vector<156x4xbf16>, vector<4x128xbf16>, vector<156x128xf32> -> vector<156x128xf32>
    %c0_77 = arith.constant 0 : index
    %c0_78 = arith.constant 0 : index
    %125 = vector.load %arg9[%c0_77, %c0_78] : memref<1x128xf32, #tpu.memory_space<vmem>>, vector<1x128xf32>
    %126 = vector.broadcast %125 : vector<1x128xf32> to vector<156x128xf32>
    %127 = arith.mulf %120, %126 : vector<156x128xf32>
    %c0_79 = arith.constant 0 : index
    %c0_80 = arith.constant 0 : index
    %128 = vector.load %arg10[%c0_79, %c0_80] : memref<1x128xf32, #tpu.memory_space<vmem>>, vector<1x128xf32>
    %129 = vector.broadcast %128 : vector<1x128xf32> to vector<156x128xf32>
    %130 = arith.addf %127, %129 : vector<156x128xf32>
    %131 = arith.addf %130, %124 : vector<156x128xf32>
    %cst_81 = arith.constant 0.000000e+00 : f32
    %132 = vector.broadcast %cst_81 : f32 to vector<156x128xf32>
    %133 = arith.maximumf %131, %132 : vector<156x128xf32>
    %c0_82 = arith.constant 0 : index
    %c0_83 = arith.constant 0 : index
    %c0_84 = arith.constant 0 : index
    %c0_85 = arith.constant 0 : index
    %134 = vector.load %arg11[%c0_82, %c0_83, %c0_84, %c0_85] : memref<1x1x156x128xf32, #tpu.memory_space<vmem>>, vector<1x1x156x128xf32>
    %135 = vector.shape_cast %134 : vector<1x1x156x128xf32> to vector<156x128xf32>
    %136 = vector.shape_cast %133 : vector<156x128xf32> to vector<1x1x156x128xf32>
    tpu.vector_store %arg11[%c0_82, %c0_83, %c0_84, %c0_85], %136 {strides = array<i32>} : memref<1x1x156x128xf32, #tpu.memory_space<vmem>>, vector<1x1x156x128xf32>,
    return
  }
  func.func @transform_0(%arg0: i32, %arg1: i32) -> (i32, i32, i32, i32) {
    %c0_i32 = arith.constant 0 : i32
    %c0_i32_0 = arith.constant 0 : i32
    %c0_i32_1 = arith.constant 0 : i32
    return %arg0, %arg1, %c0_i32, %c0_i32_0 : i32, i32, i32, i32
  }
  func.func @transform_1(%arg0: i32, %arg1: i32) -> (i32, i32, i32) {
    %c0_i32 = arith.constant 0 : i32
    %c0_i32_0 = arith.constant 0 : i32
    %c0_i32_1 = arith.constant 0 : i32
    return %arg1, %c0_i32, %c0_i32_0 : i32, i32, i32
  }
  func.func @transform_2(%arg0: i32, %arg1: i32) -> (i32, i32, i32) {
    %c0_i32 = arith.constant 0 : i32
    %c0_i32_0 = arith.constant 0 : i32
    %c0_i32_1 = arith.constant 0 : i32
    %c0_i32_2 = arith.constant 0 : i32
    return %c0_i32, %c0_i32_0, %c0_i32_1 : i32, i32, i32
  }
  func.func @transform_3(%arg0: i32, %arg1: i32) -> (i32, i32, i32) {
    %c0_i32 = arith.constant 0 : i32
    %c0_i32_0 = arith.constant 0 : i32
    %c0_i32_1 = arith.constant 0 : i32
    %c0_i32_2 = arith.constant 0 : i32
    return %c0_i32, %c0_i32_0, %c0_i32_1 : i32, i32, i32
  }
  func.func @transform_4(%arg0: i32, %arg1: i32) -> (i32, i32) {
    %c0_i32 = arith.constant 0 : i32
    %c0_i32_0 = arith.constant 0 : i32
    %c0_i32_1 = arith.constant 0 : i32
    return %c0_i32, %c0_i32_0 : i32, i32
  }
  func.func @transform_5(%arg0: i32, %arg1: i32) -> (i32, i32) {
    %c0_i32 = arith.constant 0 : i32
    %c0_i32_0 = arith.constant 0 : i32
    %c0_i32_1 = arith.constant 0 : i32
    return %c0_i32, %c0_i32_0 : i32, i32
  }
  func.func @transform_6(%arg0: i32, %arg1: i32) -> (i32, i32) {
    %c0_i32 = arith.constant 0 : i32
    %c0_i32_0 = arith.constant 0 : i32
    %c0_i32_1 = arith.constant 0 : i32
    return %c0_i32, %c0_i32_0 : i32, i32
  }
  func.func @transform_7(%arg0: i32, %arg1: i32) -> (i32, i32) {
    %c0_i32 = arith.constant 0 : i32
    %c0_i32_0 = arith.constant 0 : i32
    %c0_i32_1 = arith.constant 0 : i32
    return %c0_i32, %c0_i32_0 : i32, i32
  }
  func.func @transform_8(%arg0: i32, %arg1: i32) -> (i32, i32) {
    %c0_i32 = arith.constant 0 : i32
    %c0_i32_0 = arith.constant 0 : i32
    %c0_i32_1 = arith.constant 0 : i32
    return %c0_i32, %c0_i32_0 : i32, i32
  }
  func.func @transform_9(%arg0: i32, %arg1: i32) -> (i32, i32, i32, i32) {
    %c0_i32 = arith.constant 0 : i32
    %c0_i32_0 = arith.constant 0 : i32
    %c0_i32_1 = arith.constant 0 : i32
    return %arg0, %arg1, %c0_i32, %c0_i32_0 : i32, i32, i32, i32
  }
}

</mosaic_0001>

<llo_original>
// kernel: basic_block_forward.1
$region0: #{basic_block_forward.1}
  #allocation0 [shape = 'u32[]', space=smem, size = 0x4, offset = 0x4, fixed_abs, tag = 'smem constant byte address 0x4 - core index']
  #allocation1 [shape = 'u32[72,128]{1,0:T(1,128)}', space=vmem, size = 0x9000, scoped, tag = 'internal scratch']
  %s0 = inlined_call_operand.vmem [shape: bf16[2,2,240,4], index: 0, kind: input, shape index: {}]
  %s1 = inlined_call_operand.vmem [shape: f32[2,198,1], index: 1, kind: input, shape index: {}]
  %s2 = inlined_call_operand.vmem [shape: bf16[9,4,128], index: 2, kind: input, shape index: {}]
  %s3 = inlined_call_operand.vmem [shape: bf16[9,128,128], index: 3, kind: input, shape index: {}]
  %s4 = inlined_call_operand.vmem [shape: bf16[4,128], index: 4, kind: input, shape index: {}]
  %s5 = inlined_call_operand.vmem [shape: f32[1,128], index: 5, kind: input, shape index: {}]
  %s6 = inlined_call_operand.vmem [shape: f32[1,128], index: 6, kind: input, shape index: {}]
  %s7 = inlined_call_operand.vmem [shape: f32[1,128], index: 7, kind: input, shape index: {}]
  %s8 = inlined_call_operand.vmem [shape: f32[1,128], index: 8, kind: input, shape index: {}]
  %s9 = inlined_call_operand.vmem [shape: f32[2,2,156,128], index: 9, kind: output, shape index: {}]
  %s10 = sld [smem:[#allocation0]]
  $region69: #{basic_block_forward.1} parent=0
    _
  %s12 = ssub.s32 1, %s10
  %s13 = scalar_select 0, %s12, %s10
  loop: start=0, step=1, limit=6
  $region2: #{basic_block_forward.1} parent=0 // loop_pre_header
    _
  $region3: #{basic_block_forward.1} parent=0 // loop_header
    %s15 = sphi 0, %s19
    %p16 = scmp.ge.s32.totalorder %s15, 6
    %s22 = sphi 0, %s34
    %s23 = sphi 0, %s30
    %s24 = sphi 0, %s22
    %s25 = sphi 0, %s23
    %s26 = sphi 0, %s24
    %s27 = sphi 0, %s25
    %s39 = sphi 0, %s41
    %s42 = sphi 0, %s39
    %s43 = sphi 0, %s42
    %s59 = sphi 0, %s43
    %s65 = sphi 0, %s67
    %s68 = sphi 0, %s65
    %s69 = sphi 0, %s68
    %s85 = sphi 0, %s69
    %s89 = sphi 0, %s89
    %s91 = sphi 0, %s89
    %s92 = sphi 0, %s91
    %s106 = sphi 0, %s92
    %s110 = sphi 0, %s110
    %s112 = sphi 0, %s110
    %s113 = sphi 0, %s112
    %s127 = sphi 0, %s113
    %s131 = sphi 0, %s131
    %s133 = sphi 0, %s131
    %s134 = sphi 0, %s133
    %s148 = sphi 0, %s134
    %s152 = sphi 0, %s152
    %s154 = sphi 0, %s152
    %s155 = sphi 0, %s154
    %s169 = sphi 0, %s155
    %s173 = sphi 0, %s173
    %s175 = sphi 0, %s173
    %s176 = sphi 0, %s175
    %s190 = sphi 0, %s176
    %s194 = sphi 0, %s194
    %s196 = sphi 0, %s194
    %s197 = sphi 0, %s196
    %s211 = sphi 0, %s197
    %s215 = sphi 0, %s215
    %s217 = sphi 0, %s215
    %s218 = sphi 0, %s217
    %s232 = sphi 0, %s218
    %s240 = sphi 0, %s242
    %s243 = sphi 0, %s240
    %s244 = sphi 0, %s243
    %s260 = sphi 0, %s244
  $region4: #{basic_block_forward.1} parent=0 // loop_header_branch
    %18 = sbr.rel (%p16) target = $region8
  $region5: #{basic_block_forward.1} parent=0 // loop_body
    %s20 = ssub.s32 %s15, 1
    %s21 = ssub.s32 %s15, 2
    %s28 = sadd.s32 1, %s23
    %p29 = scmp.ge.s32.totalorder %s28, 2
    %s30 = scalar_select %p29, 0, %s28
    %s31 = sadd.s32 1, %s22
    %s32 = scalar_select %p29, %s31, %s22
    %p33 = scmp.ge.s32.totalorder %s32, 2
    %s34 = scalar_select %p33, 0, %s32
    %s35 = ssub.s32 %s22, %s34
    %s36 = ssub.s32 %s23, %s30
    %s37 = sor.u32 %s35, %s36
    %p38 = scmp.eq.s32.totalorder %s37, 0
    %s40 = sadd.s32 %s39, 1
    %s41 = scalar_select %p38, %s39, %s40
    %p44 = pneg %p38
    %p45 = scmp.eq.s32.totalorder %s15, 3
    %p46 = por %p44, %p45
    %p47 = scmp.ne.s32.totalorder %s39, %s42
    %p48 = scmp.eq.s32.totalorder %s15, 0
    %p49 = por %p47, %p48
    %p50 = scmp.ne.s32.totalorder %s39, %s42
    %p51 = scmp.eq.s32.totalorder %s20, 3
    %p52 = por %p50, %p51
    %p53 = scmp.ne.s32.totalorder %s42, %s43
    %p54 = scmp.eq.s32.totalorder %s20, 0
    %p55 = por %p53, %p54
    %p56 = scmp.ne.s32.totalorder %s42, %s43
    %p57 = scmp.eq.s32.totalorder %s21, 3
    %p58 = por %p56, %p57
    %p60 = scmp.ne.s32.totalorder %s43, %s59
    %p61 = scmp.eq.s32.totalorder %s21, 0
    %p62 = por %p60, %p61
    %s63 = ssub.s32 %s23, %s30
    %p64 = scmp.eq.s32.totalorder %s63, 0
    %s66 = sadd.s32 %s65, 1
    %s67 = scalar_select %p64, %s65, %s66
    %p70 = pneg %p64
    %p71 = scmp.eq.s32.totalorder %s15, 3
    %p72 = por %p70, %p71
    %p73 = scmp.ne.s32.totalorder %s65, %s68
    %p74 = scmp.eq.s32.totalorder %s15, 0
    %p75 = por %p73, %p74
    %p76 = scmp.ne.s32.totalorder %s65, %s68
    %p77 = scmp.eq.s32.totalorder %s20, 3
    %p78 = por %p76, %p77
    %p79 = scmp.ne.s32.totalorder %s68, %s69
    %p80 = scmp.eq.s32.totalorder %s20, 0
    %p81 = por %p79, %p80
    %p82 = scmp.ne.s32.totalorder %s68, %s69
    %p83 = scmp.eq.s32.totalorder %s21, 3
    %p84 = por %p82, %p83
    %p86 = scmp.ne.s32.totalorder %s69, %s85
    %p87 = scmp.eq.s32.totalorder %s21, 0
    %p88 = por %p86, %p87
    %s90 = sadd.s32 %s89, 1
    %p93 = scmp.eq.s32.totalorder %s15, 3
    %p94 = scmp.ne.s32.totalorder %s89, %s91
    %p95 = scmp.eq.s32.totalorder %s15, 0
    %p96 = por %p94, %p95
    %p97 = scmp.ne.s32.totalorder %s89, %s91
    %p98 = scmp.eq.s32.totalorder %s20, 3
    %p99 = por %p97, %p98
    %p100 = scmp.ne.s32.totalorder %s91, %s92
    %p101 = scmp.eq.s32.totalorder %s20, 0
    %p102 = por %p100, %p101
    %p103 = scmp.ne.s32.totalorder %s91, %s92
    %p104 = scmp.eq.s32.totalorder %s21, 3
    %p105 = por %p103, %p104
    %p107 = scmp.ne.s32.totalorder %s92, %s106
    %p108 = scmp.eq.s32.totalorder %s21, 0
    %p109 = por %p107, %p108
    %s111 = sadd.s32 %s110, 1
    %p114 = scmp.eq.s32.totalorder %s15, 3
    %p115 = scmp.ne.s32.totalorder %s110, %s112
    %p116 = scmp.eq.s32.totalorder %s15, 0
    %p117 = por %p115, %p116
    %p118 = scmp.ne.s32.totalorder %s110, %s112
    %p119 = scmp.eq.s32.totalorder %s20, 3
    %p120 = por %p118, %p119
    %p121 = scmp.ne.s32.totalorder %s112, %s113
    %p122 = scmp.eq.s32.totalorder %s20, 0
    %p123 = por %p121, %p122
    %p124 = scmp.ne.s32.totalorder %s112, %s113
    %p125 = scmp.eq.s32.totalorder %s21, 3
    %p126 = por %p124, %p125
    %p128 = scmp.ne.s32.totalorder %s113, %s127
    %p129 = scmp.eq.s32.totalorder %s21, 0
    %p130 = por %p128, %p129
    %s132 = sadd.s32 %s131, 1
    %p135 = scmp.eq.s32.totalorder %s15, 3
    %p136 = scmp.ne.s32.totalorder %s131, %s133
    %p137 = scmp.eq.s32.totalorder %s15, 0
    %p138 = por %p136, %p137
    %p139 = scmp.ne.s32.totalorder %s131, %s133
    %p140 = scmp.eq.s32.totalorder %s20, 3
    %p141 = por %p139, %p140
    %p142 = scmp.ne.s32.totalorder %s133, %s134
    %p143 = scmp.eq.s32.totalorder %s20, 0
    %p144 = por %p142, %p143
    %p145 = scmp.ne.s32.totalorder %s133, %s134
    %p146 = scmp.eq.s32.totalorder %s21, 3
    %p147 = por %p145, %p146
    %p149 = scmp.ne.s32.totalorder %s134, %s148
    %p150 = scmp.eq.s32.totalorder %s21, 0
    %p151 = por %p149, %p150
    %s153 = sadd.s32 %s152, 1
    %p156 = scmp.eq.s32.totalorder %s15, 3
    %p157 = scmp.ne.s32.totalorder %s152, %s154
    %p158 = scmp.eq.s32.totalorder %s15, 0
    %p159 = por %p157, %p158
    %p160 = scmp.ne.s32.totalorder %s152, %s154
    %p161 = scmp.eq.s32.totalorder %s20, 3
    %p162 = por %p160, %p161
    %p163 = scmp.ne.s32.totalorder %s154, %s155
    %p164 = scmp.eq.s32.totalorder %s20, 0
    %p165 = por %p163, %p164
    %p166 = scmp.ne.s32.totalorder %s154, %s155
    %p167 = scmp.eq.s32.totalorder %s21, 3
    %p168 = por %p166, %p167
    %p170 = scmp.ne.s32.totalorder %s155, %s169
    %p171 = scmp.eq.s32.totalorder %s21, 0
    %p172 = por %p170, %p171
    %s174 = sadd.s32 %s173, 1
    %p177 = scmp.eq.s32.totalorder %s15, 3
    %p178 = scmp.ne.s32.totalorder %s173, %s175
    %p179 = scmp.eq.s32.totalorder %s15, 0
    %p180 = por %p178, %p179
    %p181 = scmp.ne.s32.totalorder %s173, %s175
    %p182 = scmp.eq.s32.totalorder %s20, 3
    %p183 = por %p181, %p182
    %p184 = scmp.ne.s32.totalorder %s175, %s176
    %p185 = scmp.eq.s32.totalorder %s20, 0
    %p186 = por %p184, %p185
    %p187 = scmp.ne.s32.totalorder %s175, %s176
    %p188 = scmp.eq.s32.totalorder %s21, 3
    %p189 = por %p187, %p188
    %p191 = scmp.ne.s32.totalorder %s176, %s190
    %p192 = scmp.eq.s32.totalorder %s21, 0
    %p193 = por %p191, %p192
    %s195 = sadd.s32 %s194, 1
    %p198 = scmp.eq.s32.totalorder %s15, 3
    %p199 = scmp.ne.s32.totalorder %s194, %s196
    %p200 = scmp.eq.s32.totalorder %s15, 0
    %p201 = por %p199, %p200
    %p202 = scmp.ne.s32.totalorder %s194, %s196
    %p203 = scmp.eq.s32.totalorder %s20, 3
    %p204 = por %p202, %p203
    %p205 = scmp.ne.s32.totalorder %s196, %s197
    %p206 = scmp.eq.s32.totalorder %s20, 0
    %p207 = por %p205, %p206
    %p208 = scmp.ne.s32.totalorder %s196, %s197
    %p209 = scmp.eq.s32.totalorder %s21, 3
    %p210 = por %p208, %p209
    %p212 = scmp.ne.s32.totalorder %s197, %s211
    %p213 = scmp.eq.s32.totalorder %s21, 0
    %p214 = por %p212, %p213
    %s216 = sadd.s32 %s215, 1
    %p219 = scmp.eq.s32.totalorder %s15, 3
    %p220 = scmp.ne.s32.totalorder %s215, %s217
    %p221 = scmp.eq.s32.totalorder %s15, 0
    %p222 = por %p220, %p221
    %p223 = scmp.ne.s32.totalorder %s215, %s217
    %p224 = scmp.eq.s32.totalorder %s20, 3
    %p225 = por %p223, %p224
    %p226 = scmp.ne.s32.totalorder %s217, %s218
    %p227 = scmp.eq.s32.totalorder %s20, 0
    %p228 = por %p226, %p227
    %p229 = scmp.ne.s32.totalorder %s217, %s218
    %p230 = scmp.eq.s32.totalorder %s21, 3
    %p231 = por %p229, %p230
    %p233 = scmp.ne.s32.totalorder %s218, %s232
    %p234 = scmp.eq.s32.totalorder %s21, 0
    %p235 = por %p233, %p234
    %s236 = ssub.s32 %s22, %s34
    %s237 = ssub.s32 %s23, %s30
    %s238 = sor.u32 %s236, %s237
    %p239 = scmp.eq.s32.totalorder %s238, 0
    %s241 = sadd.s32 %s240, 1
    %s242 = scalar_select %p239, %s240, %s241
    %p245 = pneg %p239
    %p246 = scmp.eq.s32.totalorder %s15, 3
    %p247 = por %p245, %p246
    %p248 = scmp.ne.s32.totalorder %s240, %s243
    %p249 = scmp.eq.s32.totalorder %s15, 0
    %p250 = por %p248, %p249
    %p251 = scmp.ne.s32.totalorder %s240, %s243
    %p252 = scmp.eq.s32.totalorder %s20, 3
    %p253 = por %p251, %p252
    %p254 = scmp.ne.s32.totalorder %s243, %s244
    %p255 = scmp.eq.s32.totalorder %s20, 0
    %p256 = por %p254, %p255
    %p257 = scmp.ne.s32.totalorder %s243, %s244
    %p258 = scmp.eq.s32.totalorder %s21, 3
    %p259 = por %p257, %p258
    %p261 = scmp.ne.s32.totalorder %s244, %s260
    %p262 = scmp.eq.s32.totalorder %s21, 0
    %p263 = por %p261, %p262
    %p264 = scmp.le.s32.totalorder 1, %s15
    %p265 = scmp.lt.s32.totalorder %s15, 5
    %p266 = pnand %p264, %p265
    %p267 = pneg %p266
    // Predicated region
    $region9: #{basic_block_forward.1} parent=5 // pred_check
      _
    $region10: #{basic_block_forward.1} parent=5 // pred_check_branch
      %269 = sbr.rel (%p266) target = $region12
    $region11: #{basic_block_forward.1} parent=5 // pred_region
      %s270 = ssub.s32 %s15, 1
      // Predicated region
      $region13: #{basic_block_forward.1} parent=11 // pred_check
        %p271 = pneg %p102
      $region14: #{basic_block_forward.1} parent=11 // pred_check_branch
        %273 = sbr.rel (%p271) target = $region16
      $region15: #{basic_block_forward.1} parent=11 // pred_region
        _
      $region16: #{basic_block_forward.1} parent=11 // pred_fallthru
        _
      // Predicated region
      $region17: #{basic_block_forward.1} parent=11 // pred_check
        %p274 = pneg %p123
      $region18: #{basic_block_forward.1} parent=11 // pred_check_branch
        %276 = sbr.rel (%p274) target = $region20
      $region19: #{basic_block_forward.1} parent=11 // pred_region
        _
      $region20: #{basic_block_forward.1} parent=11 // pred_fallthru
        _
      // Predicated region
      $region21: #{basic_block_forward.1} parent=11 // pred_check
        %p277 = pneg %p144
      $region22: #{basic_block_forward.1} parent=11 // pred_check_branch
        %279 = sbr.rel (%p277) target = $region24
      $region23: #{basic_block_forward.1} parent=11 // pred_region
        _
      $region24: #{basic_block_forward.1} parent=11 // pred_fallthru
        _
      // Predicated region
      $region25: #{basic_block_forward.1} parent=11 // pred_check
        %p280 = pneg %p165
      $region26: #{basic_block_forward.1} parent=11 // pred_check_branch
        %282 = sbr.rel (%p280) target = $region28
      $region27: #{basic_block_forward.1} parent=11 // pred_region
        _
      $region28: #{basic_block_forward.1} parent=11 // pred_fallthru
        _
      // Predicated region
      $region29: #{basic_block_forward.1} parent=11 // pred_check
        %p283 = pneg %p186
      $region30: #{basic_block_forward.1} parent=11 // pred_check_branch
        %285 = sbr.rel (%p283) target = $region32
      $region31: #{basic_block_forward.1} parent=11 // pred_region
        _
      $region32: #{basic_block_forward.1} parent=11 // pred_fallthru
        _
      // Predicated region
      $region33: #{basic_block_forward.1} parent=11 // pred_check
        %p286 = pneg %p207
      $region34: #{basic_block_forward.1} parent=11 // pred_check_branch
        %288 = sbr.rel (%p286) target = $region36
      $region35: #{basic_block_forward.1} parent=11 // pred_region
        _
      $region36: #{basic_block_forward.1} parent=11 // pred_fallthru
        _
      // Predicated region
      $region37: #{basic_block_forward.1} parent=11 // pred_check
        %p289 = pneg %p228
      $region38: #{basic_block_forward.1} parent=11 // pred_check_branch
        %291 = sbr.rel (%p289) target = $region40
      $region39: #{basic_block_forward.1} parent=11 // pred_region
        _
      $region40: #{basic_block_forward.1} parent=11 // pred_fallthru
        _
    $region12: #{basic_block_forward.1} parent=5 // pred_fallthru
      _
    %p292 = scmp.lt.s32.totalorder %s15, 4
    // Predicated region
    $region41: #{basic_block_forward.1} parent=5 // pred_check
      %p293 = pneg %p292
    $region42: #{basic_block_forward.1} parent=5 // pred_check_branch
      %295 = sbr.rel (%p293) target = $region44
    $region43: #{basic_block_forward.1} parent=5 // pred_region
      // Predicated region
      $region45: #{basic_block_forward.1} parent=43 // pred_check
        %p296 = pneg %p49
      $region46: #{basic_block_forward.1} parent=43 // pred_check_branch
        %298 = sbr.rel (%p296) target = $region48
      $region47: #{basic_block_forward.1} parent=43 // pred_region
        %p299 = scmp.lt.s32.totalorder %s22, 1
        %s300 = scalar_select %p299, %s22, 1
        %p301 = scmp.lt.s32.totalorder %s23, 1
        %s302 = scalar_select %p301, %s23, 1
        %s303 = smul.addr %s302, 30
        %s304 = smul.addr %s300, 60
        %s305 = sadd.s32 %s303, %s304
        %s306 = smul.addr %s305, 4
        %s307 = scalar_lea.vmem %s0, %s306
      $region48: #{basic_block_forward.1} parent=43 // pred_fallthru
        _
      // Predicated region
      $region49: #{basic_block_forward.1} parent=43 // pred_check
        %p308 = pneg %p75
      $region50: #{basic_block_forward.1} parent=43 // pred_check_branch
        %310 = sbr.rel (%p308) target = $region52
      $region51: #{basic_block_forward.1} parent=43 // pred_region
        %p311 = scmp.lt.s32.totalorder %s23, 1
        %s312 = scalar_select %p311, %s23, 1
        %s313 = smul.addr %s312, 25
        %s314 = smul.addr %s313, 8
        %s315 = scalar_lea.vmem %s1, %s314
      $region52: #{basic_block_forward.1} parent=43 // pred_fallthru
        _
    $region44: #{basic_block_forward.1} parent=5 // pred_fallthru
      _
    %p316 = scmp.le.s32.totalorder 1, %s15
    %p317 = scmp.lt.s32.totalorder %s15, 5
    %p318 = pnand %p316, %p317
    %p319 = pneg %p318
    // Predicated region
    $region53: #{basic_block_forward.1} parent=5 // pred_check
      _
    $region54: #{basic_block_forward.1} parent=5 // pred_check_branch
      %321 = sbr.rel (%p318) target = $region56
    $region55: #{basic_block_forward.1} parent=5 // pred_region
      %s322 = ssub.s32 %s15, 1
      %p323 = scmp.lt.s32.totalorder %s24, 1
      %s324 = scalar_select %p323, %s24, 1
      %p325 = scmp.lt.s32.totalorder %s25, 1
      %s326 = scalar_select %p325, %s25, 1
      %s327 = smul.addr %s326, 30
      %s328 = smul.addr %s324, 60
      %s329 = sadd.s32 %s327, %s328
      %s330 = smul.addr %s329, 4
      %s331 = scalar_lea.vmem %s0, %s330
      %p332 = pneg %p55
      %p333 = pneg %p52
      %p334 = scmp.lt.s32.totalorder %s25, 1
      %s335 = scalar_select %p334, %s25, 1
      %s336 = smul.addr %s335, 25
      %s337 = smul.addr %s336, 8
      %s338 = scalar_lea.vmem %s1, %s337
      %p339 = pneg %p81
      %p340 = pneg %p78
      %p341 = pneg %p102
      %p342 = pneg %p99
      %p343 = pneg %p123
      %p344 = pneg %p120
      %p345 = pneg %p144
      %p346 = pneg %p141
      %p347 = pneg %p165
      %p348 = pneg %p162
      %p349 = pneg %p186
      %p350 = pneg %p183
      %p351 = pneg %p207
      %p352 = pneg %p204
      %p353 = pneg %p228
      %p354 = pneg %p225
      %p355 = pneg %p256
      %p356 = pneg %p253
      %p357 = scmp.lt.s32.totalorder %s24, 1
      %s358 = scalar_select %p357, %s24, 1
      %p359 = scmp.lt.s32.totalorder %s25, 1
      %s360 = scalar_select %p359, %s25, 1
      %s361 = smul.addr %s360, 20
      %s362 = smul.addr %s358, 40
      %s363 = sadd.s32 %s361, %s362
      %s364 = smul.addr %s363, 8
      %s365 = scalar_lea.vmem %s9, %s364
      %p366 = scmp.lt.s32.totalorder %s24, 1
      %s367 = scalar_select %p366, %s24, 1
      %p368 = scmp.lt.s32.totalorder %s25, 1
      %s369 = scalar_select %p368, %s25, 1
      %s370 = smul.addr %s369, 30
      %s371 = smul.addr %s367, 60
      %s372 = sadd.s32 %s370, %s371
      %s373 = smul.addr %s372, 4
      %s374 = scalar_lea.vmem %s0, %s373
      %p375 = scmp.lt.s32.totalorder %s25, 1
      %s376 = scalar_select %p375, %s25, 1
      %s377 = smul.addr %s376, 25
      %s378 = smul.addr %s377, 8
      %s379 = scalar_lea.vmem %s1, %s378
      %p380 = scmp.lt.s32.totalorder %s24, 1
      %s381 = scalar_select %p380, %s24, 1
      %p382 = scmp.lt.s32.totalorder %s25, 1
      %s383 = scalar_select %p382, %s25, 1
      %s384 = smul.addr %s383, 20
      %s385 = smul.addr %s381, 40
      %s386 = sadd.s32 %s384, %s385
      %s387 = smul.addr %s386, 8
      %s388 = scalar_lea.vmem %s9, %s387
      %v390 = vld [vmem:[%s374] sm:$0xf]
      %v391 = vld [vmem:[%s374 + $0x4] sm:$0xf]
      %v392 = vld [vmem:[%s374 + $0x8] sm:$0xf]
      %v393 = vld [vmem:[%s374 + $0xc] sm:$0xf]
      %v394 = vld [vmem:[%s374 + $0x10] sm:$0xf]
      %v395 = vld [vmem:[%s374 + $0x14] sm:$0xf]
      %v396 = vld [vmem:[%s374 + $0x18] sm:$0xf]
      %v397 = vld [vmem:[%s374 + $0x1c] sm:$0xf]
      %v398 = vld [vmem:[%s374 + $0x20] sm:$0xf]
      %v399 = vld [vmem:[%s374 + $0x24] sm:$0xf]
      %v400 = vld [vmem:[%s374 + $0x28] sm:$0xf]
      %v401 = vld [vmem:[%s374 + $0x2c] sm:$0xf]
      %v402 = vld [vmem:[%s374 + $0x30] sm:$0xf]
      %v403 = vld [vmem:[%s374 + $0x34] sm:$0xf]
      %v404 = vld [vmem:[%s374 + $0x38] sm:$0xf]
      %v405 = vld [vmem:[%s374 + $0x3c] sm:$0xf]
      %v406 = vld [vmem:[%s374 + $0x40] sm:$0xf]
      %v407 = vld [vmem:[%s374 + $0x44] sm:$0xf]
      %v408 = vld [vmem:[%s374 + $0x48] sm:$0xf]
      %v409 = vld [vmem:[%s374 + $0x4c] sm:$0xf]
      %v410 = vld [vmem:[%s374 + $0x50] sm:$0xf]
      %v411 = vld [vmem:[%s374 + $0x54] sm:$0xf]
      %v412 = vld [vmem:[%s374 + $0x58] sm:$0xf]
      %v413 = vld [vmem:[%s374 + $0x5c] sm:$0xf]
      %v414 = vld [vmem:[%s374 + $0x60] sm:$0xf]
      %v415 = vld [vmem:[%s374 + $0x64] sm:$0xf]
      %v416 = vld [vmem:[%s374 + $0x68] sm:$0xf]
      %v417 = vld [vmem:[%s374 + $0x6c] sm:$0xf]
      %v418 = vld [vmem:[%s374 + $0x70] sm:$0xf]
      %v419 = vld [vmem:[%s374 + $0x74] sm:$0xf]
      %v420 = vunpack.c.l.bf16 %v390
      %v421 = vunpack.c.l.bf16 %v391
      %v422 = vunpack.c.l.bf16 %v392
      %v423 = vunpack.c.l.bf16 %v393
      %v424 = vunpack.c.l.bf16 %v394
      %v425 = vunpack.c.l.bf16 %v395
      %v426 = vunpack.c.l.bf16 %v396
      %v427 = vunpack.c.l.bf16 %v397
      %v428 = vunpack.c.l.bf16 %v398
      %v429 = vunpack.c.l.bf16 %v399
      %v430 = vunpack.c.l.bf16 %v400
      %v431 = vunpack.c.l.bf16 %v401
      %v432 = vunpack.c.l.bf16 %v402
      %v433 = vunpack.c.l.bf16 %v403
      %v434 = vunpack.c.l.bf16 %v404
      %v435 = vunpack.c.l.bf16 %v405
      %v436 = vunpack.c.l.bf16 %v406
      %v437 = vunpack.c.l.bf16 %v407
      %v438 = vunpack.c.l.bf16 %v408
      %v439 = vunpack.c.l.bf16 %v409
      %v440 = vunpack.c.l.bf16 %v410
      %v441 = vunpack.c.l.bf16 %v411
      %v442 = vunpack.c.l.bf16 %v412
      %v443 = vunpack.c.l.bf16 %v413
      %v444 = vunpack.c.l.bf16 %v414
      %v445 = vunpack.c.l.bf16 %v415
      %v446 = vunpack.c.l.bf16 %v416
      %v447 = vunpack.c.l.bf16 %v417
      %v448 = vunpack.c.l.bf16 %v418
      %v449 = vunpack.c.l.bf16 %v419
      %v450 = vpack.c.bf16 %v421, %v420
      %v451 = vpack.c.bf16 %v423, %v422
      %v452 = vpack.c.bf16 %v425, %v424
      %v453 = vpack.c.bf16 %v427, %v426
      %v454 = vpack.c.bf16 %v429, %v428
      %v455 = vpack.c.bf16 %v431, %v430
      %v456 = vpack.c.bf16 %v433, %v432
      %v457 = vpack.c.bf16 %v435, %v434
      %v458 = vpack.c.bf16 %v437, %v436
      %v459 = vpack.c.bf16 %v439, %v438
      %v460 = vpack.c.bf16 %v441, %v440
      %v461 = vpack.c.bf16 %v443, %v442
      %v462 = vpack.c.bf16 %v444, %v444
      %v463 = vld [vmem:[%s2] sm:$0x3]
      %s464 = scalar_lea.vmem %s2, 2
      %v465 = vld [vmem:[%s464] sm:$0x3]
      %vm466 = vsmask.f32 7424
      %v468 = vshrl.u32 %v450, 16
      %v470 = vshll.u32 %v450, 16
      %v472 = vrot.slane %v470, 1
      %v473 = vor.u32 %v468, %v472
      %v475 = vshll.u32 %v451, 16
      %v477 = vrot.slane %v475, 1
      %v478 = vsel %vm466, %v473, %v477
      %v479 = vshrl.u32 %v451, 16
      %v481 = vor.u32 %v479, %v477
      %v483 = vshll.u32 %v452, 16
      %v485 = vrot.slane %v483, 1
      %v486 = vsel %vm466, %v481, %v485
      %v487 = vshrl.u32 %v452, 16
      %v489 = vor.u32 %v487, %v485
      %v491 = vshll.u32 %v453, 16
      %v493 = vrot.slane %v491, 1
      %v494 = vsel %vm466, %v489, %v493
      %v495 = vshrl.u32 %v453, 16
      %v497 = vor.u32 %v495, %v493
      %v499 = vshll.u32 %v454, 16
      %v501 = vrot.slane %v499, 1
      %v502 = vsel %vm466, %v497, %v501
      %v503 = vshrl.u32 %v454, 16
      %v505 = vor.u32 %v503, %v501
      %v507 = vshll.u32 %v455, 16
      %v509 = vrot.slane %v507, 1
      %v510 = vsel %vm466, %v505, %v509
      %v511 = vshrl.u32 %v455, 16
      %v513 = vor.u32 %v511, %v509
      %v515 = vshll.u32 %v456, 16
      %v517 = vrot.slane %v515, 1
      %v518 = vsel %vm466, %v513, %v517
      %v519 = vshrl.u32 %v456, 16
      %v521 = vor.u32 %v519, %v517
      %v523 = vshll.u32 %v457, 16
      %v525 = vrot.slane %v523, 1
      %v526 = vsel %vm466, %v521, %v525
      %v527 = vshrl.u32 %v457, 16
      %v529 = vor.u32 %v527, %v525
      %v531 = vshll.u32 %v458, 16
      %v533 = vrot.slane %v531, 1
      %v534 = vsel %vm466, %v529, %v533
      %v535 = vshrl.u32 %v458, 16
      %v537 = vor.u32 %v535, %v533
      %v539 = vshll.u32 %v459, 16
      %v541 = vrot.slane %v539, 1
      %v542 = vsel %vm466, %v537, %v541
      %v543 = vshrl.u32 %v459, 16
      %v545 = vor.u32 %v543, %v541
      %v547 = vshll.u32 %v460, 16
      %v549 = vrot.slane %v547, 1
      %v550 = vsel %vm466, %v545, %v549
      %v551 = vshrl.u32 %v460, 16
      %v553 = vor.u32 %v551, %v549
      %v555 = vshll.u32 %v461, 16
      %v557 = vrot.slane %v555, 1
      %v558 = vsel %vm466, %v553, %v557
      %v559 = vshrl.u32 %v461, 16
      %v561 = vor.u32 %v559, %v557
      %v563 = vshll.u32 %v462, 16
      %v565 = vrot.slane %v563, 1
      %v566 = vsel %vm466, %v561, %v565
      %v567 = vshrl.u32 %v462, 16
      %v569 = vor.u32 %v567, %v565
      %vm570 = vcmask 31744
      %v572 = vsel %vm570, %v478, 0
      %v575 = vsel %vm570, %v486, 0
      %v578 = vsel %vm570, %v494, 0
      %v581 = vsel %vm570, %v502, 0
      %v584 = vsel %vm570, %v510, 0
      %v587 = vsel %vm570, %v518, 0
      %v590 = vsel %vm570, %v526, 0
      %v593 = vsel %vm570, %v534, 0
      %v596 = vsel %vm570, %v542, 0
      %v599 = vsel %vm570, %v550, 0
      %v602 = vsel %vm570, %v558, 0
      %v605 = vsel %vm570, %v566, 0
      %v608 = vsel %vm570, %v569, 0
      %vm610 = vcmask 1041408
      %v612 = vsel %vm610, %v465, 0
      %614 = vmatpush.bf16.msra.mxu0 0
      %615 = vmatpush.bf16.msra.mxu0 0
      %616 = vmatpush.bf16.msra.mxu0 0
      %617 = vmatpush.bf16.msra.mxu0 0
      %618 = vmatpush.bf16.msra.mxu0 0
      %619 = vmatpush.bf16.msra.mxu0 0
      %620 = vmatpush.bf16.msra.mxu0 0
      %621 = vmatpush.bf16.msra.mxu0 %v612
      %622 = vmatmul.bf16.gmra.mxu0 %v572
      %v623 = vpop.f32.mrf.mxu0
      %v624 = vadd.f32 0.0, %v623
      %v625 = vpop.f32.mrf.mxu0
      %v626 = vadd.f32 0.0, %v625
      %627 = vmatmul.bf16.gmra.mxu0 %v575
      %v628 = vpop.f32.mrf.mxu0
      %v629 = vadd.f32 0.0, %v628
      %v630 = vpop.f32.mrf.mxu0
      %v631 = vadd.f32 0.0, %v630
      %632 = vmatmul.bf16.gmra.mxu0 %v578
      %v633 = vpop.f32.mrf.mxu0
      %v634 = vadd.f32 0.0, %v633
      %v635 = vpop.f32.mrf.mxu0
      %v636 = vadd.f32 0.0, %v635
      %637 = vmatmul.bf16.gmra.mxu0 %v581
      %v638 = vpop.f32.mrf.mxu0
      %v639 = vadd.f32 0.0, %v638
      %v640 = vpop.f32.mrf.mxu0
      %v641 = vadd.f32 0.0, %v640
      %642 = vmatmul.bf16.gmra.mxu0 %v584
      %v643 = vpop.f32.mrf.mxu0
      %v644 = vadd.f32 0.0, %v643
      %v645 = vpop.f32.mrf.mxu0
      %v646 = vadd.f32 0.0, %v645
      %647 = vmatmul.bf16.gmra.mxu0 %v587
      %v648 = vpop.f32.mrf.mxu0
      %v649 = vadd.f32 0.0, %v648
      %v650 = vpop.f32.mrf.mxu0
      %v651 = vadd.f32 0.0, %v650
      %652 = vmatmul.bf16.gmra.mxu0 %v590
      %v653 = vpop.f32.mrf.mxu0
      %v654 = vadd.f32 0.0, %v653
      %v655 = vpop.f32.mrf.mxu0
      %v656 = vadd.f32 0.0, %v655
      %657 = vmatmul.bf16.gmra.mxu0 %v593
      %v658 = vpop.f32.mrf.mxu0
      %v659 = vadd.f32 0.0, %v658
      %v660 = vpop.f32.mrf.mxu0
      %v661 = vadd.f32 0.0, %v660
      %662 = vmatmul.bf16.gmra.mxu0 %v596
      %v663 = vpop.f32.mrf.mxu0
      %v664 = vadd.f32 0.0, %v663
      %v665 = vpop.f32.mrf.mxu0
      %v666 = vadd.f32 0.0, %v665
      %667 = vmatmul.bf16.gmra.mxu0 %v599
      %v668 = vpop.f32.mrf.mxu0
      %v669 = vadd.f32 0.0, %v668
      %v670 = vpop.f32.mrf.mxu0
      %v671 = vadd.f32 0.0, %v670
      %672 = vmatmul.bf16.gmra.mxu0 %v602
      %v673 = vpop.f32.mrf.mxu0
      %v674 = vadd.f32 0.0, %v673
      %v675 = vpop.f32.mrf.mxu0
      %v676 = vadd.f32 0.0, %v675
      %677 = vmatmul.bf16.gmra.mxu0 %v605
      %v678 = vpop.f32.mrf.mxu0
      %v679 = vadd.f32 0.0, %v678
      %v680 = vpop.f32.mrf.mxu0
      %v681 = vadd.f32 0.0, %v680
      %682 = vmatmul.bf16.gmra.mxu0 %v608
      %v683 = vpop.f32.mrf.mxu0
      %v684 = vadd.f32 0.0, %v683
      %v685 = vpop.f32.mrf.mxu0
      %686 = vdwg.mxu0
      %v687 = vsel %vm570, %v450, 0
      %v689 = vsel %vm570, %v451, 0
      %v691 = vsel %vm570, %v452, 0
      %v693 = vsel %vm570, %v453, 0
      %v695 = vsel %vm570, %v454, 0
      %v697 = vsel %vm570, %v455, 0
      %v699 = vsel %vm570, %v456, 0
      %v701 = vsel %vm570, %v457, 0
      %v703 = vsel %vm570, %v458, 0
      %v705 = vsel %vm570, %v459, 0
      %v707 = vsel %vm570, %v460, 0
      %v709 = vsel %vm570, %v461, 0
      %v711 = vsel %vm570, %v462, 0
      %v714 = vsel %vm610, %v463, 0
      %716 = vmatpush.bf16.msra.mxu0 0
      %717 = vmatpush.bf16.msra.mxu0 0
      %718 = vmatpush.bf16.msra.mxu0 0
      %719 = vmatpush.bf16.msra.mxu0 0
      %720 = vmatpush.bf16.msra.mxu0 0
      %721 = vmatpush.bf16.msra.mxu0 0
      %722 = vmatpush.bf16.msra.mxu0 0
      %723 = vmatpush.bf16.msra.mxu0 %v714
      %724 = vmatmul.bf16.gmra.mxu0 %v687
      %v725 = vpop.f32.mrf.mxu0
      %v726 = vadd.f32 %v624, %v725
      %v727 = vpop.f32.mrf.mxu0
      %v728 = vadd.f32 %v626, %v727
      %729 = vmatmul.bf16.gmra.mxu0 %v689
      %v730 = vpop.f32.mrf.mxu0
      %v731 = vadd.f32 %v629, %v730
      %v732 = vpop.f32.mrf.mxu0
      %v733 = vadd.f32 %v631, %v732
      %734 = vmatmul.bf16.gmra.mxu0 %v691
      %v735 = vpop.f32.mrf.mxu0
      %v736 = vadd.f32 %v634, %v735
      %v737 = vpop.f32.mrf.mxu0
      %v738 = vadd.f32 %v636, %v737
      %739 = vmatmul.bf16.gmra.mxu0 %v693
      %v740 = vpop.f32.mrf.mxu0
      %v741 = vadd.f32 %v639, %v740
      %v742 = vpop.f32.mrf.mxu0
      %v743 = vadd.f32 %v641, %v742
      %744 = vmatmul.bf16.gmra.mxu0 %v695
      %v745 = vpop.f32.mrf.mxu0
      %v746 = vadd.f32 %v644, %v745
      %v747 = vpop.f32.mrf.mxu0
      %v748 = vadd.f32 %v646, %v747
      %749 = vmatmul.bf16.gmra.mxu0 %v697
      %v750 = vpop.f32.mrf.mxu0
      %v751 = vadd.f32 %v649, %v750
      %v752 = vpop.f32.mrf.mxu0
      %v753 = vadd.f32 %v651, %v752
      %754 = vmatmul.bf16.gmra.mxu0 %v699
      %v755 = vpop.f32.mrf.mxu0
      %v756 = vadd.f32 %v654, %v755
      %v757 = vpop.f32.mrf.mxu0
      %v758 = vadd.f32 %v656, %v757
      %759 = vmatmul.bf16.gmra.mxu0 %v701
      %v760 = vpop.f32.mrf.mxu0
      %v761 = vadd.f32 %v659, %v760
      %v762 = vpop.f32.mrf.mxu0
      %v763 = vadd.f32 %v661, %v762
      %764 = vmatmul.bf16.gmra.mxu0 %v703
      %v765 = vpop.f32.mrf.mxu0
      %v766 = vadd.f32 %v664, %v765
      %v767 = vpop.f32.mrf.mxu0
      %v768 = vadd.f32 %v666, %v767
      %769 = vmatmul.bf16.gmra.mxu0 %v705
      %v770 = vpop.f32.mrf.mxu0
      %v771 = vadd.f32 %v669, %v770
      %v772 = vpop.f32.mrf.mxu0
      %v773 = vadd.f32 %v671, %v772
      %774 = vmatmul.bf16.gmra.mxu0 %v707
      %v775 = vpop.f32.mrf.mxu0
      %v776 = vadd.f32 %v674, %v775
      %v777 = vpop.f32.mrf.mxu0
      %v778 = vadd.f32 %v676, %v777
      %779 = vmatmul.bf16.gmra.mxu0 %v709
      %v780 = vpop.f32.mrf.mxu0
      %v781 = vadd.f32 %v679, %v780
      %v782 = vpop.f32.mrf.mxu0
      %v783 = vadd.f32 %v681, %v782
      %784 = vmatmul.bf16.gmra.mxu0 %v711
      %v785 = vpop.f32.mrf.mxu0
      %v786 = vadd.f32 %v684, %v785
      %v787 = vpop.f32.mrf.mxu0
      %788 = vdwg.mxu0
      %s789 = scalar_lea.vmem %s2, 4
      %v790 = vld [vmem:[%s789] sm:$0x3]
      %vm804 = vcmask 1046528
      %v805 = vrot.slane %v450, 1
      %v806 = vrot.slane %v451, 1
      %v807 = vsel %vm804, %v805, %v806
      %v808 = vrot.slane %v452, 1
      %v809 = vsel %vm804, %v806, %v808
      %v810 = vrot.slane %v453, 1
      %v811 = vsel %vm804, %v808, %v810
      %v812 = vrot.slane %v454, 1
      %v813 = vsel %vm804, %v810, %v812
      %v814 = vrot.slane %v455, 1
      %v815 = vsel %vm804, %v812, %v814
      %v816 = vrot.slane %v456, 1
      %v817 = vsel %vm804, %v814, %v816
      %v818 = vrot.slane %v457, 1
      %v819 = vsel %vm804, %v816, %v818
      %v820 = vrot.slane %v458, 1
      %v821 = vsel %vm804, %v818, %v820
      %v822 = vrot.slane %v459, 1
      %v823 = vsel %vm804, %v820, %v822
      %v824 = vrot.slane %v460, 1
      %v825 = vsel %vm804, %v822, %v824
      %v826 = vrot.slane %v461, 1
      %v827 = vsel %vm804, %v824, %v826
      %v828 = vrot.slane %v462, 1
      %v829 = vsel %vm804, %v826, %v828
      %v831 = vsel %vm570, %v807, 0
      %v834 = vsel %vm570, %v809, 0
      %v837 = vsel %vm570, %v811, 0
      %v840 = vsel %vm570, %v813, 0
      %v843 = vsel %vm570, %v815, 0
      %v846 = vsel %vm570, %v817, 0
      %v849 = vsel %vm570, %v819, 0
      %v852 = vsel %vm570, %v821, 0
      %v855 = vsel %vm570, %v823, 0
      %v858 = vsel %vm570, %v825, 0
      %v861 = vsel %vm570, %v827, 0
      %v864 = vsel %vm570, %v829, 0
      %v867 = vsel %vm570, %v828, 0
      %v870 = vsel %vm610, %v790, 0
      %872 = vmatpush.bf16.msra.mxu0 0
      %873 = vmatpush.bf16.msra.mxu0 0
      %874 = vmatpush.bf16.msra.mxu0 0
      %875 = vmatpush.bf16.msra.mxu0 0
      %876 = vmatpush.bf16.msra.mxu0 0
      %877 = vmatpush.bf16.msra.mxu0 0
      %878 = vmatpush.bf16.msra.mxu0 0
      %879 = vmatpush.bf16.msra.mxu0 %v870
      %880 = vmatmul.bf16.gmra.mxu0 %v831
      %v881 = vpop.f32.mrf.mxu0
      %v882 = vadd.f32 0.0, %v881
      %v883 = vpop.f32.mrf.mxu0
      %v884 = vadd.f32 0.0, %v883
      %885 = vmatmul.bf16.gmra.mxu0 %v834
      %v886 = vpop.f32.mrf.mxu0
      %v887 = vadd.f32 0.0, %v886
      %v888 = vpop.f32.mrf.mxu0
      %v889 = vadd.f32 0.0, %v888
      %890 = vmatmul.bf16.gmra.mxu0 %v837
      %v891 = vpop.f32.mrf.mxu0
      %v892 = vadd.f32 0.0, %v891
      %v893 = vpop.f32.mrf.mxu0
      %v894 = vadd.f32 0.0, %v893
      %895 = vmatmul.bf16.gmra.mxu0 %v840
      %v896 = vpop.f32.mrf.mxu0
      %v897 = vadd.f32 0.0, %v896
      %v898 = vpop.f32.mrf.mxu0
      %v899 = vadd.f32 0.0, %v898
      %900 = vmatmul.bf16.gmra.mxu0 %v843
      %v901 = vpop.f32.mrf.mxu0
      %v902 = vadd.f32 0.0, %v901
      %v903 = vpop.f32.mrf.mxu0
      %v904 = vadd.f32 0.0, %v903
      %905 = vmatmul.bf16.gmra.mxu0 %v846
      %v906 = vpop.f32.mrf.mxu0
      %v907 = vadd.f32 0.0, %v906
      %v908 = vpop.f32.mrf.mxu0
      %v909 = vadd.f32 0.0, %v908
      %910 = vmatmul.bf16.gmra.mxu0 %v849
      %v911 = vpop.f32.mrf.mxu0
      %v912 = vadd.f32 0.0, %v911
      %v913 = vpop.f32.mrf.mxu0
      %v914 = vadd.f32 0.0, %v913
      %915 = vmatmul.bf16.gmra.mxu0 %v852
      %v916 = vpop.f32.mrf.mxu0
      %v917 = vadd.f32 0.0, %v916
      %v918 = vpop.f32.mrf.mxu0
      %v919 = vadd.f32 0.0, %v918
      %920 = vmatmul.bf16.gmra.mxu0 %v855
      %v921 = vpop.f32.mrf.mxu0
      %v922 = vadd.f32 0.0, %v921
      %v923 = vpop.f32.mrf.mxu0
      %v924 = vadd.f32 0.0, %v923
      %925 = vmatmul.bf16.gmra.mxu0 %v858
      %v926 = vpop.f32.mrf.mxu0
      %v927 = vadd.f32 0.0, %v926
      %v928 = vpop.f32.mrf.mxu0
      %v929 = vadd.f32 0.0, %v928
      %930 = vmatmul.bf16.gmra.mxu0 %v861
      %v931 = vpop.f32.mrf.mxu0
      %v932 = vadd.f32 0.0, %v931
      %v933 = vpop.f32.mrf.mxu0
      %v934 = vadd.f32 0.0, %v933
      %935 = vmatmul.bf16.gmra.mxu0 %v864
      %v936 = vpop.f32.mrf.mxu0
      %v937 = vadd.f32 0.0, %v936
      %v938 = vpop.f32.mrf.mxu0
      %v939 = vadd.f32 0.0, %v938
      %940 = vmatmul.bf16.gmra.mxu0 %v867
      %v941 = vpop.f32.mrf.mxu0
      %v942 = vadd.f32 0.0, %v941
      %v943 = vpop.f32.mrf.mxu0
      %944 = vdwg.mxu0
      %v945 = vadd.f32 %v726, %v882
      %v946 = vadd.f32 %v728, %v884
      %v947 = vadd.f32 %v731, %v887
      %v948 = vadd.f32 %v733, %v889
      %v949 = vadd.f32 %v736, %v892
      %v950 = vadd.f32 %v738, %v894
      %v951 = vadd.f32 %v741, %v897
      %v952 = vadd.f32 %v743, %v899
      %v953 = vadd.f32 %v746, %v902
      %v954 = vadd.f32 %v748, %v904
      %v955 = vadd.f32 %v751, %v907
      %v956 = vadd.f32 %v753, %v909
      %v957 = vadd.f32 %v756, %v912
      %v958 = vadd.f32 %v758, %v914
      %v959 = vadd.f32 %v761, %v917
      %v960 = vadd.f32 %v763, %v919
      %v961 = vadd.f32 %v766, %v922
      %v962 = vadd.f32 %v768, %v924
      %v963 = vadd.f32 %v771, %v927
      %v964 = vadd.f32 %v773, %v929
      %v965 = vadd.f32 %v776, %v932
      %v966 = vadd.f32 %v778, %v934
      %v967 = vadd.f32 %v781, %v937
      %v968 = vadd.f32 %v783, %v939
      %v969 = vadd.f32 %v786, %v942
      %v970 = vpack.c.bf16 %v445, %v444
      %v971 = vpack.c.bf16 %v447, %v446
      %s972 = scalar_lea.vmem %s2, 6
      %v973 = vld [vmem:[%s972] sm:$0x3]
      %vm976 = vcmask 1045504
      %v977 = vrot.slane %v451, 2
      %v978 = vrot.slane %v452, 2
      %v979 = vsel %vm976, %v977, %v978
      %v980 = vrot.slane %v453, 2
      %v981 = vsel %vm976, %v978, %v980
      %v982 = vrot.slane %v454, 2
      %v983 = vsel %vm976, %v980, %v982
      %v984 = vrot.slane %v455, 2
      %v985 = vsel %vm976, %v982, %v984
      %v986 = vrot.slane %v456, 2
      %v987 = vsel %vm976, %v984, %v986
      %v988 = vrot.slane %v457, 2
      %v989 = vsel %vm976, %v986, %v988
      %v990 = vrot.slane %v458, 2
      %v991 = vsel %vm976, %v988, %v990
      %v992 = vrot.slane %v459, 2
      %v993 = vsel %vm976, %v990, %v992
      %v994 = vrot.slane %v460, 2
      %v995 = vsel %vm976, %v992, %v994
      %v996 = vrot.slane %v461, 2
      %v997 = vsel %vm976, %v994, %v996
      %v998 = vrot.slane %v970, 2
      %v999 = vsel %vm976, %v996, %v998
      %v1000 = vrot.slane %v971, 2
      %v1001 = vsel %vm976, %v998, %v1000
      %v1003 = vsel %vm570, %v979, 0
      %v1006 = vsel %vm570, %v981, 0
      %v1009 = vsel %vm570, %v983, 0
      %v1012 = vsel %vm570, %v985, 0
      %v1015 = vsel %vm570, %v987, 0
      %v1018 = vsel %vm570, %v989, 0
      %v1021 = vsel %vm570, %v991, 0
      %v1024 = vsel %vm570, %v993, 0
      %v1027 = vsel %vm570, %v995, 0
      %v1030 = vsel %vm570, %v997, 0
      %v1033 = vsel %vm570, %v999, 0
      %v1036 = vsel %vm570, %v1001, 0
      %v1039 = vsel %vm570, %v1000, 0
      %v1042 = vsel %vm610, %v973, 0
      %1044 = vmatpush.bf16.msra.mxu0 0
      %1045 = vmatpush.bf16.msra.mxu0 0
      %1046 = vmatpush.bf16.msra.mxu0 0
      %1047 = vmatpush.bf16.msra.mxu0 0
      %1048 = vmatpush.bf16.msra.mxu0 0
      %1049 = vmatpush.bf16.msra.mxu0 0
      %1050 = vmatpush.bf16.msra.mxu0 0
      %1051 = vmatpush.bf16.msra.mxu0 %v1042
      %1052 = vmatmul.bf16.gmra.mxu0 %v1003
      %v1053 = vpop.f32.mrf.mxu0
      %v1054 = vadd.f32 0.0, %v1053
      %v1055 = vpop.f32.mrf.mxu0
      %v1056 = vadd.f32 0.0, %v1055
      %1057 = vmatmul.bf16.gmra.mxu0 %v1006
      %v1058 = vpop.f32.mrf.mxu0
      %v1059 = vadd.f32 0.0, %v1058
      %v1060 = vpop.f32.mrf.mxu0
      %v1061 = vadd.f32 0.0, %v1060
      %1062 = vmatmul.bf16.gmra.mxu0 %v1009
      %v1063 = vpop.f32.mrf.mxu0
      %v1064 = vadd.f32 0.0, %v1063
      %v1065 = vpop.f32.mrf.mxu0
      %v1066 = vadd.f32 0.0, %v1065
      %1067 = vmatmul.bf16.gmra.mxu0 %v1012
      %v1068 = vpop.f32.mrf.mxu0
      %v1069 = vadd.f32 0.0, %v1068
      %v1070 = vpop.f32.mrf.mxu0
      %v1071 = vadd.f32 0.0, %v1070
      %1072 = vmatmul.bf16.gmra.mxu0 %v1015
      %v1073 = vpop.f32.mrf.mxu0
      %v1074 = vadd.f32 0.0, %v1073
      %v1075 = vpop.f32.mrf.mxu0
      %v1076 = vadd.f32 0.0, %v1075
      %1077 = vmatmul.bf16.gmra.mxu0 %v1018
      %v1078 = vpop.f32.mrf.mxu0
      %v1079 = vadd.f32 0.0, %v1078
      %v1080 = vpop.f32.mrf.mxu0
      %v1081 = vadd.f32 0.0, %v1080
      %1082 = vmatmul.bf16.gmra.mxu0 %v1021
      %v1083 = vpop.f32.mrf.mxu0
      %v1084 = vadd.f32 0.0, %v1083
      %v1085 = vpop.f32.mrf.mxu0
      %v1086 = vadd.f32 0.0, %v1085
      %1087 = vmatmul.bf16.gmra.mxu0 %v1024
      %v1088 = vpop.f32.mrf.mxu0
      %v1089 = vadd.f32 0.0, %v1088
      %v1090 = vpop.f32.mrf.mxu0
      %v1091 = vadd.f32 0.0, %v1090
      %1092 = vmatmul.bf16.gmra.mxu0 %v1027
      %v1093 = vpop.f32.mrf.mxu0
      %v1094 = vadd.f32 0.0, %v1093
      %v1095 = vpop.f32.mrf.mxu0
      %v1096 = vadd.f32 0.0, %v1095
      %1097 = vmatmul.bf16.gmra.mxu0 %v1030
      %v1098 = vpop.f32.mrf.mxu0
      %v1099 = vadd.f32 0.0, %v1098
      %v1100 = vpop.f32.mrf.mxu0
      %v1101 = vadd.f32 0.0, %v1100
      %1102 = vmatmul.bf16.gmra.mxu0 %v1033
      %v1103 = vpop.f32.mrf.mxu0
      %v1104 = vadd.f32 0.0, %v1103
      %v1105 = vpop.f32.mrf.mxu0
      %v1106 = vadd.f32 0.0, %v1105
      %1107 = vmatmul.bf16.gmra.mxu0 %v1036
      %v1108 = vpop.f32.mrf.mxu0
      %v1109 = vadd.f32 0.0, %v1108
      %v1110 = vpop.f32.mrf.mxu0
      %v1111 = vadd.f32 0.0, %v1110
      %1112 = vmatmul.bf16.gmra.mxu0 %v1039
      %v1113 = vpop.f32.mrf.mxu0
      %v1114 = vadd.f32 0.0, %v1113
      %v1115 = vpop.f32.mrf.mxu0
      %1116 = vdwg.mxu0
      %v1117 = vadd.f32 %v945, %v1054
      %v1118 = vadd.f32 %v946, %v1056
      %v1119 = vadd.f32 %v947, %v1059
      %v1120 = vadd.f32 %v948, %v1061
      %v1121 = vadd.f32 %v949, %v1064
      %v1122 = vadd.f32 %v950, %v1066
      %v1123 = vadd.f32 %v951, %v1069
      %v1124 = vadd.f32 %v952, %v1071
      %v1125 = vadd.f32 %v953, %v1074
      %v1126 = vadd.f32 %v954, %v1076
      %v1127 = vadd.f32 %v955, %v1079
      %v1128 = vadd.f32 %v956, %v1081
      %v1129 = vadd.f32 %v957, %v1084
      %v1130 = vadd.f32 %v958, %v1086
      %v1131 = vadd.f32 %v959, %v1089
      %v1132 = vadd.f32 %v960, %v1091
      %v1133 = vadd.f32 %v961, %v1094
      %v1134 = vadd.f32 %v962, %v1096
      %v1135 = vadd.f32 %v963, %v1099
      %v1136 = vadd.f32 %v964, %v1101
      %v1137 = vadd.f32 %v965, %v1104
      %v1138 = vadd.f32 %v966, %v1106
      %v1139 = vadd.f32 %v967, %v1109
      %v1140 = vadd.f32 %v968, %v1111
      %v1141 = vadd.f32 %v969, %v1114
      %s1142 = scalar_lea.vmem %s2, 8
      %v1143 = vld [vmem:[%s1142] sm:$0x3]
      %vm1144 = vsmask.f32 5376
      %v1145 = vrot.slane %v479, 2
      %v1146 = vrot.slane %v475, 3
      %v1147 = vor.u32 %v1145, %v1146
      %v1148 = vrot.slane %v487, 2
      %v1149 = vrot.slane %v483, 3
      %v1150 = vor.u32 %v1148, %v1149
      %v1151 = vsel %vm1144, %v1147, %v1150
      %v1152 = vrot.slane %v495, 2
      %v1153 = vrot.slane %v491, 3
      %v1154 = vor.u32 %v1152, %v1153
      %v1155 = vsel %vm1144, %v1150, %v1154
      %v1156 = vrot.slane %v503, 2
      %v1157 = vrot.slane %v499, 3
      %v1158 = vor.u32 %v1156, %v1157
      %v1159 = vsel %vm1144, %v1154, %v1158
      %v1160 = vrot.slane %v511, 2
      %v1161 = vrot.slane %v507, 3
      %v1162 = vor.u32 %v1160, %v1161
      %v1163 = vsel %vm1144, %v1158, %v1162
      %v1164 = vrot.slane %v519, 2
      %v1165 = vrot.slane %v515, 3
      %v1166 = vor.u32 %v1164, %v1165
      %v1167 = vsel %vm1144, %v1162, %v1166
      %v1168 = vrot.slane %v527, 2
      %v1169 = vrot.slane %v523, 3
      %v1170 = vor.u32 %v1168, %v1169
      %v1171 = vsel %vm1144, %v1166, %v1170
      %v1172 = vrot.slane %v535, 2
      %v1173 = vrot.slane %v531, 3
      %v1174 = vor.u32 %v1172, %v1173
      %v1175 = vsel %vm1144, %v1170, %v1174
      %v1176 = vrot.slane %v543, 2
      %v1177 = vrot.slane %v539, 3
      %v1178 = vor.u32 %v1176, %v1177
      %v1179 = vsel %vm1144, %v1174, %v1178
      %v1180 = vrot.slane %v551, 2
      %v1181 = vrot.slane %v547, 3
      %v1182 = vor.u32 %v1180, %v1181
      %v1183 = vsel %vm1144, %v1178, %v1182
      %v1184 = vrot.slane %v559, 2
      %v1185 = vrot.slane %v555, 3
      %v1186 = vor.u32 %v1184, %v1185
      %v1187 = vsel %vm1144, %v1182, %v1186
      %v1189 = vshrl.u32 %v970, 16
      %v1191 = vrot.slane %v1189, 2
      %v1192 = vshll.u32 %v970, 16
      %v1194 = vrot.slane %v1192, 3
      %v1195 = vor.u32 %v1191, %v1194
      %v1196 = vsel %vm1144, %v1186, %v1195
      %v1198 = vshrl.u32 %v971, 16
      %v1200 = vrot.slane %v1198, 2
      %v1201 = vshll.u32 %v971, 16
      %v1203 = vrot.slane %v1201, 3
      %v1204 = vor.u32 %v1200, %v1203
      %v1205 = vsel %vm1144, %v1195, %v1204
      %v1207 = vsel %vm570, %v1151, 0
      %v1210 = vsel %vm570, %v1155, 0
      %v1213 = vsel %vm570, %v1159, 0
      %v1216 = vsel %vm570, %v1163, 0
      %v1219 = vsel %vm570, %v1167, 0
      %v1222 = vsel %vm570, %v1171, 0
      %v1225 = vsel %vm570, %v1175, 0
      %v1228 = vsel %vm570, %v1179, 0
      %v1231 = vsel %vm570, %v1183, 0
      %v1234 = vsel %vm570, %v1187, 0
      %v1237 = vsel %vm570, %v1196, 0
      %v1240 = vsel %vm570, %v1205, 0
      %v1243 = vsel %vm570, %v1204, 0
      %v1246 = vsel %vm610, %v1143, 0
      %1248 = vmatpush.bf16.msra.mxu0 0
      %1249 = vmatpush.bf16.msra.mxu0 0
      %1250 = vmatpush.bf16.msra.mxu0 0
      %1251 = vmatpush.bf16.msra.mxu0 0
      %1252 = vmatpush.bf16.msra.mxu0 0
      %1253 = vmatpush.bf16.msra.mxu0 0
      %1254 = vmatpush.bf16.msra.mxu0 0
      %1255 = vmatpush.bf16.msra.mxu0 %v1246
      %1256 = vmatmul.bf16.gmra.mxu0 %v1207
      %v1257 = vpop.f32.mrf.mxu0
      %v1258 = vadd.f32 0.0, %v1257
      %v1259 = vpop.f32.mrf.mxu0
      %v1260 = vadd.f32 0.0, %v1259
      %1261 = vmatmul.bf16.gmra.mxu0 %v1210
      %v1262 = vpop.f32.mrf.mxu0
      %v1263 = vadd.f32 0.0, %v1262
      %v1264 = vpop.f32.mrf.mxu0
      %v1265 = vadd.f32 0.0, %v1264
      %1266 = vmatmul.bf16.gmra.mxu0 %v1213
      %v1267 = vpop.f32.mrf.mxu0
      %v1268 = vadd.f32 0.0, %v1267
      %v1269 = vpop.f32.mrf.mxu0
      %v1270 = vadd.f32 0.0, %v1269
      %1271 = vmatmul.bf16.gmra.mxu0 %v1216
      %v1272 = vpop.f32.mrf.mxu0
      %v1273 = vadd.f32 0.0, %v1272
      %v1274 = vpop.f32.mrf.mxu0
      %v1275 = vadd.f32 0.0, %v1274
      %1276 = vmatmul.bf16.gmra.mxu0 %v1219
      %v1277 = vpop.f32.mrf.mxu0
      %v1278 = vadd.f32 0.0, %v1277
      %v1279 = vpop.f32.mrf.mxu0
      %v1280 = vadd.f32 0.0, %v1279
      %1281 = vmatmul.bf16.gmra.mxu0 %v1222
      %v1282 = vpop.f32.mrf.mxu0
      %v1283 = vadd.f32 0.0, %v1282
      %v1284 = vpop.f32.mrf.mxu0
      %v1285 = vadd.f32 0.0, %v1284
      %1286 = vmatmul.bf16.gmra.mxu0 %v1225
      %v1287 = vpop.f32.mrf.mxu0
      %v1288 = vadd.f32 0.0, %v1287
      %v1289 = vpop.f32.mrf.mxu0
      %v1290 = vadd.f32 0.0, %v1289
      %1291 = vmatmul.bf16.gmra.mxu0 %v1228
      %v1292 = vpop.f32.mrf.mxu0
      %v1293 = vadd.f32 0.0, %v1292
      %v1294 = vpop.f32.mrf.mxu0
      %v1295 = vadd.f32 0.0, %v1294
      %1296 = vmatmul.bf16.gmra.mxu0 %v1231
      %v1297 = vpop.f32.mrf.mxu0
      %v1298 = vadd.f32 0.0, %v1297
      %v1299 = vpop.f32.mrf.mxu0
      %v1300 = vadd.f32 0.0, %v1299
      %1301 = vmatmul.bf16.gmra.mxu0 %v1234
      %v1302 = vpop.f32.mrf.mxu0
      %v1303 = vadd.f32 0.0, %v1302
      %v1304 = vpop.f32.mrf.mxu0
      %v1305 = vadd.f32 0.0, %v1304
      %1306 = vmatmul.bf16.gmra.mxu0 %v1237
      %v1307 = vpop.f32.mrf.mxu0
      %v1308 = vadd.f32 0.0, %v1307
      %v1309 = vpop.f32.mrf.mxu0
      %v1310 = vadd.f32 0.0, %v1309
      %1311 = vmatmul.bf16.gmra.mxu0 %v1240
      %v1312 = vpop.f32.mrf.mxu0
      %v1313 = vadd.f32 0.0, %v1312
      %v1314 = vpop.f32.mrf.mxu0
      %v1315 = vadd.f32 0.0, %v1314
      %1316 = vmatmul.bf16.gmra.mxu0 %v1243
      %v1317 = vpop.f32.mrf.mxu0
      %v1318 = vadd.f32 0.0, %v1317
      %v1319 = vpop.f32.mrf.mxu0
      %1320 = vdwg.mxu0
      %v1321 = vadd.f32 %v1117, %v1258
      %v1322 = vadd.f32 %v1118, %v1260
      %v1323 = vadd.f32 %v1119, %v1263
      %v1324 = vadd.f32 %v1120, %v1265
      %v1325 = vadd.f32 %v1121, %v1268
      %v1326 = vadd.f32 %v1122, %v1270
      %v1327 = vadd.f32 %v1123, %v1273
      %v1328 = vadd.f32 %v1124, %v1275
      %v1329 = vadd.f32 %v1125, %v1278
      %v1330 = vadd.f32 %v1126, %v1280
      %v1331 = vadd.f32 %v1127, %v1283
      %v1332 = vadd.f32 %v1128, %v1285
      %v1333 = vadd.f32 %v1129, %v1288
      %v1334 = vadd.f32 %v1130, %v1290
      %v1335 = vadd.f32 %v1131, %v1293
      %v1336 = vadd.f32 %v1132, %v1295
      %v1337 = vadd.f32 %v1133, %v1298
      %v1338 = vadd.f32 %v1134, %v1300
      %v1339 = vadd.f32 %v1135, %v1303
      %v1340 = vadd.f32 %v1136, %v1305
      %v1341 = vadd.f32 %v1137, %v1308
      %v1342 = vadd.f32 %v1138, %v1310
      %v1343 = vadd.f32 %v1139, %v1313
      %v1344 = vadd.f32 %v1140, %v1315
      %v1345 = vadd.f32 %v1141, %v1318
      %s1346 = scalar_lea.vmem %s2, 10
      %v1347 = vld [vmem:[%s1346] sm:$0x3]
      %vm1348 = vcmask 1044480
      %v1349 = vrot.slane %v451, 3
      %v1350 = vrot.slane %v452, 3
      %v1351 = vsel %vm1348, %v1349, %v1350
      %v1352 = vrot.slane %v453, 3
      %v1353 = vsel %vm1348, %v1350, %v1352
      %v1354 = vrot.slane %v454, 3
      %v1355 = vsel %vm1348, %v1352, %v1354
      %v1356 = vrot.slane %v455, 3
      %v1357 = vsel %vm1348, %v1354, %v1356
      %v1358 = vrot.slane %v456, 3
      %v1359 = vsel %vm1348, %v1356, %v1358
      %v1360 = vrot.slane %v457, 3
      %v1361 = vsel %vm1348, %v1358, %v1360
      %v1362 = vrot.slane %v458, 3
      %v1363 = vsel %vm1348, %v1360, %v1362
      %v1364 = vrot.slane %v459, 3
      %v1365 = vsel %vm1348, %v1362, %v1364
      %v1366 = vrot.slane %v460, 3
      %v1367 = vsel %vm1348, %v1364, %v1366
      %v1368 = vrot.slane %v461, 3
      %v1369 = vsel %vm1348, %v1366, %v1368
      %v1370 = vrot.slane %v970, 3
      %v1371 = vsel %vm1348, %v1368, %v1370
      %v1372 = vrot.slane %v971, 3
      %v1373 = vsel %vm1348, %v1370, %v1372
      %v1375 = vsel %vm570, %v1351, 0
      %v1378 = vsel %vm570, %v1353, 0
      %v1381 = vsel %vm570, %v1355, 0
      %v1384 = vsel %vm570, %v1357, 0
      %v1387 = vsel %vm570, %v1359, 0
      %v1390 = vsel %vm570, %v1361, 0
      %v1393 = vsel %vm570, %v1363, 0
      %v1396 = vsel %vm570, %v1365, 0
      %v1399 = vsel %vm570, %v1367, 0
      %v1402 = vsel %vm570, %v1369, 0
      %v1405 = vsel %vm570, %v1371, 0
      %v1408 = vsel %vm570, %v1373, 0
      %v1411 = vsel %vm570, %v1372, 0
      %v1414 = vsel %vm610, %v1347, 0
      %1416 = vmatpush.bf16.msra.mxu0 0
      %1417 = vmatpush.bf16.msra.mxu0 0
      %1418 = vmatpush.bf16.msra.mxu0 0
      %1419 = vmatpush.bf16.msra.mxu0 0
      %1420 = vmatpush.bf16.msra.mxu0 0
      %1421 = vmatpush.bf16.msra.mxu0 0
      %1422 = vmatpush.bf16.msra.mxu0 0
      %1423 = vmatpush.bf16.msra.mxu0 %v1414
      %1424 = vmatmul.bf16.gmra.mxu0 %v1375
      %v1425 = vpop.f32.mrf.mxu0
      %v1426 = vadd.f32 0.0, %v1425
      %v1427 = vpop.f32.mrf.mxu0
      %v1428 = vadd.f32 0.0, %v1427
      %1429 = vmatmul.bf16.gmra.mxu0 %v1378
      %v1430 = vpop.f32.mrf.mxu0
      %v1431 = vadd.f32 0.0, %v1430
      %v1432 = vpop.f32.mrf.mxu0
      %v1433 = vadd.f32 0.0, %v1432
      %1434 = vmatmul.bf16.gmra.mxu0 %v1381
      %v1435 = vpop.f32.mrf.mxu0
      %v1436 = vadd.f32 0.0, %v1435
      %v1437 = vpop.f32.mrf.mxu0
      %v1438 = vadd.f32 0.0, %v1437
      %1439 = vmatmul.bf16.gmra.mxu0 %v1384
      %v1440 = vpop.f32.mrf.mxu0
      %v1441 = vadd.f32 0.0, %v1440
      %v1442 = vpop.f32.mrf.mxu0
      %v1443 = vadd.f32 0.0, %v1442
      %1444 = vmatmul.bf16.gmra.mxu0 %v1387
      %v1445 = vpop.f32.mrf.mxu0
      %v1446 = vadd.f32 0.0, %v1445
      %v1447 = vpop.f32.mrf.mxu0
      %v1448 = vadd.f32 0.0, %v1447
      %1449 = vmatmul.bf16.gmra.mxu0 %v1390
      %v1450 = vpop.f32.mrf.mxu0
      %v1451 = vadd.f32 0.0, %v1450
      %v1452 = vpop.f32.mrf.mxu0
      %v1453 = vadd.f32 0.0, %v1452
      %1454 = vmatmul.bf16.gmra.mxu0 %v1393
      %v1455 = vpop.f32.mrf.mxu0
      %v1456 = vadd.f32 0.0, %v1455
      %v1457 = vpop.f32.mrf.mxu0
      %v1458 = vadd.f32 0.0, %v1457
      %1459 = vmatmul.bf16.gmra.mxu0 %v1396
      %v1460 = vpop.f32.mrf.mxu0
      %v1461 = vadd.f32 0.0, %v1460
      %v1462 = vpop.f32.mrf.mxu0
      %v1463 = vadd.f32 0.0, %v1462
      %1464 = vmatmul.bf16.gmra.mxu0 %v1399
      %v1465 = vpop.f32.mrf.mxu0
      %v1466 = vadd.f32 0.0, %v1465
      %v1467 = vpop.f32.mrf.mxu0
      %v1468 = vadd.f32 0.0, %v1467
      %1469 = vmatmul.bf16.gmra.mxu0 %v1402
      %v1470 = vpop.f32.mrf.mxu0
      %v1471 = vadd.f32 0.0, %v1470
      %v1472 = vpop.f32.mrf.mxu0
      %v1473 = vadd.f32 0.0, %v1472
      %1474 = vmatmul.bf16.gmra.mxu0 %v1405
      %v1475 = vpop.f32.mrf.mxu0
      %v1476 = vadd.f32 0.0, %v1475
      %v1477 = vpop.f32.mrf.mxu0
      %v1478 = vadd.f32 0.0, %v1477
      %1479 = vmatmul.bf16.gmra.mxu0 %v1408
      %v1480 = vpop.f32.mrf.mxu0
      %v1481 = vadd.f32 0.0, %v1480
      %v1482 = vpop.f32.mrf.mxu0
      %v1483 = vadd.f32 0.0, %v1482
      %1484 = vmatmul.bf16.gmra.mxu0 %v1411
      %v1485 = vpop.f32.mrf.mxu0
      %v1486 = vadd.f32 0.0, %v1485
      %v1487 = vpop.f32.mrf.mxu0
      %1488 = vdwg.mxu0
      %v1489 = vadd.f32 %v1321, %v1426
      %v1490 = vadd.f32 %v1322, %v1428
      %v1491 = vadd.f32 %v1323, %v1431
      %v1492 = vadd.f32 %v1324, %v1433
      %v1493 = vadd.f32 %v1325, %v1436
      %v1494 = vadd.f32 %v1326, %v1438
      %v1495 = vadd.f32 %v1327, %v1441
      %v1496 = vadd.f32 %v1328, %v1443
      %v1497 = vadd.f32 %v1329, %v1446
      %v1498 = vadd.f32 %v1330, %v1448
      %v1499 = vadd.f32 %v1331, %v1451
      %v1500 = vadd.f32 %v1332, %v1453
      %v1501 = vadd.f32 %v1333, %v1456
      %v1502 = vadd.f32 %v1334, %v1458
      %v1503 = vadd.f32 %v1335, %v1461
      %v1504 = vadd.f32 %v1336, %v1463
      %v1505 = vadd.f32 %v1337, %v1466
      %v1506 = vadd.f32 %v1338, %v1468
      %v1507 = vadd.f32 %v1339, %v1471
      %v1508 = vadd.f32 %v1340, %v1473
      %v1509 = vadd.f32 %v1341, %v1476
      %v1510 = vadd.f32 %v1342, %v1478
      %v1511 = vadd.f32 %v1343, %v1481
      %v1512 = vadd.f32 %v1344, %v1483
      %v1513 = vadd.f32 %v1345, %v1486
      %v1514 = vpack.c.bf16 %v426, %v425
      %v1515 = vpack.c.bf16 %v428, %v427
      %v1516 = vpack.c.bf16 %v430, %v429
      %v1517 = vpack.c.bf16 %v432, %v431
      %v1518 = vpack.c.bf16 %v434, %v433
      %v1519 = vpack.c.bf16 %v436, %v435
      %v1520 = vpack.c.bf16 %v438, %v437
      %v1521 = vpack.c.bf16 %v440, %v439
      %v1522 = vpack.c.bf16 %v442, %v441
      %v1523 = vpack.c.bf16 %v444, %v443
      %v1524 = vpack.c.bf16 %v446, %v445
      %v1525 = vpack.c.bf16 %v448, %v447
      %v1526 = vpack.c.bf16 %v449, %v449
      %s1527 = scalar_lea.vmem %s2, 12
      %v1528 = vld [vmem:[%s1527] sm:$0x3]
      %v1530 = vsel %vm570, %v1514, 0
      %v1533 = vsel %vm570, %v1515, 0
      %v1536 = vsel %vm570, %v1516, 0
      %v1539 = vsel %vm570, %v1517, 0
      %v1542 = vsel %vm570, %v1518, 0
      %v1545 = vsel %vm570, %v1519, 0
      %v1548 = vsel %vm570, %v1520, 0
      %v1551 = vsel %vm570, %v1521, 0
      %v1554 = vsel %vm570, %v1522, 0
      %v1557 = vsel %vm570, %v1523, 0
      %v1560 = vsel %vm570, %v1524, 0
      %v1563 = vsel %vm570, %v1525, 0
      %v1566 = vsel %vm570, %v1526, 0
      %v1569 = vsel %vm610, %v1528, 0
      %1571 = vmatpush.bf16.msra.mxu0 0
      %1572 = vmatpush.bf16.msra.mxu0 0
      %1573 = vmatpush.bf16.msra.mxu0 0
      %1574 = vmatpush.bf16.msra.mxu0 0
      %1575 = vmatpush.bf16.msra.mxu0 0
      %1576 = vmatpush.bf16.msra.mxu0 0
      %1577 = vmatpush.bf16.msra.mxu0 0
      %1578 = vmatpush.bf16.msra.mxu0 %v1569
      %1579 = vmatmul.bf16.gmra.mxu0 %v1530
      %v1580 = vpop.f32.mrf.mxu0
      %v1581 = vadd.f32 0.0, %v1580
      %v1582 = vpop.f32.mrf.mxu0
      %v1583 = vadd.f32 0.0, %v1582
      %1584 = vmatmul.bf16.gmra.mxu0 %v1533
      %v1585 = vpop.f32.mrf.mxu0
      %v1586 = vadd.f32 0.0, %v1585
      %v1587 = vpop.f32.mrf.mxu0
      %v1588 = vadd.f32 0.0, %v1587
      %1589 = vmatmul.bf16.gmra.mxu0 %v1536
      %v1590 = vpop.f32.mrf.mxu0
      %v1591 = vadd.f32 0.0, %v1590
      %v1592 = vpop.f32.mrf.mxu0
      %v1593 = vadd.f32 0.0, %v1592
      %1594 = vmatmul.bf16.gmra.mxu0 %v1539
      %v1595 = vpop.f32.mrf.mxu0
      %v1596 = vadd.f32 0.0, %v1595
      %v1597 = vpop.f32.mrf.mxu0
      %v1598 = vadd.f32 0.0, %v1597
      %1599 = vmatmul.bf16.gmra.mxu0 %v1542
      %v1600 = vpop.f32.mrf.mxu0
      %v1601 = vadd.f32 0.0, %v1600
      %v1602 = vpop.f32.mrf.mxu0
      %v1603 = vadd.f32 0.0, %v1602
      %1604 = vmatmul.bf16.gmra.mxu0 %v1545
      %v1605 = vpop.f32.mrf.mxu0
      %v1606 = vadd.f32 0.0, %v1605
      %v1607 = vpop.f32.mrf.mxu0
      %v1608 = vadd.f32 0.0, %v1607
      %1609 = vmatmul.bf16.gmra.mxu0 %v1548
      %v1610 = vpop.f32.mrf.mxu0
      %v1611 = vadd.f32 0.0, %v1610
      %v1612 = vpop.f32.mrf.mxu0
      %v1613 = vadd.f32 0.0, %v1612
      %1614 = vmatmul.bf16.gmra.mxu0 %v1551
      %v1615 = vpop.f32.mrf.mxu0
      %v1616 = vadd.f32 0.0, %v1615
      %v1617 = vpop.f32.mrf.mxu0
      %v1618 = vadd.f32 0.0, %v1617
      %1619 = vmatmul.bf16.gmra.mxu0 %v1554
      %v1620 = vpop.f32.mrf.mxu0
      %v1621 = vadd.f32 0.0, %v1620
      %v1622 = vpop.f32.mrf.mxu0
      %v1623 = vadd.f32 0.0, %v1622
      %1624 = vmatmul.bf16.gmra.mxu0 %v1557
      %v1625 = vpop.f32.mrf.mxu0
      %v1626 = vadd.f32 0.0, %v1625
      %v1627 = vpop.f32.mrf.mxu0
      %v1628 = vadd.f32 0.0, %v1627
      %1629 = vmatmul.bf16.gmra.mxu0 %v1560
      %v1630 = vpop.f32.mrf.mxu0
      %v1631 = vadd.f32 0.0, %v1630
      %v1632 = vpop.f32.mrf.mxu0
      %v1633 = vadd.f32 0.0, %v1632
      %1634 = vmatmul.bf16.gmra.mxu0 %v1563
      %v1635 = vpop.f32.mrf.mxu0
      %v1636 = vadd.f32 0.0, %v1635
      %v1637 = vpop.f32.mrf.mxu0
      %v1638 = vadd.f32 0.0, %v1637
      %1639 = vmatmul.bf16.gmra.mxu0 %v1566
      %v1640 = vpop.f32.mrf.mxu0
      %v1641 = vadd.f32 0.0, %v1640
      %v1642 = vpop.f32.mrf.mxu0
      %1643 = vdwg.mxu0
      %v1644 = vadd.f32 %v1489, %v1581
      %v1645 = vadd.f32 %v1490, %v1583
      %v1646 = vadd.f32 %v1491, %v1586
      %v1647 = vadd.f32 %v1492, %v1588
      %v1648 = vadd.f32 %v1493, %v1591
      %v1649 = vadd.f32 %v1494, %v1593
      %v1650 = vadd.f32 %v1495, %v1596
      %v1651 = vadd.f32 %v1496, %v1598
      %v1652 = vadd.f32 %v1497, %v1601
      %v1653 = vadd.f32 %v1498, %v1603
      %v1654 = vadd.f32 %v1499, %v1606
      %v1655 = vadd.f32 %v1500, %v1608
      %v1656 = vadd.f32 %v1501, %v1611
      %v1657 = vadd.f32 %v1502, %v1613
      %v1658 = vadd.f32 %v1503, %v1616
      %v1659 = vadd.f32 %v1504, %v1618
      %v1660 = vadd.f32 %v1505, %v1621
      %v1661 = vadd.f32 %v1506, %v1623
      %v1662 = vadd.f32 %v1507, %v1626
      %v1663 = vadd.f32 %v1508, %v1628
      %v1664 = vadd.f32 %v1509, %v1631
      %v1665 = vadd.f32 %v1510, %v1633
      %v1666 = vadd.f32 %v1511, %v1636
      %v1667 = vadd.f32 %v1512, %v1638
      %v1668 = vadd.f32 %v1513, %v1641
      %s1669 = scalar_lea.vmem %s2, 14
      %v1670 = vld [vmem:[%s1669] sm:$0x3]
      %v1671 = vshrl.u32 %v1514, 16
      %v1673 = vshll.u32 %v1514, 16
      %v1675 = vrot.slane %v1673, 1
      %v1676 = vor.u32 %v1671, %v1675
      %v1677 = vshll.u32 %v1515, 16
      %v1679 = vrot.slane %v1677, 1
      %v1680 = vsel %vm466, %v1676, %v1679
      %v1681 = vshrl.u32 %v1515, 16
      %v1683 = vor.u32 %v1681, %v1679
      %v1684 = vshll.u32 %v1516, 16
      %v1686 = vrot.slane %v1684, 1
      %v1687 = vsel %vm466, %v1683, %v1686
      %v1688 = vshrl.u32 %v1516, 16
      %v1690 = vor.u32 %v1688, %v1686
      %v1691 = vshll.u32 %v1517, 16
      %v1693 = vrot.slane %v1691, 1
      %v1694 = vsel %vm466, %v1690, %v1693
      %v1695 = vshrl.u32 %v1517, 16
      %v1697 = vor.u32 %v1695, %v1693
      %v1698 = vshll.u32 %v1518, 16
      %v1700 = vrot.slane %v1698, 1
      %v1701 = vsel %vm466, %v1697, %v1700
      %v1702 = vshrl.u32 %v1518, 16
      %v1704 = vor.u32 %v1702, %v1700
      %v1705 = vshll.u32 %v1519, 16
      %v1707 = vrot.slane %v1705, 1
      %v1708 = vsel %vm466, %v1704, %v1707
      %v1709 = vshrl.u32 %v1519, 16
      %v1711 = vor.u32 %v1709, %v1707
      %v1712 = vshll.u32 %v1520, 16
      %v1714 = vrot.slane %v1712, 1
      %v1715 = vsel %vm466, %v1711, %v1714
      %v1716 = vshrl.u32 %v1520, 16
      %v1718 = vor.u32 %v1716, %v1714
      %v1719 = vshll.u32 %v1521, 16
      %v1721 = vrot.slane %v1719, 1
      %v1722 = vsel %vm466, %v1718, %v1721
      %v1723 = vshrl.u32 %v1521, 16
      %v1725 = vor.u32 %v1723, %v1721
      %v1726 = vshll.u32 %v1522, 16
      %v1728 = vrot.slane %v1726, 1
      %v1729 = vsel %vm466, %v1725, %v1728
      %v1730 = vshrl.u32 %v1522, 16
      %v1732 = vor.u32 %v1730, %v1728
      %v1733 = vshll.u32 %v1523, 16
      %v1735 = vrot.slane %v1733, 1
      %v1736 = vsel %vm466, %v1732, %v1735
      %v1737 = vshrl.u32 %v1523, 16
      %v1739 = vor.u32 %v1737, %v1735
      %v1740 = vshll.u32 %v1524, 16
      %v1742 = vrot.slane %v1740, 1
      %v1743 = vsel %vm466, %v1739, %v1742
      %v1744 = vshrl.u32 %v1524, 16
      %v1746 = vor.u32 %v1744, %v1742
      %v1747 = vshll.u32 %v1525, 16
      %v1749 = vrot.slane %v1747, 1
      %v1750 = vsel %vm466, %v1746, %v1749
      %v1751 = vshrl.u32 %v1525, 16
      %v1753 = vor.u32 %v1751, %v1749
      %v1754 = vshll.u32 %v1526, 16
      %v1756 = vrot.slane %v1754, 1
      %v1757 = vsel %vm466, %v1753, %v1756
      %v1758 = vshrl.u32 %v1526, 16
      %v1760 = vor.u32 %v1758, %v1756
      %v1762 = vsel %vm570, %v1680, 0
      %v1765 = vsel %vm570, %v1687, 0
      %v1768 = vsel %vm570, %v1694, 0
      %v1771 = vsel %vm570, %v1701, 0
      %v1774 = vsel %vm570, %v1708, 0
      %v1777 = vsel %vm570, %v1715, 0
      %v1780 = vsel %vm570, %v1722, 0
      %v1783 = vsel %vm570, %v1729, 0
      %v1786 = vsel %vm570, %v1736, 0
      %v1789 = vsel %vm570, %v1743, 0
      %v1792 = vsel %vm570, %v1750, 0
      %v1795 = vsel %vm570, %v1757, 0
      %v1798 = vsel %vm570, %v1760, 0
      %v1801 = vsel %vm610, %v1670, 0
      %1803 = vmatpush.bf16.msra.mxu0 0
      %1804 = vmatpush.bf16.msra.mxu0 0
      %1805 = vmatpush.bf16.msra.mxu0 0
      %1806 = vmatpush.bf16.msra.mxu0 0
      %1807 = vmatpush.bf16.msra.mxu0 0
      %1808 = vmatpush.bf16.msra.mxu0 0
      %1809 = vmatpush.bf16.msra.mxu0 0
      %1810 = vmatpush.bf16.msra.mxu0 %v1801
      %1811 = vmatmul.bf16.gmra.mxu0 %v1762
      %v1812 = vpop.f32.mrf.mxu0
      %v1813 = vadd.f32 0.0, %v1812
      %v1814 = vpop.f32.mrf.mxu0
      %v1815 = vadd.f32 0.0, %v1814
      %1816 = vmatmul.bf16.gmra.mxu0 %v1765
      %v1817 = vpop.f32.mrf.mxu0
      %v1818 = vadd.f32 0.0, %v1817
      %v1819 = vpop.f32.mrf.mxu0
      %v1820 = vadd.f32 0.0, %v1819
      %1821 = vmatmul.bf16.gmra.mxu0 %v1768
      %v1822 = vpop.f32.mrf.mxu0
      %v1823 = vadd.f32 0.0, %v1822
      %v1824 = vpop.f32.mrf.mxu0
      %v1825 = vadd.f32 0.0, %v1824
      %1826 = vmatmul.bf16.gmra.mxu0 %v1771
      %v1827 = vpop.f32.mrf.mxu0
      %v1828 = vadd.f32 0.0, %v1827
      %v1829 = vpop.f32.mrf.mxu0
      %v1830 = vadd.f32 0.0, %v1829
      %1831 = vmatmul.bf16.gmra.mxu0 %v1774
      %v1832 = vpop.f32.mrf.mxu0
      %v1833 = vadd.f32 0.0, %v1832
      %v1834 = vpop.f32.mrf.mxu0
      %v1835 = vadd.f32 0.0, %v1834
      %1836 = vmatmul.bf16.gmra.mxu0 %v1777
      %v1837 = vpop.f32.mrf.mxu0
      %v1838 = vadd.f32 0.0, %v1837
      %v1839 = vpop.f32.mrf.mxu0
      %v1840 = vadd.f32 0.0, %v1839
      %1841 = vmatmul.bf16.gmra.mxu0 %v1780
      %v1842 = vpop.f32.mrf.mxu0
      %v1843 = vadd.f32 0.0, %v1842
      %v1844 = vpop.f32.mrf.mxu0
      %v1845 = vadd.f32 0.0, %v1844
      %1846 = vmatmul.bf16.gmra.mxu0 %v1783
      %v1847 = vpop.f32.mrf.mxu0
      %v1848 = vadd.f32 0.0, %v1847
      %v1849 = vpop.f32.mrf.mxu0
      %v1850 = vadd.f32 0.0, %v1849
      %1851 = vmatmul.bf16.gmra.mxu0 %v1786
      %v1852 = vpop.f32.mrf.mxu0
      %v1853 = vadd.f32 0.0, %v1852
      %v1854 = vpop.f32.mrf.mxu0
      %v1855 = vadd.f32 0.0, %v1854
      %1856 = vmatmul.bf16.gmra.mxu0 %v1789
      %v1857 = vpop.f32.mrf.mxu0
      %v1858 = vadd.f32 0.0, %v1857
      %v1859 = vpop.f32.mrf.mxu0
      %v1860 = vadd.f32 0.0, %v1859
      %1861 = vmatmul.bf16.gmra.mxu0 %v1792
      %v1862 = vpop.f32.mrf.mxu0
      %v1863 = vadd.f32 0.0, %v1862
      %v1864 = vpop.f32.mrf.mxu0
      %v1865 = vadd.f32 0.0, %v1864
      %1866 = vmatmul.bf16.gmra.mxu0 %v1795
      %v1867 = vpop.f32.mrf.mxu0
      %v1868 = vadd.f32 0.0, %v1867
      %v1869 = vpop.f32.mrf.mxu0
      %v1870 = vadd.f32 0.0, %v1869
      %1871 = vmatmul.bf16.gmra.mxu0 %v1798
      %v1872 = vpop.f32.mrf.mxu0
      %v1873 = vadd.f32 0.0, %v1872
      %v1874 = vpop.f32.mrf.mxu0
      %1875 = vdwg.mxu0
      %v1876 = vadd.f32 %v1644, %v1813
      %v1877 = vadd.f32 %v1645, %v1815
      %v1878 = vadd.f32 %v1646, %v1818
      %v1879 = vadd.f32 %v1647, %v1820
      %v1880 = vadd.f32 %v1648, %v1823
      %v1881 = vadd.f32 %v1649, %v1825
      %v1882 = vadd.f32 %v1650, %v1828
      %v1883 = vadd.f32 %v1651, %v1830
      %v1884 = vadd.f32 %v1652, %v1833
      %v1885 = vadd.f32 %v1653, %v1835
      %v1886 = vadd.f32 %v1654, %v1838
      %v1887 = vadd.f32 %v1655, %v1840
      %v1888 = vadd.f32 %v1656, %v1843
      %v1889 = vadd.f32 %v1657, %v1845
      %v1890 = vadd.f32 %v1658, %v1848
      %v1891 = vadd.f32 %v1659, %v1850
      %v1892 = vadd.f32 %v1660, %v1853
      %v1893 = vadd.f32 %v1661, %v1855
      %v1894 = vadd.f32 %v1662, %v1858
      %v1895 = vadd.f32 %v1663, %v1860
      %v1896 = vadd.f32 %v1664, %v1863
      %v1897 = vadd.f32 %v1665, %v1865
      %v1898 = vadd.f32 %v1666, %v1868
      %v1899 = vadd.f32 %v1667, %v1870
      %v1900 = vadd.f32 %v1668, %v1873
      %s1901 = scalar_lea.vmem %s2, 16
      %v1902 = vld [vmem:[%s1901] sm:$0x3]
      %v1916 = vrot.slane %v1514, 1
      %v1917 = vrot.slane %v1515, 1
      %v1918 = vsel %vm804, %v1916, %v1917
      %v1919 = vrot.slane %v1516, 1
      %v1920 = vsel %vm804, %v1917, %v1919
      %v1921 = vrot.slane %v1517, 1
      %v1922 = vsel %vm804, %v1919, %v1921
      %v1923 = vrot.slane %v1518, 1
      %v1924 = vsel %vm804, %v1921, %v1923
      %v1925 = vrot.slane %v1519, 1
      %v1926 = vsel %vm804, %v1923, %v1925
      %v1927 = vrot.slane %v1520, 1
      %v1928 = vsel %vm804, %v1925, %v1927
      %v1929 = vrot.slane %v1521, 1
      %v1930 = vsel %vm804, %v1927, %v1929
      %v1931 = vrot.slane %v1522, 1
      %v1932 = vsel %vm804, %v1929, %v1931
      %v1933 = vrot.slane %v1523, 1
      %v1934 = vsel %vm804, %v1931, %v1933
      %v1935 = vrot.slane %v1524, 1
      %v1936 = vsel %vm804, %v1933, %v1935
      %v1937 = vrot.slane %v1525, 1
      %v1938 = vsel %vm804, %v1935, %v1937
      %v1939 = vrot.slane %v1526, 1
      %v1940 = vsel %vm804, %v1937, %v1939
      %v1942 = vsel %vm570, %v1918, 0
      %v1945 = vsel %vm570, %v1920, 0
      %v1948 = vsel %vm570, %v1922, 0
      %v1951 = vsel %vm570, %v1924, 0
      %v1954 = vsel %vm570, %v1926, 0
      %v1957 = vsel %vm570, %v1928, 0
      %v1960 = vsel %vm570, %v1930, 0
      %v1963 = vsel %vm570, %v1932, 0
      %v1966 = vsel %vm570, %v1934, 0
      %v1969 = vsel %vm570, %v1936, 0
      %v1972 = vsel %vm570, %v1938, 0
      %v1975 = vsel %vm570, %v1940, 0
      %v1978 = vsel %vm570, %v1939, 0
      %v1981 = vsel %vm610, %v1902, 0
      %1983 = vmatpush.bf16.msra.mxu0 0
      %1984 = vmatpush.bf16.msra.mxu0 0
      %1985 = vmatpush.bf16.msra.mxu0 0
      %1986 = vmatpush.bf16.msra.mxu0 0
      %1987 = vmatpush.bf16.msra.mxu0 0
      %1988 = vmatpush.bf16.msra.mxu0 0
      %1989 = vmatpush.bf16.msra.mxu0 0
      %1990 = vmatpush.bf16.msra.mxu0 %v1981
      %1991 = vmatmul.bf16.gmra.mxu0 %v1942
      %v1992 = vpop.f32.mrf.mxu0
      %v1993 = vadd.f32 0.0, %v1992
      %v1994 = vpop.f32.mrf.mxu0
      %v1995 = vadd.f32 0.0, %v1994
      %1996 = vmatmul.bf16.gmra.mxu0 %v1945
      %v1997 = vpop.f32.mrf.mxu0
      %v1998 = vadd.f32 0.0, %v1997
      %v1999 = vpop.f32.mrf.mxu0
      %v2000 = vadd.f32 0.0, %v1999
      %2001 = vmatmul.bf16.gmra.mxu0 %v1948
      %v2002 = vpop.f32.mrf.mxu0
      %v2003 = vadd.f32 0.0, %v2002
      %v2004 = vpop.f32.mrf.mxu0
      %v2005 = vadd.f32 0.0, %v2004
      %2006 = vmatmul.bf16.gmra.mxu0 %v1951
      %v2007 = vpop.f32.mrf.mxu0
      %v2008 = vadd.f32 0.0, %v2007
      %v2009 = vpop.f32.mrf.mxu0
      %v2010 = vadd.f32 0.0, %v2009
      %2011 = vmatmul.bf16.gmra.mxu0 %v1954
      %v2012 = vpop.f32.mrf.mxu0
      %v2013 = vadd.f32 0.0, %v2012
      %v2014 = vpop.f32.mrf.mxu0
      %v2015 = vadd.f32 0.0, %v2014
      %2016 = vmatmul.bf16.gmra.mxu0 %v1957
      %v2017 = vpop.f32.mrf.mxu0
      %v2018 = vadd.f32 0.0, %v2017
      %v2019 = vpop.f32.mrf.mxu0
      %v2020 = vadd.f32 0.0, %v2019
      %2021 = vmatmul.bf16.gmra.mxu0 %v1960
      %v2022 = vpop.f32.mrf.mxu0
      %v2023 = vadd.f32 0.0, %v2022
      %v2024 = vpop.f32.mrf.mxu0
      %v2025 = vadd.f32 0.0, %v2024
      %2026 = vmatmul.bf16.gmra.mxu0 %v1963
      %v2027 = vpop.f32.mrf.mxu0
      %v2028 = vadd.f32 0.0, %v2027
      %v2029 = vpop.f32.mrf.mxu0
      %v2030 = vadd.f32 0.0, %v2029
      %2031 = vmatmul.bf16.gmra.mxu0 %v1966
      %v2032 = vpop.f32.mrf.mxu0
      %v2033 = vadd.f32 0.0, %v2032
      %v2034 = vpop.f32.mrf.mxu0
      %v2035 = vadd.f32 0.0, %v2034
      %2036 = vmatmul.bf16.gmra.mxu0 %v1969
      %v2037 = vpop.f32.mrf.mxu0
      %v2038 = vadd.f32 0.0, %v2037
      %v2039 = vpop.f32.mrf.mxu0
      %v2040 = vadd.f32 0.0, %v2039
      %2041 = vmatmul.bf16.gmra.mxu0 %v1972
      %v2042 = vpop.f32.mrf.mxu0
      %v2043 = vadd.f32 0.0, %v2042
      %v2044 = vpop.f32.mrf.mxu0
      %v2045 = vadd.f32 0.0, %v2044
      %2046 = vmatmul.bf16.gmra.mxu0 %v1975
      %v2047 = vpop.f32.mrf.mxu0
      %v2048 = vadd.f32 0.0, %v2047
      %v2049 = vpop.f32.mrf.mxu0
      %v2050 = vadd.f32 0.0, %v2049
      %2051 = vmatmul.bf16.gmra.mxu0 %v1978
      %v2052 = vpop.f32.mrf.mxu0
      %v2053 = vadd.f32 0.0, %v2052
      %v2054 = vpop.f32.mrf.mxu0
      %2055 = vdwg.mxu0
      %v2056 = vadd.f32 %v1876, %v1993
      %v2057 = vadd.f32 %v1877, %v1995
      %v2058 = vadd.f32 %v1878, %v1998
      %v2059 = vadd.f32 %v1879, %v2000
      %v2060 = vadd.f32 %v1880, %v2003
      %v2061 = vadd.f32 %v1881, %v2005
      %v2062 = vadd.f32 %v1882, %v2008
      %v2063 = vadd.f32 %v1883, %v2010
      %v2064 = vadd.f32 %v1884, %v2013
      %v2065 = vadd.f32 %v1885, %v2015
      %v2066 = vadd.f32 %v1886, %v2018
      %v2067 = vadd.f32 %v1887, %v2020
      %v2068 = vadd.f32 %v1888, %v2023
      %v2069 = vadd.f32 %v1889, %v2025
      %v2070 = vadd.f32 %v1890, %v2028
      %v2071 = vadd.f32 %v1891, %v2030
      %v2072 = vadd.f32 %v1892, %v2033
      %v2073 = vadd.f32 %v1893, %v2035
      %v2074 = vadd.f32 %v1894, %v2038
      %v2075 = vadd.f32 %v1895, %v2040
      %v2076 = vadd.f32 %v1896, %v2043
      %v2077 = vadd.f32 %v1897, %v2045
      %v2078 = vadd.f32 %v1898, %v2048
      %v2079 = vadd.f32 %v1899, %v2050
      %v2080 = vadd.f32 %v1900, %v2053
      %v2081 = vld [vmem:[%s5] sm:$0x1]
      %v2083 = vperm.slane %v2081, 0
      %v2085 = vmul.f32 %v2056, %v2083
      %v2086 = vmul.f32 %v2057, %v2083
      %v2087 = vmul.f32 %v2058, %v2083
      %v2088 = vmul.f32 %v2059, %v2083
      %v2089 = vmul.f32 %v2060, %v2083
      %v2090 = vmul.f32 %v2061, %v2083
      %v2091 = vmul.f32 %v2062, %v2083
      %v2092 = vmul.f32 %v2063, %v2083
      %v2093 = vmul.f32 %v2064, %v2083
      %v2094 = vmul.f32 %v2065, %v2083
      %v2095 = vmul.f32 %v2066, %v2083
      %v2096 = vmul.f32 %v2067, %v2083
      %v2097 = vmul.f32 %v2068, %v2083
      %v2098 = vmul.f32 %v2069, %v2083
      %v2099 = vmul.f32 %v2070, %v2083
      %v2100 = vmul.f32 %v2071, %v2083
      %v2101 = vmul.f32 %v2072, %v2083
      %v2102 = vmul.f32 %v2073, %v2083
      %v2103 = vmul.f32 %v2074, %v2083
      %v2104 = vmul.f32 %v2075, %v2083
      %v2105 = vmul.f32 %v2076, %v2083
      %v2106 = vmul.f32 %v2077, %v2083
      %v2107 = vmul.f32 %v2078, %v2083
      %v2108 = vmul.f32 %v2079, %v2083
      %v2109 = vmul.f32 %v2080, %v2083
      %v2110 = vld [vmem:[%s6] sm:$0x1]
      %v2112 = vperm.slane %v2110, 0
      %v2114 = vadd.f32 %v2085, %v2112
      %v2115 = vadd.f32 %v2086, %v2112
      %v2116 = vadd.f32 %v2087, %v2112
      %v2117 = vadd.f32 %v2088, %v2112
      %v2118 = vadd.f32 %v2089, %v2112
      %v2119 = vadd.f32 %v2090, %v2112
      %v2120 = vadd.f32 %v2091, %v2112
      %v2121 = vadd.f32 %v2092, %v2112
      %v2122 = vadd.f32 %v2093, %v2112
      %v2123 = vadd.f32 %v2094, %v2112
      %v2124 = vadd.f32 %v2095, %v2112
      %v2125 = vadd.f32 %v2096, %v2112
      %v2126 = vadd.f32 %v2097, %v2112
      %v2127 = vadd.f32 %v2098, %v2112
      %v2128 = vadd.f32 %v2099, %v2112
      %v2129 = vadd.f32 %v2100, %v2112
      %v2130 = vadd.f32 %v2101, %v2112
      %v2131 = vadd.f32 %v2102, %v2112
      %v2132 = vadd.f32 %v2103, %v2112
      %v2133 = vadd.f32 %v2104, %v2112
      %v2134 = vadd.f32 %v2105, %v2112
      %v2135 = vadd.f32 %v2106, %v2112
      %v2136 = vadd.f32 %v2107, %v2112
      %v2137 = vadd.f32 %v2108, %v2112
      %v2138 = vadd.f32 %v2109, %v2112
      %v2139 = vmax.f32 %v2114, 0.0
      %v2140 = vmax.f32 %v2115, 0.0
      %v2141 = vmax.f32 %v2116, 0.0
      %v2142 = vmax.f32 %v2117, 0.0
      %v2143 = vmax.f32 %v2118, 0.0
      %v2144 = vmax.f32 %v2119, 0.0
      %v2145 = vmax.f32 %v2120, 0.0
      %v2146 = vmax.f32 %v2121, 0.0
      %v2147 = vmax.f32 %v2122, 0.0
      %v2148 = vmax.f32 %v2123, 0.0
      %v2149 = vmax.f32 %v2124, 0.0
      %v2150 = vmax.f32 %v2125, 0.0
      %v2151 = vmax.f32 %v2126, 0.0
      %v2152 = vmax.f32 %v2127, 0.0
      %v2153 = vmax.f32 %v2128, 0.0
      %v2154 = vmax.f32 %v2129, 0.0
      %v2155 = vmax.f32 %v2130, 0.0
      %v2156 = vmax.f32 %v2131, 0.0
      %v2157 = vmax.f32 %v2132, 0.0
      %v2158 = vmax.f32 %v2133, 0.0
      %v2159 = vmax.f32 %v2134, 0.0
      %v2160 = vmax.f32 %v2135, 0.0
      %v2161 = vmax.f32 %v2136, 0.0
      %v2162 = vmax.f32 %v2137, 0.0
      %v2163 = vmax.f32 %v2138, 0.0
      %v2164 = vld [vmem:[%s379] sm:$0xff]
      %v2165 = vld [vmem:[%s379 + $0x8] sm:$0xff]
      %v2166 = vld [vmem:[%s379 + $0x10] sm:$0xff]
      %v2167 = vld [vmem:[%s379 + $0x18] sm:$0xff]
      %v2168 = vld [vmem:[%s379 + $0x20] sm:$0xff]
      %v2169 = vld [vmem:[%s379 + $0x28] sm:$0xff]
      %v2170 = vld [vmem:[%s379 + $0x30] sm:$0xff]
      %v2171 = vld [vmem:[%s379 + $0x38] sm:$0xff]
      %v2172 = vld [vmem:[%s379 + $0x40] sm:$0xff]
      %v2173 = vld [vmem:[%s379 + $0x48] sm:$0xff]
      %v2174 = vld [vmem:[%s379 + $0x50] sm:$0xff]
      %v2175 = vld [vmem:[%s379 + $0x58] sm:$0xff]
      %v2176 = vld [vmem:[%s379 + $0x60] sm:$0xff]
      %v2177 = vld [vmem:[%s379 + $0x68] sm:$0xff]
      %v2178 = vld [vmem:[%s379 + $0x70] sm:$0xff]
      %v2179 = vld [vmem:[%s379 + $0x78] sm:$0xff]
      %v2180 = vld [vmem:[%s379 + $0x80] sm:$0xff]
      %v2181 = vld [vmem:[%s379 + $0x88] sm:$0xff]
      %v2182 = vld [vmem:[%s379 + $0x90] sm:$0xff]
      %v2183 = vld [vmem:[%s379 + $0x98] sm:$0xff]
      %v2184 = vld [vmem:[%s379 + $0xa0] sm:$0xff]
      %v2185 = vld [vmem:[%s379 + $0xa8] sm:$0xff]
      %v2186 = vld [vmem:[%s379 + $0xb0] sm:$0xff]
      %v2187 = vld [vmem:[%s379 + $0xb8] sm:$0xff]
      %v2188 = vld [vmem:[%s379 + $0xc0] sm:$0x3f]
      %2190 = vset.pattern.permute.xlu0 0
      %2191 = vperm.xlu0 %2190, %v2164
      %v2192 = vpop.permute.xlu0 %2191
      %2195 = vset.pattern.permute.xlu0 0
      %2196 = vperm.xlu0 %2195, %v2165
      %v2197 = vpop.permute.xlu0 %2196
      %2200 = vset.pattern.permute.xlu0 0
      %2201 = vperm.xlu0 %2200, %v2166
      %v2202 = vpop.permute.xlu0 %2201
      %2205 = vset.pattern.permute.xlu0 0
      %2206 = vperm.xlu0 %2205, %v2167
      %v2207 = vpop.permute.xlu0 %2206
      %2210 = vset.pattern.permute.xlu0 0
      %2211 = vperm.xlu0 %2210, %v2168
      %v2212 = vpop.permute.xlu0 %2211
      %2215 = vset.pattern.permute.xlu0 0
      %2216 = vperm.xlu0 %2215, %v2169
      %v2217 = vpop.permute.xlu0 %2216
      %2220 = vset.pattern.permute.xlu0 0
      %2221 = vperm.xlu0 %2220, %v2170
      %v2222 = vpop.permute.xlu0 %2221
      %2225 = vset.pattern.permute.xlu0 0
      %2226 = vperm.xlu0 %2225, %v2171
      %v2227 = vpop.permute.xlu0 %2226
      %2230 = vset.pattern.permute.xlu0 0
      %2231 = vperm.xlu0 %2230, %v2172
      %v2232 = vpop.permute.xlu0 %2231
      %2235 = vset.pattern.permute.xlu0 0
      %2236 = vperm.xlu0 %2235, %v2173
      %v2237 = vpop.permute.xlu0 %2236
      %2240 = vset.pattern.permute.xlu0 0
      %2241 = vperm.xlu0 %2240, %v2174
      %v2242 = vpop.permute.xlu0 %2241
      %2245 = vset.pattern.permute.xlu0 0
      %2246 = vperm.xlu0 %2245, %v2175
      %v2247 = vpop.permute.xlu0 %2246
      %2250 = vset.pattern.permute.xlu0 0
      %2251 = vperm.xlu0 %2250, %v2176
      %v2252 = vpop.permute.xlu0 %2251
      %2255 = vset.pattern.permute.xlu0 0
      %2256 = vperm.xlu0 %2255, %v2177
      %v2257 = vpop.permute.xlu0 %2256
      %2260 = vset.pattern.permute.xlu0 0
      %2261 = vperm.xlu0 %2260, %v2178
      %v2262 = vpop.permute.xlu0 %2261
      %2265 = vset.pattern.permute.xlu0 0
      %2266 = vperm.xlu0 %2265, %v2179
      %v2267 = vpop.permute.xlu0 %2266
      %2270 = vset.pattern.permute.xlu0 0
      %2271 = vperm.xlu0 %2270, %v2180
      %v2272 = vpop.permute.xlu0 %2271
      %2275 = vset.pattern.permute.xlu0 0
      %2276 = vperm.xlu0 %2275, %v2181
      %v2277 = vpop.permute.xlu0 %2276
      %2280 = vset.pattern.permute.xlu0 0
      %2281 = vperm.xlu0 %2280, %v2182
      %v2282 = vpop.permute.xlu0 %2281
      %2285 = vset.pattern.permute.xlu0 0
      %2286 = vperm.xlu0 %2285, %v2183
      %v2287 = vpop.permute.xlu0 %2286
      %2290 = vset.pattern.permute.xlu0 0
      %2291 = vperm.xlu0 %2290, %v2184
      %v2292 = vpop.permute.xlu0 %2291
      %2295 = vset.pattern.permute.xlu0 0
      %2296 = vperm.xlu0 %2295, %v2185
      %v2297 = vpop.permute.xlu0 %2296
      %2300 = vset.pattern.permute.xlu0 0
      %2301 = vperm.xlu0 %2300, %v2186
      %v2302 = vpop.permute.xlu0 %2301
      %2305 = vset.pattern.permute.xlu0 0
      %2306 = vperm.xlu0 %2305, %v2187
      %v2307 = vpop.permute.xlu0 %2306
      %2310 = vset.pattern.permute.xlu0 0
      %2311 = vperm.xlu0 %2310, %v2188
      %v2312 = vpop.permute.xlu0 %2311
      %v2314 = vmul.f32 %v2139, %v2192
      %v2315 = vmul.f32 %v2140, %v2197
      %v2316 = vmul.f32 %v2141, %v2202
      %v2317 = vmul.f32 %v2142, %v2207
      %v2318 = vmul.f32 %v2143, %v2212
      %v2319 = vmul.f32 %v2144, %v2217
      %v2320 = vmul.f32 %v2145, %v2222
      %v2321 = vmul.f32 %v2146, %v2227
      %v2322 = vmul.f32 %v2147, %v2232
      %v2323 = vmul.f32 %v2148, %v2237
      %v2324 = vmul.f32 %v2149, %v2242
      %v2325 = vmul.f32 %v2150, %v2247
      %v2326 = vmul.f32 %v2151, %v2252
      %v2327 = vmul.f32 %v2152, %v2257
      %v2328 = vmul.f32 %v2153, %v2262
      %v2329 = vmul.f32 %v2154, %v2267
      %v2330 = vmul.f32 %v2155, %v2272
      %v2331 = vmul.f32 %v2156, %v2277
      %v2332 = vmul.f32 %v2157, %v2282
      %v2333 = vmul.f32 %v2158, %v2287
      %v2334 = vmul.f32 %v2159, %v2292
      %v2335 = vmul.f32 %v2160, %v2297
      %v2336 = vmul.f32 %v2161, %v2302
      %v2337 = vmul.f32 %v2162, %v2307
      %v2338 = vmul.f32 %v2163, %v2312
      %v2339 = vpack.c.bf16 %v2315, %v2314
      %v2340 = vpack.c.bf16 %v2317, %v2316
      %v2341 = vpack.c.bf16 %v2319, %v2318
      %v2342 = vpack.c.bf16 %v2321, %v2320
      %v2343 = vpack.c.bf16 %v2323, %v2322
      %v2344 = vpack.c.bf16 %v2325, %v2324
      %v2345 = vpack.c.bf16 %v2327, %v2326
      %v2346 = vpack.c.bf16 %v2329, %v2328
      %v2347 = vpack.c.bf16 %v2331, %v2330
      %v2348 = vpack.c.bf16 %v2333, %v2332
      %v2349 = vld [vmem:[%s3] sm:$0xf]
      %v2350 = vld [vmem:[%s3 + $0x4] sm:$0xf]
      %v2351 = vld [vmem:[%s3 + $0x8] sm:$0xf]
      %v2352 = vld [vmem:[%s3 + $0xc] sm:$0xf]
      %v2353 = vld [vmem:[%s3 + $0x10] sm:$0xf]
      %v2354 = vld [vmem:[%s3 + $0x14] sm:$0xf]
      %v2355 = vld [vmem:[%s3 + $0x18] sm:$0xf]
      %v2356 = vld [vmem:[%s3 + $0x1c] sm:$0xf]
      %v2357 = vld [vmem:[%s3 + $0x20] sm:$0xf]
      %v2358 = vld [vmem:[%s3 + $0x24] sm:$0xf]
      %v2359 = vld [vmem:[%s3 + $0x28] sm:$0xf]
      %v2360 = vld [vmem:[%s3 + $0x2c] sm:$0xf]
      %v2361 = vld [vmem:[%s3 + $0x30] sm:$0xf]
      %v2362 = vld [vmem:[%s3 + $0x34] sm:$0xf]
      %v2363 = vld [vmem:[%s3 + $0x38] sm:$0xf]
      %v2364 = vld [vmem:[%s3 + $0x3c] sm:$0xf]
      %s2365 = scalar_lea.vmem %s3, 64
      %v2366 = vld [vmem:[%s2365] sm:$0xf]
      %v2367 = vld [vmem:[%s2365 + $0x4] sm:$0xf]
      %v2368 = vld [vmem:[%s2365 + $0x8] sm:$0xf]
      %v2369 = vld [vmem:[%s2365 + $0xc] sm:$0xf]
      %v2370 = vld [vmem:[%s2365 + $0x10] sm:$0xf]
      %v2371 = vld [vmem:[%s2365 + $0x14] sm:$0xf]
      %v2372 = vld [vmem:[%s2365 + $0x18] sm:$0xf]
      %v2373 = vld [vmem:[%s2365 + $0x1c] sm:$0xf]
      %v2374 = vld [vmem:[%s2365 + $0x20] sm:$0xf]
      %v2375 = vld [vmem:[%s2365 + $0x24] sm:$0xf]
      %v2376 = vld [vmem:[%s2365 + $0x28] sm:$0xf]
      %v2377 = vld [vmem:[%s2365 + $0x2c] sm:$0xf]
      %v2378 = vld [vmem:[%s2365 + $0x30] sm:$0xf]
      %v2379 = vld [vmem:[%s2365 + $0x34] sm:$0xf]
      %v2380 = vld [vmem:[%s2365 + $0x38] sm:$0xf]
      %v2381 = vld [vmem:[%s2365 + $0x3c] sm:$0xf]
      %v2383 = vshrl.u32 %v2339, 16
      %v2385 = vshll.u32 %v2339, 16
      %v2387 = vrot.slane %v2385, 1
      %v2388 = vor.u32 %v2383, %v2387
      %v2390 = vshll.u32 %v2340, 16
      %v2392 = vrot.slane %v2390, 1
      %v2393 = vsel %vm466, %v2388, %v2392
      %v2394 = vshrl.u32 %v2340, 16
      %v2396 = vor.u32 %v2394, %v2392
      %v2398 = vshll.u32 %v2341, 16
      %v2400 = vrot.slane %v2398, 1
      %v2401 = vsel %vm466, %v2396, %v2400
      %v2402 = vshrl.u32 %v2341, 16
      %v2404 = vor.u32 %v2402, %v2400
      %v2406 = vshll.u32 %v2342, 16
      %v2408 = vrot.slane %v2406, 1
      %v2409 = vsel %vm466, %v2404, %v2408
      %v2410 = vshrl.u32 %v2342, 16
      %v2412 = vor.u32 %v2410, %v2408
      %v2414 = vshll.u32 %v2343, 16
      %v2416 = vrot.slane %v2414, 1
      %v2417 = vsel %vm466, %v2412, %v2416
      %v2418 = vshrl.u32 %v2343, 16
      %v2420 = vor.u32 %v2418, %v2416
      %v2422 = vshll.u32 %v2344, 16
      %v2424 = vrot.slane %v2422, 1
      %v2425 = vsel %vm466, %v2420, %v2424
      %v2426 = vshrl.u32 %v2344, 16
      %v2428 = vor.u32 %v2426, %v2424
      %v2430 = vshll.u32 %v2345, 16
      %v2432 = vrot.slane %v2430, 1
      %v2433 = vsel %vm466, %v2428, %v2432
      %v2434 = vshrl.u32 %v2345, 16
      %v2436 = vor.u32 %v2434, %v2432
      %v2438 = vshll.u32 %v2346, 16
      %v2440 = vrot.slane %v2438, 1
      %v2441 = vsel %vm466, %v2436, %v2440
      %v2442 = vshrl.u32 %v2346, 16
      %v2444 = vor.u32 %v2442, %v2440
      %v2446 = vshll.u32 %v2347, 16
      %v2448 = vrot.slane %v2446, 1
      %v2449 = vsel %vm466, %v2444, %v2448
      %v2450 = vshrl.u32 %v2347, 16
      %v2452 = vor.u32 %v2450, %v2448
      %v2454 = vshll.u32 %v2348, 16
      %v2456 = vrot.slane %v2454, 1
      %v2457 = vsel %vm466, %v2452, %v2456
      %v2458 = vshrl.u32 %v2348, 16
      %v2460 = vor.u32 %v2458, %v2456
      %v2487 = vunpack.c.l.b16 %v2366
      %v2488 = vunpack.c.l.b16 %v2367
      %v2489 = vunpack.c.l.b16 %v2368
      %v2490 = vunpack.c.l.b16 %v2369
      %v2491 = vunpack.c.l.b16 %v2370
      %v2492 = vunpack.c.l.b16 %v2371
      %v2493 = vunpack.c.l.b16 %v2372
      %v2494 = vunpack.c.l.b16 %v2373
      %v2495 = vunpack.c.l.b16 %v2374
      %v2496 = vunpack.c.l.b16 %v2375
      %v2497 = vunpack.c.l.b16 %v2376
      %v2498 = vunpack.c.l.b16 %v2377
      %v2499 = vunpack.c.l.b16 %v2378
      %v2500 = vunpack.c.l.b16 %v2379
      %v2501 = vunpack.c.l.b16 %v2380
      %v2502 = vunpack.c.l.b16 %v2381
      %v2503 = vpack.c.b16 %v2488, %v2487
      %v2504 = vpack.c.b16 %v2490, %v2489
      %v2505 = vpack.c.b16 %v2492, %v2491
      %v2506 = vpack.c.b16 %v2494, %v2493
      %v2507 = vpack.c.b16 %v2496, %v2495
      %v2508 = vpack.c.b16 %v2498, %v2497
      %v2509 = vpack.c.b16 %v2500, %v2499
      %v2510 = vpack.c.b16 %v2502, %v2501
      %2519 = vmatpush.bf16.msra.mxu0 %v2510
      %2520 = vmatpush.bf16.msra.mxu0 %v2509
      %2521 = vmatpush.bf16.msra.mxu0 %v2508
      %2522 = vmatpush.bf16.msra.mxu0 %v2507
      %2523 = vmatpush.bf16.msra.mxu0 %v2506
      %2524 = vmatpush.bf16.msra.mxu0 %v2505
      %2525 = vmatpush.bf16.msra.mxu0 %v2504
      %2526 = vmatpush.bf16.msra.mxu0 %v2503
      %2527 = vmatmul.bf16.gmra.mxu0 %v2393
      %v2528 = vpop.f32.mrf.mxu0
      %v2529 = vadd.f32 0.0, %v2528
      %v2530 = vpop.f32.mrf.mxu0
      %v2531 = vadd.f32 0.0, %v2530
      %2532 = vmatmul.bf16.gmra.mxu0 %v2401
      %v2533 = vpop.f32.mrf.mxu0
      %v2534 = vadd.f32 0.0, %v2533
      %v2535 = vpop.f32.mrf.mxu0
      %v2536 = vadd.f32 0.0, %v2535
      %2537 = vmatmul.bf16.gmra.mxu0 %v2409
      %v2538 = vpop.f32.mrf.mxu0
      %v2539 = vadd.f32 0.0, %v2538
      %v2540 = vpop.f32.mrf.mxu0
      %v2541 = vadd.f32 0.0, %v2540
      %2542 = vmatmul.bf16.gmra.mxu0 %v2417
      %v2543 = vpop.f32.mrf.mxu0
      %v2544 = vadd.f32 0.0, %v2543
      %v2545 = vpop.f32.mrf.mxu0
      %v2546 = vadd.f32 0.0, %v2545
      %2547 = vmatmul.bf16.gmra.mxu0 %v2425
      %v2548 = vpop.f32.mrf.mxu0
      %v2549 = vadd.f32 0.0, %v2548
      %v2550 = vpop.f32.mrf.mxu0
      %v2551 = vadd.f32 0.0, %v2550
      %2552 = vmatmul.bf16.gmra.mxu0 %v2433
      %v2553 = vpop.f32.mrf.mxu0
      %v2554 = vadd.f32 0.0, %v2553
      %v2555 = vpop.f32.mrf.mxu0
      %v2556 = vadd.f32 0.0, %v2555
      %2557 = vmatmul.bf16.gmra.mxu0 %v2441
      %v2558 = vpop.f32.mrf.mxu0
      %v2559 = vadd.f32 0.0, %v2558
      %v2560 = vpop.f32.mrf.mxu0
      %v2561 = vadd.f32 0.0, %v2560
      %2562 = vmatmul.bf16.gmra.mxu0 %v2449
      %v2563 = vpop.f32.mrf.mxu0
      %v2564 = vadd.f32 0.0, %v2563
      %v2565 = vpop.f32.mrf.mxu0
      %v2566 = vadd.f32 0.0, %v2565
      %2567 = vmatmul.bf16.gmra.mxu0 %v2457
      %v2568 = vpop.f32.mrf.mxu0
      %v2569 = vadd.f32 0.0, %v2568
      %v2570 = vpop.f32.mrf.mxu0
      %v2571 = vadd.f32 0.0, %v2570
      %2572 = vmatmul.bf16.gmra.mxu0 %v2460
      %v2573 = vpop.f32.mrf.mxu0
      %v2574 = vadd.f32 0.0, %v2573
      %v2575 = vpop.f32.mrf.mxu0
      %v2576 = vadd.f32 0.0, %v2575
      %2577 = vdwg.mxu0
      %v2594 = vunpack.c.l.b16 %v2349
      %v2595 = vunpack.c.l.b16 %v2350
      %v2596 = vunpack.c.l.b16 %v2351
      %v2597 = vunpack.c.l.b16 %v2352
      %v2598 = vunpack.c.l.b16 %v2353
      %v2599 = vunpack.c.l.b16 %v2354
      %v2600 = vunpack.c.l.b16 %v2355
      %v2601 = vunpack.c.l.b16 %v2356
      %v2602 = vunpack.c.l.b16 %v2357
      %v2603 = vunpack.c.l.b16 %v2358
      %v2604 = vunpack.c.l.b16 %v2359
      %v2605 = vunpack.c.l.b16 %v2360
      %v2606 = vunpack.c.l.b16 %v2361
      %v2607 = vunpack.c.l.b16 %v2362
      %v2608 = vunpack.c.l.b16 %v2363
      %v2609 = vunpack.c.l.b16 %v2364
      %v2610 = vpack.c.b16 %v2595, %v2594
      %v2611 = vpack.c.b16 %v2597, %v2596
      %v2612 = vpack.c.b16 %v2599, %v2598
      %v2613 = vpack.c.b16 %v2601, %v2600
      %v2614 = vpack.c.b16 %v2603, %v2602
      %v2615 = vpack.c.b16 %v2605, %v2604
      %v2616 = vpack.c.b16 %v2607, %v2606
      %v2617 = vpack.c.b16 %v2609, %v2608
      %2626 = vmatpush.bf16.msra.mxu0 %v2617
      %2627 = vmatpush.bf16.msra.mxu0 %v2616
      %2628 = vmatpush.bf16.msra.mxu0 %v2615
      %2629 = vmatpush.bf16.msra.mxu0 %v2614
      %2630 = vmatpush.bf16.msra.mxu0 %v2613
      %2631 = vmatpush.bf16.msra.mxu0 %v2612
      %2632 = vmatpush.bf16.msra.mxu0 %v2611
      %2633 = vmatpush.bf16.msra.mxu0 %v2610
      %2634 = vmatmul.bf16.gmra.mxu0 %v2339
      %v2635 = vpop.f32.mrf.mxu0
      %v2636 = vadd.f32 %v2529, %v2635
      %v2637 = vpop.f32.mrf.mxu0
      %v2638 = vadd.f32 %v2531, %v2637
      %2639 = vmatmul.bf16.gmra.mxu0 %v2340
      %v2640 = vpop.f32.mrf.mxu0
      %v2641 = vadd.f32 %v2534, %v2640
      %v2642 = vpop.f32.mrf.mxu0
      %v2643 = vadd.f32 %v2536, %v2642
      %2644 = vmatmul.bf16.gmra.mxu0 %v2341
      %v2645 = vpop.f32.mrf.mxu0
      %v2646 = vadd.f32 %v2539, %v2645
      %v2647 = vpop.f32.mrf.mxu0
      %v2648 = vadd.f32 %v2541, %v2647
      %2649 = vmatmul.bf16.gmra.mxu0 %v2342
      %v2650 = vpop.f32.mrf.mxu0
      %v2651 = vadd.f32 %v2544, %v2650
      %v2652 = vpop.f32.mrf.mxu0
      %v2653 = vadd.f32 %v2546, %v2652
      %2654 = vmatmul.bf16.gmra.mxu0 %v2343
      %v2655 = vpop.f32.mrf.mxu0
      %v2656 = vadd.f32 %v2549, %v2655
      %v2657 = vpop.f32.mrf.mxu0
      %v2658 = vadd.f32 %v2551, %v2657
      %2659 = vmatmul.bf16.gmra.mxu0 %v2344
      %v2660 = vpop.f32.mrf.mxu0
      %v2661 = vadd.f32 %v2554, %v2660
      %v2662 = vpop.f32.mrf.mxu0
      %v2663 = vadd.f32 %v2556, %v2662
      %2664 = vmatmul.bf16.gmra.mxu0 %v2345
      %v2665 = vpop.f32.mrf.mxu0
      %v2666 = vadd.f32 %v2559, %v2665
      %v2667 = vpop.f32.mrf.mxu0
      %v2668 = vadd.f32 %v2561, %v2667
      %2669 = vmatmul.bf16.gmra.mxu0 %v2346
      %v2670 = vpop.f32.mrf.mxu0
      %v2671 = vadd.f32 %v2564, %v2670
      %v2672 = vpop.f32.mrf.mxu0
      %v2673 = vadd.f32 %v2566, %v2672
      %2674 = vmatmul.bf16.gmra.mxu0 %v2347
      %v2675 = vpop.f32.mrf.mxu0
      %v2676 = vadd.f32 %v2569, %v2675
      %v2677 = vpop.f32.mrf.mxu0
      %v2678 = vadd.f32 %v2571, %v2677
      %2679 = vmatmul.bf16.gmra.mxu0 %v2348
      %v2680 = vpop.f32.mrf.mxu0
      %v2681 = vadd.f32 %v2574, %v2680
      %v2682 = vpop.f32.mrf.mxu0
      %v2683 = vadd.f32 %v2576, %v2682
      %2684 = vdwg.mxu0
      %s2685 = scalar_lea.vmem %s3, 128
      %v2686 = vld [vmem:[%s2685] sm:$0xf]
      %v2687 = vld [vmem:[%s2685 + $0x4] sm:$0xf]
      %v2688 = vld [vmem:[%s2685 + $0x8] sm:$0xf]
      %v2689 = vld [vmem:[%s2685 + $0xc] sm:$0xf]
      %v2690 = vld [vmem:[%s2685 + $0x10] sm:$0xf]
      %v2691 = vld [vmem:[%s2685 + $0x14] sm:$0xf]
      %v2692 = vld [vmem:[%s2685 + $0x18] sm:$0xf]
      %v2693 = vld [vmem:[%s2685 + $0x1c] sm:$0xf]
      %v2694 = vld [vmem:[%s2685 + $0x20] sm:$0xf]
      %v2695 = vld [vmem:[%s2685 + $0x24] sm:$0xf]
      %v2696 = vld [vmem:[%s2685 + $0x28] sm:$0xf]
      %v2697 = vld [vmem:[%s2685 + $0x2c] sm:$0xf]
      %v2698 = vld [vmem:[%s2685 + $0x30] sm:$0xf]
      %v2699 = vld [vmem:[%s2685 + $0x34] sm:$0xf]
      %v2700 = vld [vmem:[%s2685 + $0x38] sm:$0xf]
      %v2701 = vld [vmem:[%s2685 + $0x3c] sm:$0xf]
      %v2712 = vrot.slane %v2339, 1
      %v2713 = vrot.slane %v2340, 1
      %v2714 = vsel %vm804, %v2712, %v2713
      %v2715 = vrot.slane %v2341, 1
      %v2716 = vsel %vm804, %v2713, %v2715
      %v2717 = vrot.slane %v2342, 1
      %v2718 = vsel %vm804, %v2715, %v2717
      %v2719 = vrot.slane %v2343, 1
      %v2720 = vsel %vm804, %v2717, %v2719
      %v2721 = vrot.slane %v2344, 1
      %v2722 = vsel %vm804, %v2719, %v2721
      %v2723 = vrot.slane %v2345, 1
      %v2724 = vsel %vm804, %v2721, %v2723
      %v2725 = vrot.slane %v2346, 1
      %v2726 = vsel %vm804, %v2723, %v2725
      %v2727 = vrot.slane %v2347, 1
      %v2728 = vsel %vm804, %v2725, %v2727
      %v2729 = vrot.slane %v2348, 1
      %v2730 = vsel %vm804, %v2727, %v2729
      %v2757 = vunpack.c.l.b16 %v2686
      %v2758 = vunpack.c.l.b16 %v2687
      %v2759 = vunpack.c.l.b16 %v2688
      %v2760 = vunpack.c.l.b16 %v2689
      %v2761 = vunpack.c.l.b16 %v2690
      %v2762 = vunpack.c.l.b16 %v2691
      %v2763 = vunpack.c.l.b16 %v2692
      %v2764 = vunpack.c.l.b16 %v2693
      %v2765 = vunpack.c.l.b16 %v2694
      %v2766 = vunpack.c.l.b16 %v2695
      %v2767 = vunpack.c.l.b16 %v2696
      %v2768 = vunpack.c.l.b16 %v2697
      %v2769 = vunpack.c.l.b16 %v2698
      %v2770 = vunpack.c.l.b16 %v2699
      %v2771 = vunpack.c.l.b16 %v2700
      %v2772 = vunpack.c.l.b16 %v2701
      %v2773 = vpack.c.b16 %v2758, %v2757
      %v2774 = vpack.c.b16 %v2760, %v2759
      %v2775 = vpack.c.b16 %v2762, %v2761
      %v2776 = vpack.c.b16 %v2764, %v2763
      %v2777 = vpack.c.b16 %v2766, %v2765
      %v2778 = vpack.c.b16 %v2768, %v2767
      %v2779 = vpack.c.b16 %v2770, %v2769
      %v2780 = vpack.c.b16 %v2772, %v2771
      %2789 = vmatpush.bf16.msra.mxu0 %v2780
      %2790 = vmatpush.bf16.msra.mxu0 %v2779
      %2791 = vmatpush.bf16.msra.mxu0 %v2778
      %2792 = vmatpush.bf16.msra.mxu0 %v2777
      %2793 = vmatpush.bf16.msra.mxu0 %v2776
      %2794 = vmatpush.bf16.msra.mxu0 %v2775
      %2795 = vmatpush.bf16.msra.mxu0 %v2774
      %2796 = vmatpush.bf16.msra.mxu0 %v2773
      %2797 = vmatmul.bf16.gmra.mxu0 %v2714
      %v2798 = vpop.f32.mrf.mxu0
      %v2799 = vadd.f32 0.0, %v2798
      %v2800 = vpop.f32.mrf.mxu0
      %v2801 = vadd.f32 0.0, %v2800
      %2802 = vmatmul.bf16.gmra.mxu0 %v2716
      %v2803 = vpop.f32.mrf.mxu0
      %v2804 = vadd.f32 0.0, %v2803
      %v2805 = vpop.f32.mrf.mxu0
      %v2806 = vadd.f32 0.0, %v2805
      %2807 = vmatmul.bf16.gmra.mxu0 %v2718
      %v2808 = vpop.f32.mrf.mxu0
      %v2809 = vadd.f32 0.0, %v2808
      %v2810 = vpop.f32.mrf.mxu0
      %v2811 = vadd.f32 0.0, %v2810
      %2812 = vmatmul.bf16.gmra.mxu0 %v2720
      %v2813 = vpop.f32.mrf.mxu0
      %v2814 = vadd.f32 0.0, %v2813
      %v2815 = vpop.f32.mrf.mxu0
      %v2816 = vadd.f32 0.0, %v2815
      %2817 = vmatmul.bf16.gmra.mxu0 %v2722
      %v2818 = vpop.f32.mrf.mxu0
      %v2819 = vadd.f32 0.0, %v2818
      %v2820 = vpop.f32.mrf.mxu0
      %v2821 = vadd.f32 0.0, %v2820
      %2822 = vmatmul.bf16.gmra.mxu0 %v2724
      %v2823 = vpop.f32.mrf.mxu0
      %v2824 = vadd.f32 0.0, %v2823
      %v2825 = vpop.f32.mrf.mxu0
      %v2826 = vadd.f32 0.0, %v2825
      %2827 = vmatmul.bf16.gmra.mxu0 %v2726
      %v2828 = vpop.f32.mrf.mxu0
      %v2829 = vadd.f32 0.0, %v2828
      %v2830 = vpop.f32.mrf.mxu0
      %v2831 = vadd.f32 0.0, %v2830
      %2832 = vmatmul.bf16.gmra.mxu0 %v2728
      %v2833 = vpop.f32.mrf.mxu0
      %v2834 = vadd.f32 0.0, %v2833
      %v2835 = vpop.f32.mrf.mxu0
      %v2836 = vadd.f32 0.0, %v2835
      %2837 = vmatmul.bf16.gmra.mxu0 %v2730
      %v2838 = vpop.f32.mrf.mxu0
      %v2839 = vadd.f32 0.0, %v2838
      %v2840 = vpop.f32.mrf.mxu0
      %v2841 = vadd.f32 0.0, %v2840
      %2842 = vmatmul.bf16.gmra.mxu0 %v2729
      %v2843 = vpop.f32.mrf.mxu0
      %v2844 = vadd.f32 0.0, %v2843
      %v2845 = vpop.f32.mrf.mxu0
      %v2846 = vadd.f32 0.0, %v2845
      %2847 = vdwg.mxu0
      %v2848 = vadd.f32 %v2636, %v2799
      %v2849 = vadd.f32 %v2638, %v2801
      %v2850 = vadd.f32 %v2641, %v2804
      %v2851 = vadd.f32 %v2643, %v2806
      %v2852 = vadd.f32 %v2646, %v2809
      %v2853 = vadd.f32 %v2648, %v2811
      %v2854 = vadd.f32 %v2651, %v2814
      %v2855 = vadd.f32 %v2653, %v2816
      %v2856 = vadd.f32 %v2656, %v2819
      %v2857 = vadd.f32 %v2658, %v2821
      %v2858 = vadd.f32 %v2661, %v2824
      %v2859 = vadd.f32 %v2663, %v2826
      %v2860 = vadd.f32 %v2666, %v2829
      %v2861 = vadd.f32 %v2668, %v2831
      %v2862 = vadd.f32 %v2671, %v2834
      %v2863 = vadd.f32 %v2673, %v2836
      %v2864 = vadd.f32 %v2676, %v2839
      %v2865 = vadd.f32 %v2678, %v2841
      %v2866 = vadd.f32 %v2681, %v2844
      %v2867 = vadd.f32 %v2683, %v2846
      %v2868 = vpack.c.bf16 %v2335, %v2334
      %s2869 = scalar_lea.vmem %s3, 192
      %v2870 = vld [vmem:[%s2869] sm:$0xf]
      %v2871 = vld [vmem:[%s2869 + $0x4] sm:$0xf]
      %v2872 = vld [vmem:[%s2869 + $0x8] sm:$0xf]
      %v2873 = vld [vmem:[%s2869 + $0xc] sm:$0xf]
      %v2874 = vld [vmem:[%s2869 + $0x10] sm:$0xf]
      %v2875 = vld [vmem:[%s2869 + $0x14] sm:$0xf]
      %v2876 = vld [vmem:[%s2869 + $0x18] sm:$0xf]
      %v2877 = vld [vmem:[%s2869 + $0x1c] sm:$0xf]
      %v2878 = vld [vmem:[%s2869 + $0x20] sm:$0xf]
      %v2879 = vld [vmem:[%s2869 + $0x24] sm:$0xf]
      %v2880 = vld [vmem:[%s2869 + $0x28] sm:$0xf]
      %v2881 = vld [vmem:[%s2869 + $0x2c] sm:$0xf]
      %v2882 = vld [vmem:[%s2869 + $0x30] sm:$0xf]
      %v2883 = vld [vmem:[%s2869 + $0x34] sm:$0xf]
      %v2884 = vld [vmem:[%s2869 + $0x38] sm:$0xf]
      %v2885 = vld [vmem:[%s2869 + $0x3c] sm:$0xf]
      %v2887 = vrot.slane %v2340, 2
      %v2888 = vrot.slane %v2341, 2
      %v2889 = vsel %vm976, %v2887, %v2888
      %v2890 = vrot.slane %v2342, 2
      %v2891 = vsel %vm976, %v2888, %v2890
      %v2892 = vrot.slane %v2343, 2
      %v2893 = vsel %vm976, %v2890, %v2892
      %v2894 = vrot.slane %v2344, 2
      %v2895 = vsel %vm976, %v2892, %v2894
      %v2896 = vrot.slane %v2345, 2
      %v2897 = vsel %vm976, %v2894, %v2896
      %v2898 = vrot.slane %v2346, 2
      %v2899 = vsel %vm976, %v2896, %v2898
      %v2900 = vrot.slane %v2347, 2
      %v2901 = vsel %vm976, %v2898, %v2900
      %v2902 = vrot.slane %v2348, 2
      %v2903 = vsel %vm976, %v2900, %v2902
      %v2904 = vrot.slane %v2868, 2
      %v2905 = vsel %vm976, %v2902, %v2904
      %v2932 = vunpack.c.l.b16 %v2870
      %v2933 = vunpack.c.l.b16 %v2871
      %v2934 = vunpack.c.l.b16 %v2872
      %v2935 = vunpack.c.l.b16 %v2873
      %v2936 = vunpack.c.l.b16 %v2874
      %v2937 = vunpack.c.l.b16 %v2875
      %v2938 = vunpack.c.l.b16 %v2876
      %v2939 = vunpack.c.l.b16 %v2877
      %v2940 = vunpack.c.l.b16 %v2878
      %v2941 = vunpack.c.l.b16 %v2879
      %v2942 = vunpack.c.l.b16 %v2880
      %v2943 = vunpack.c.l.b16 %v2881
      %v2944 = vunpack.c.l.b16 %v2882
      %v2945 = vunpack.c.l.b16 %v2883
      %v2946 = vunpack.c.l.b16 %v2884
      %v2947 = vunpack.c.l.b16 %v2885
      %v2948 = vpack.c.b16 %v2933, %v2932
      %v2949 = vpack.c.b16 %v2935, %v2934
      %v2950 = vpack.c.b16 %v2937, %v2936
      %v2951 = vpack.c.b16 %v2939, %v2938
      %v2952 = vpack.c.b16 %v2941, %v2940
      %v2953 = vpack.c.b16 %v2943, %v2942
      %v2954 = vpack.c.b16 %v2945, %v2944
      %v2955 = vpack.c.b16 %v2947, %v2946
      %2964 = vmatpush.bf16.msra.mxu0 %v2955
      %2965 = vmatpush.bf16.msra.mxu0 %v2954
      %2966 = vmatpush.bf16.msra.mxu0 %v2953
      %2967 = vmatpush.bf16.msra.mxu0 %v2952
      %2968 = vmatpush.bf16.msra.mxu0 %v2951
      %2969 = vmatpush.bf16.msra.mxu0 %v2950
      %2970 = vmatpush.bf16.msra.mxu0 %v2949
      %2971 = vmatpush.bf16.msra.mxu0 %v2948
      %2972 = vmatmul.bf16.gmra.mxu0 %v2889
      %v2973 = vpop.f32.mrf.mxu0
      %v2974 = vadd.f32 0.0, %v2973
      %v2975 = vpop.f32.mrf.mxu0
      %v2976 = vadd.f32 0.0, %v2975
      %2977 = vmatmul.bf16.gmra.mxu0 %v2891
      %v2978 = vpop.f32.mrf.mxu0
      %v2979 = vadd.f32 0.0, %v2978
      %v2980 = vpop.f32.mrf.mxu0
      %v2981 = vadd.f32 0.0, %v2980
      %2982 = vmatmul.bf16.gmra.mxu0 %v2893
      %v2983 = vpop.f32.mrf.mxu0
      %v2984 = vadd.f32 0.0, %v2983
      %v2985 = vpop.f32.mrf.mxu0
      %v2986 = vadd.f32 0.0, %v2985
      %2987 = vmatmul.bf16.gmra.mxu0 %v2895
      %v2988 = vpop.f32.mrf.mxu0
      %v2989 = vadd.f32 0.0, %v2988
      %v2990 = vpop.f32.mrf.mxu0
      %v2991 = vadd.f32 0.0, %v2990
      %2992 = vmatmul.bf16.gmra.mxu0 %v2897
      %v2993 = vpop.f32.mrf.mxu0
      %v2994 = vadd.f32 0.0, %v2993
      %v2995 = vpop.f32.mrf.mxu0
      %v2996 = vadd.f32 0.0, %v2995
      %2997 = vmatmul.bf16.gmra.mxu0 %v2899
      %v2998 = vpop.f32.mrf.mxu0
      %v2999 = vadd.f32 0.0, %v2998
      %v3000 = vpop.f32.mrf.mxu0
      %v3001 = vadd.f32 0.0, %v3000
      %3002 = vmatmul.bf16.gmra.mxu0 %v2901
      %v3003 = vpop.f32.mrf.mxu0
      %v3004 = vadd.f32 0.0, %v3003
      %v3005 = vpop.f32.mrf.mxu0
      %v3006 = vadd.f32 0.0, %v3005
      %3007 = vmatmul.bf16.gmra.mxu0 %v2903
      %v3008 = vpop.f32.mrf.mxu0
      %v3009 = vadd.f32 0.0, %v3008
      %v3010 = vpop.f32.mrf.mxu0
      %v3011 = vadd.f32 0.0, %v3010
      %3012 = vmatmul.bf16.gmra.mxu0 %v2905
      %v3013 = vpop.f32.mrf.mxu0
      %v3014 = vadd.f32 0.0, %v3013
      %v3015 = vpop.f32.mrf.mxu0
      %v3016 = vadd.f32 0.0, %v3015
      %3017 = vmatmul.bf16.gmra.mxu0 %v2904
      %v3018 = vpop.f32.mrf.mxu0
      %v3019 = vadd.f32 0.0, %v3018
      %v3020 = vpop.f32.mrf.mxu0
      %v3021 = vadd.f32 0.0, %v3020
      %3022 = vdwg.mxu0
      %v3023 = vadd.f32 %v2848, %v2974
      %v3024 = vadd.f32 %v2849, %v2976
      %v3025 = vadd.f32 %v2850, %v2979
      %v3026 = vadd.f32 %v2851, %v2981
      %v3027 = vadd.f32 %v2852, %v2984
      %v3028 = vadd.f32 %v2853, %v2986
      %v3029 = vadd.f32 %v2854, %v2989
      %v3030 = vadd.f32 %v2855, %v2991
      %v3031 = vadd.f32 %v2856, %v2994
      %v3032 = vadd.f32 %v2857, %v2996
      %v3033 = vadd.f32 %v2858, %v2999
      %v3034 = vadd.f32 %v2859, %v3001
      %v3035 = vadd.f32 %v2860, %v3004
      %v3036 = vadd.f32 %v2861, %v3006
      %v3037 = vadd.f32 %v2862, %v3009
      %v3038 = vadd.f32 %v2863, %v3011
      %v3039 = vadd.f32 %v2864, %v3014
      %v3040 = vadd.f32 %v2865, %v3016
      %v3041 = vadd.f32 %v2866, %v3019
      %v3042 = vadd.f32 %v2867, %v3021
      %v3043 = vpack.c.bf16 %v2336, %v2336
      %s3044 = scalar_lea.vmem %s3, 256
      %v3045 = vld [vmem:[%s3044] sm:$0xf]
      %v3046 = vld [vmem:[%s3044 + $0x4] sm:$0xf]
      %v3047 = vld [vmem:[%s3044 + $0x8] sm:$0xf]
      %v3048 = vld [vmem:[%s3044 + $0xc] sm:$0xf]
      %v3049 = vld [vmem:[%s3044 + $0x10] sm:$0xf]
      %v3050 = vld [vmem:[%s3044 + $0x14] sm:$0xf]
      %v3051 = vld [vmem:[%s3044 + $0x18] sm:$0xf]
      %v3052 = vld [vmem:[%s3044 + $0x1c] sm:$0xf]
      %v3053 = vld [vmem:[%s3044 + $0x20] sm:$0xf]
      %v3054 = vld [vmem:[%s3044 + $0x24] sm:$0xf]
      %v3055 = vld [vmem:[%s3044 + $0x28] sm:$0xf]
      %v3056 = vld [vmem:[%s3044 + $0x2c] sm:$0xf]
      %v3057 = vld [vmem:[%s3044 + $0x30] sm:$0xf]
      %v3058 = vld [vmem:[%s3044 + $0x34] sm:$0xf]
      %v3059 = vld [vmem:[%s3044 + $0x38] sm:$0xf]
      %v3060 = vld [vmem:[%s3044 + $0x3c] sm:$0xf]
      %v3061 = vrot.slane %v2394, 2
      %v3062 = vrot.slane %v2390, 3
      %v3063 = vor.u32 %v3061, %v3062
      %v3064 = vrot.slane %v2402, 2
      %v3065 = vrot.slane %v2398, 3
      %v3066 = vor.u32 %v3064, %v3065
      %v3067 = vsel %vm1144, %v3063, %v3066
      %v3068 = vrot.slane %v2410, 2
      %v3069 = vrot.slane %v2406, 3
      %v3070 = vor.u32 %v3068, %v3069
      %v3071 = vsel %vm1144, %v3066, %v3070
      %v3072 = vrot.slane %v2418, 2
      %v3073 = vrot.slane %v2414, 3
      %v3074 = vor.u32 %v3072, %v3073
      %v3075 = vsel %vm1144, %v3070, %v3074
      %v3076 = vrot.slane %v2426, 2
      %v3077 = vrot.slane %v2422, 3
      %v3078 = vor.u32 %v3076, %v3077
      %v3079 = vsel %vm1144, %v3074, %v3078
      %v3080 = vrot.slane %v2434, 2
      %v3081 = vrot.slane %v2430, 3
      %v3082 = vor.u32 %v3080, %v3081
      %v3083 = vsel %vm1144, %v3078, %v3082
      %v3084 = vrot.slane %v2442, 2
      %v3085 = vrot.slane %v2438, 3
      %v3086 = vor.u32 %v3084, %v3085
      %v3087 = vsel %vm1144, %v3082, %v3086
      %v3088 = vrot.slane %v2450, 2
      %v3089 = vrot.slane %v2446, 3
      %v3090 = vor.u32 %v3088, %v3089
      %v3091 = vsel %vm1144, %v3086, %v3090
      %v3092 = vrot.slane %v2458, 2
      %v3093 = vrot.slane %v2454, 3
      %v3094 = vor.u32 %v3092, %v3093
      %v3095 = vsel %vm1144, %v3090, %v3094
      %v3097 = vshrl.u32 %v2868, 16
      %v3099 = vrot.slane %v3097, 2
      %v3100 = vshll.u32 %v2868, 16
      %v3102 = vrot.slane %v3100, 3
      %v3103 = vor.u32 %v3099, %v3102
      %v3104 = vsel %vm1144, %v3094, %v3103
      %v3106 = vshll.u32 %v3043, 16
      %v3108 = vrot.slane %v3106, 3
      %v3109 = vsel %vm1144, %v3103, %v3108
      %v3136 = vunpack.c.l.b16 %v3045
      %v3137 = vunpack.c.l.b16 %v3046
      %v3138 = vunpack.c.l.b16 %v3047
      %v3139 = vunpack.c.l.b16 %v3048
      %v3140 = vunpack.c.l.b16 %v3049
      %v3141 = vunpack.c.l.b16 %v3050
      %v3142 = vunpack.c.l.b16 %v3051
      %v3143 = vunpack.c.l.b16 %v3052
      %v3144 = vunpack.c.l.b16 %v3053
      %v3145 = vunpack.c.l.b16 %v3054
      %v3146 = vunpack.c.l.b16 %v3055
      %v3147 = vunpack.c.l.b16 %v3056
      %v3148 = vunpack.c.l.b16 %v3057
      %v3149 = vunpack.c.l.b16 %v3058
      %v3150 = vunpack.c.l.b16 %v3059
      %v3151 = vunpack.c.l.b16 %v3060
      %v3152 = vpack.c.b16 %v3137, %v3136
      %v3153 = vpack.c.b16 %v3139, %v3138
      %v3154 = vpack.c.b16 %v3141, %v3140
      %v3155 = vpack.c.b16 %v3143, %v3142
      %v3156 = vpack.c.b16 %v3145, %v3144
      %v3157 = vpack.c.b16 %v3147, %v3146
      %v3158 = vpack.c.b16 %v3149, %v3148
      %v3159 = vpack.c.b16 %v3151, %v3150
      %3168 = vmatpush.bf16.msra.mxu0 %v3159
      %3169 = vmatpush.bf16.msra.mxu0 %v3158
      %3170 = vmatpush.bf16.msra.mxu0 %v3157
      %3171 = vmatpush.bf16.msra.mxu0 %v3156
      %3172 = vmatpush.bf16.msra.mxu0 %v3155
      %3173 = vmatpush.bf16.msra.mxu0 %v3154
      %3174 = vmatpush.bf16.msra.mxu0 %v3153
      %3175 = vmatpush.bf16.msra.mxu0 %v3152
      %3176 = vmatmul.bf16.gmra.mxu0 %v3067
      %v3177 = vpop.f32.mrf.mxu0
      %v3178 = vadd.f32 0.0, %v3177
      %v3179 = vpop.f32.mrf.mxu0
      %v3180 = vadd.f32 0.0, %v3179
      %3181 = vmatmul.bf16.gmra.mxu0 %v3071
      %v3182 = vpop.f32.mrf.mxu0
      %v3183 = vadd.f32 0.0, %v3182
      %v3184 = vpop.f32.mrf.mxu0
      %v3185 = vadd.f32 0.0, %v3184
      %3186 = vmatmul.bf16.gmra.mxu0 %v3075
      %v3187 = vpop.f32.mrf.mxu0
      %v3188 = vadd.f32 0.0, %v3187
      %v3189 = vpop.f32.mrf.mxu0
      %v3190 = vadd.f32 0.0, %v3189
      %3191 = vmatmul.bf16.gmra.mxu0 %v3079
      %v3192 = vpop.f32.mrf.mxu0
      %v3193 = vadd.f32 0.0, %v3192
      %v3194 = vpop.f32.mrf.mxu0
      %v3195 = vadd.f32 0.0, %v3194
      %3196 = vmatmul.bf16.gmra.mxu0 %v3083
      %v3197 = vpop.f32.mrf.mxu0
      %v3198 = vadd.f32 0.0, %v3197
      %v3199 = vpop.f32.mrf.mxu0
      %v3200 = vadd.f32 0.0, %v3199
      %3201 = vmatmul.bf16.gmra.mxu0 %v3087
      %v3202 = vpop.f32.mrf.mxu0
      %v3203 = vadd.f32 0.0, %v3202
      %v3204 = vpop.f32.mrf.mxu0
      %v3205 = vadd.f32 0.0, %v3204
      %3206 = vmatmul.bf16.gmra.mxu0 %v3091
      %v3207 = vpop.f32.mrf.mxu0
      %v3208 = vadd.f32 0.0, %v3207
      %v3209 = vpop.f32.mrf.mxu0
      %v3210 = vadd.f32 0.0, %v3209
      %3211 = vmatmul.bf16.gmra.mxu0 %v3095
      %v3212 = vpop.f32.mrf.mxu0
      %v3213 = vadd.f32 0.0, %v3212
      %v3214 = vpop.f32.mrf.mxu0
      %v3215 = vadd.f32 0.0, %v3214
      %3216 = vmatmul.bf16.gmra.mxu0 %v3104
      %v3217 = vpop.f32.mrf.mxu0
      %v3218 = vadd.f32 0.0, %v3217
      %v3219 = vpop.f32.mrf.mxu0
      %v3220 = vadd.f32 0.0, %v3219
      %3221 = vmatmul.bf16.gmra.mxu0 %v3109
      %v3222 = vpop.f32.mrf.mxu0
      %v3223 = vadd.f32 0.0, %v3222
      %v3224 = vpop.f32.mrf.mxu0
      %v3225 = vadd.f32 0.0, %v3224
      %3226 = vdwg.mxu0
      %v3227 = vadd.f32 %v3023, %v3178
      %v3228 = vadd.f32 %v3024, %v3180
      %v3229 = vadd.f32 %v3025, %v3183
      %v3230 = vadd.f32 %v3026, %v3185
      %v3231 = vadd.f32 %v3027, %v3188
      %v3232 = vadd.f32 %v3028, %v3190
      %v3233 = vadd.f32 %v3029, %v3193
      %v3234 = vadd.f32 %v3030, %v3195
      %v3235 = vadd.f32 %v3031, %v3198
      %v3236 = vadd.f32 %v3032, %v3200
      %v3237 = vadd.f32 %v3033, %v3203
      %v3238 = vadd.f32 %v3034, %v3205
      %v3239 = vadd.f32 %v3035, %v3208
      %v3240 = vadd.f32 %v3036, %v3210
      %v3241 = vadd.f32 %v3037, %v3213
      %v3242 = vadd.f32 %v3038, %v3215
      %v3243 = vadd.f32 %v3039, %v3218
      %v3244 = vadd.f32 %v3040, %v3220
      %v3245 = vadd.f32 %v3041, %v3223
      %v3246 = vadd.f32 %v3042, %v3225
      %s3247 = scalar_lea.vmem %s3, 320
      %v3248 = vld [vmem:[%s3247] sm:$0xf]
      %v3249 = vld [vmem:[%s3247 + $0x4] sm:$0xf]
      %v3250 = vld [vmem:[%s3247 + $0x8] sm:$0xf]
      %v3251 = vld [vmem:[%s3247 + $0xc] sm:$0xf]
      %v3252 = vld [vmem:[%s3247 + $0x10] sm:$0xf]
      %v3253 = vld [vmem:[%s3247 + $0x14] sm:$0xf]
      %v3254 = vld [vmem:[%s3247 + $0x18] sm:$0xf]
      %v3255 = vld [vmem:[%s3247 + $0x1c] sm:$0xf]
      %v3256 = vld [vmem:[%s3247 + $0x20] sm:$0xf]
      %v3257 = vld [vmem:[%s3247 + $0x24] sm:$0xf]
      %v3258 = vld [vmem:[%s3247 + $0x28] sm:$0xf]
      %v3259 = vld [vmem:[%s3247 + $0x2c] sm:$0xf]
      %v3260 = vld [vmem:[%s3247 + $0x30] sm:$0xf]
      %v3261 = vld [vmem:[%s3247 + $0x34] sm:$0xf]
      %v3262 = vld [vmem:[%s3247 + $0x38] sm:$0xf]
      %v3263 = vld [vmem:[%s3247 + $0x3c] sm:$0xf]
      %v3265 = vrot.slane %v2340, 3
      %v3266 = vrot.slane %v2341, 3
      %v3267 = vsel %vm1348, %v3265, %v3266
      %v3268 = vrot.slane %v2342, 3
      %v3269 = vsel %vm1348, %v3266, %v3268
      %v3270 = vrot.slane %v2343, 3
      %v3271 = vsel %vm1348, %v3268, %v3270
      %v3272 = vrot.slane %v2344, 3
      %v3273 = vsel %vm1348, %v3270, %v3272
      %v3274 = vrot.slane %v2345, 3
      %v3275 = vsel %vm1348, %v3272, %v3274
      %v3276 = vrot.slane %v2346, 3
      %v3277 = vsel %vm1348, %v3274, %v3276
      %v3278 = vrot.slane %v2347, 3
      %v3279 = vsel %vm1348, %v3276, %v3278
      %v3280 = vrot.slane %v2348, 3
      %v3281 = vsel %vm1348, %v3278, %v3280
      %v3282 = vrot.slane %v2868, 3
      %v3283 = vsel %vm1348, %v3280, %v3282
      %v3284 = vrot.slane %v3043, 3
      %v3285 = vsel %vm1348, %v3282, %v3284
      %v3312 = vunpack.c.l.b16 %v3248
      %v3313 = vunpack.c.l.b16 %v3249
      %v3314 = vunpack.c.l.b16 %v3250
      %v3315 = vunpack.c.l.b16 %v3251
      %v3316 = vunpack.c.l.b16 %v3252
      %v3317 = vunpack.c.l.b16 %v3253
      %v3318 = vunpack.c.l.b16 %v3254
      %v3319 = vunpack.c.l.b16 %v3255
      %v3320 = vunpack.c.l.b16 %v3256
      %v3321 = vunpack.c.l.b16 %v3257
      %v3322 = vunpack.c.l.b16 %v3258
      %v3323 = vunpack.c.l.b16 %v3259
      %v3324 = vunpack.c.l.b16 %v3260
      %v3325 = vunpack.c.l.b16 %v3261
      %v3326 = vunpack.c.l.b16 %v3262
      %v3327 = vunpack.c.l.b16 %v3263
      %v3328 = vpack.c.b16 %v3313, %v3312
      %v3329 = vpack.c.b16 %v3315, %v3314
      %v3330 = vpack.c.b16 %v3317, %v3316
      %v3331 = vpack.c.b16 %v3319, %v3318
      %v3332 = vpack.c.b16 %v3321, %v3320
      %v3333 = vpack.c.b16 %v3323, %v3322
      %v3334 = vpack.c.b16 %v3325, %v3324
      %v3335 = vpack.c.b16 %v3327, %v3326
      %3344 = vmatpush.bf16.msra.mxu0 %v3335
      %3345 = vmatpush.bf16.msra.mxu0 %v3334
      %3346 = vmatpush.bf16.msra.mxu0 %v3333
      %3347 = vmatpush.bf16.msra.mxu0 %v3332
      %3348 = vmatpush.bf16.msra.mxu0 %v3331
      %3349 = vmatpush.bf16.msra.mxu0 %v3330
      %3350 = vmatpush.bf16.msra.mxu0 %v3329
      %3351 = vmatpush.bf16.msra.mxu0 %v3328
      %3352 = vmatmul.bf16.gmra.mxu0 %v3267
      %v3353 = vpop.f32.mrf.mxu0
      %v3354 = vadd.f32 0.0, %v3353
      %v3355 = vpop.f32.mrf.mxu0
      %v3356 = vadd.f32 0.0, %v3355
      %3357 = vmatmul.bf16.gmra.mxu0 %v3269
      %v3358 = vpop.f32.mrf.mxu0
      %v3359 = vadd.f32 0.0, %v3358
      %v3360 = vpop.f32.mrf.mxu0
      %v3361 = vadd.f32 0.0, %v3360
      %3362 = vmatmul.bf16.gmra.mxu0 %v3271
      %v3363 = vpop.f32.mrf.mxu0
      %v3364 = vadd.f32 0.0, %v3363
      %v3365 = vpop.f32.mrf.mxu0
      %v3366 = vadd.f32 0.0, %v3365
      %3367 = vmatmul.bf16.gmra.mxu0 %v3273
      %v3368 = vpop.f32.mrf.mxu0
      %v3369 = vadd.f32 0.0, %v3368
      %v3370 = vpop.f32.mrf.mxu0
      %v3371 = vadd.f32 0.0, %v3370
      %3372 = vmatmul.bf16.gmra.mxu0 %v3275
      %v3373 = vpop.f32.mrf.mxu0
      %v3374 = vadd.f32 0.0, %v3373
      %v3375 = vpop.f32.mrf.mxu0
      %v3376 = vadd.f32 0.0, %v3375
      %3377 = vmatmul.bf16.gmra.mxu0 %v3277
      %v3378 = vpop.f32.mrf.mxu0
      %v3379 = vadd.f32 0.0, %v3378
      %v3380 = vpop.f32.mrf.mxu0
      %v3381 = vadd.f32 0.0, %v3380
      %3382 = vmatmul.bf16.gmra.mxu0 %v3279
      %v3383 = vpop.f32.mrf.mxu0
      %v3384 = vadd.f32 0.0, %v3383
      %v3385 = vpop.f32.mrf.mxu0
      %v3386 = vadd.f32 0.0, %v3385
      %3387 = vmatmul.bf16.gmra.mxu0 %v3281
      %v3388 = vpop.f32.mrf.mxu0
      %v3389 = vadd.f32 0.0, %v3388
      %v3390 = vpop.f32.mrf.mxu0
      %v3391 = vadd.f32 0.0, %v3390
      %3392 = vmatmul.bf16.gmra.mxu0 %v3283
      %v3393 = vpop.f32.mrf.mxu0
      %v3394 = vadd.f32 0.0, %v3393
      %v3395 = vpop.f32.mrf.mxu0
      %v3396 = vadd.f32 0.0, %v3395
      %3397 = vmatmul.bf16.gmra.mxu0 %v3285
      %v3398 = vpop.f32.mrf.mxu0
      %v3399 = vadd.f32 0.0, %v3398
      %v3400 = vpop.f32.mrf.mxu0
      %v3401 = vadd.f32 0.0, %v3400
      %3402 = vdwg.mxu0
      %v3403 = vadd.f32 %v3227, %v3354
      %v3404 = vadd.f32 %v3228, %v3356
      %v3405 = vadd.f32 %v3229, %v3359
      %v3406 = vadd.f32 %v3230, %v3361
      %v3407 = vadd.f32 %v3231, %v3364
      %v3408 = vadd.f32 %v3232, %v3366
      %v3409 = vadd.f32 %v3233, %v3369
      %v3410 = vadd.f32 %v3234, %v3371
      %v3411 = vadd.f32 %v3235, %v3374
      %v3412 = vadd.f32 %v3236, %v3376
      %v3413 = vadd.f32 %v3237, %v3379
      %v3414 = vadd.f32 %v3238, %v3381
      %v3415 = vadd.f32 %v3239, %v3384
      %v3416 = vadd.f32 %v3240, %v3386
      %v3417 = vadd.f32 %v3241, %v3389
      %v3418 = vadd.f32 %v3242, %v3391
      %v3419 = vadd.f32 %v3243, %v3394
      %v3420 = vadd.f32 %v3244, %v3396
      %v3421 = vadd.f32 %v3245, %v3399
      %v3422 = vadd.f32 %v3246, %v3401
      %v3423 = vpack.c.bf16 %v2320, %v2319
      %v3424 = vpack.c.bf16 %v2322, %v2321
      %v3425 = vpack.c.bf16 %v2324, %v2323
      %v3426 = vpack.c.bf16 %v2326, %v2325
      %v3427 = vpack.c.bf16 %v2328, %v2327
      %v3428 = vpack.c.bf16 %v2330, %v2329
      %v3429 = vpack.c.bf16 %v2332, %v2331
      %v3430 = vpack.c.bf16 %v2334, %v2333
      %v3431 = vpack.c.bf16 %v2336, %v2335
      %v3432 = vpack.c.bf16 %v2338, %v2337
      %s3433 = scalar_lea.vmem %s3, 384
      %v3434 = vld [vmem:[%s3433] sm:$0xf]
      %v3435 = vld [vmem:[%s3433 + $0x4] sm:$0xf]
      %v3436 = vld [vmem:[%s3433 + $0x8] sm:$0xf]
      %v3437 = vld [vmem:[%s3433 + $0xc] sm:$0xf]
      %v3438 = vld [vmem:[%s3433 + $0x10] sm:$0xf]
      %v3439 = vld [vmem:[%s3433 + $0x14] sm:$0xf]
      %v3440 = vld [vmem:[%s3433 + $0x18] sm:$0xf]
      %v3441 = vld [vmem:[%s3433 + $0x1c] sm:$0xf]
      %v3442 = vld [vmem:[%s3433 + $0x20] sm:$0xf]
      %v3443 = vld [vmem:[%s3433 + $0x24] sm:$0xf]
      %v3444 = vld [vmem:[%s3433 + $0x28] sm:$0xf]
      %v3445 = vld [vmem:[%s3433 + $0x2c] sm:$0xf]
      %v3446 = vld [vmem:[%s3433 + $0x30] sm:$0xf]
      %v3447 = vld [vmem:[%s3433 + $0x34] sm:$0xf]
      %v3448 = vld [vmem:[%s3433 + $0x38] sm:$0xf]
      %v3449 = vld [vmem:[%s3433 + $0x3c] sm:$0xf]
      %v3466 = vunpack.c.l.b16 %v3434
      %v3467 = vunpack.c.l.b16 %v3435
      %v3468 = vunpack.c.l.b16 %v3436
      %v3469 = vunpack.c.l.b16 %v3437
      %v3470 = vunpack.c.l.b16 %v3438
      %v3471 = vunpack.c.l.b16 %v3439
      %v3472 = vunpack.c.l.b16 %v3440
      %v3473 = vunpack.c.l.b16 %v3441
      %v3474 = vunpack.c.l.b16 %v3442
      %v3475 = vunpack.c.l.b16 %v3443
      %v3476 = vunpack.c.l.b16 %v3444
      %v3477 = vunpack.c.l.b16 %v3445
      %v3478 = vunpack.c.l.b16 %v3446
      %v3479 = vunpack.c.l.b16 %v3447
      %v3480 = vunpack.c.l.b16 %v3448
      %v3481 = vunpack.c.l.b16 %v3449
      %v3482 = vpack.c.b16 %v3467, %v3466
      %v3483 = vpack.c.b16 %v3469, %v3468
      %v3484 = vpack.c.b16 %v3471, %v3470
      %v3485 = vpack.c.b16 %v3473, %v3472
      %v3486 = vpack.c.b16 %v3475, %v3474
      %v3487 = vpack.c.b16 %v3477, %v3476
      %v3488 = vpack.c.b16 %v3479, %v3478
      %v3489 = vpack.c.b16 %v3481, %v3480
      %3498 = vmatpush.bf16.msra.mxu0 %v3489
      %3499 = vmatpush.bf16.msra.mxu0 %v3488
      %3500 = vmatpush.bf16.msra.mxu0 %v3487
      %3501 = vmatpush.bf16.msra.mxu0 %v3486
      %3502 = vmatpush.bf16.msra.mxu0 %v3485
      %3503 = vmatpush.bf16.msra.mxu0 %v3484
      %3504 = vmatpush.bf16.msra.mxu0 %v3483
      %3505 = vmatpush.bf16.msra.mxu0 %v3482
      %3506 = vmatmul.bf16.gmra.mxu0 %v3423
      %v3507 = vpop.f32.mrf.mxu0
      %v3508 = vadd.f32 0.0, %v3507
      %v3509 = vpop.f32.mrf.mxu0
      %v3510 = vadd.f32 0.0, %v3509
      %3511 = vmatmul.bf16.gmra.mxu0 %v3424
      %v3512 = vpop.f32.mrf.mxu0
      %v3513 = vadd.f32 0.0, %v3512
      %v3514 = vpop.f32.mrf.mxu0
      %v3515 = vadd.f32 0.0, %v3514
      %3516 = vmatmul.bf16.gmra.mxu0 %v3425
      %v3517 = vpop.f32.mrf.mxu0
      %v3518 = vadd.f32 0.0, %v3517
      %v3519 = vpop.f32.mrf.mxu0
      %v3520 = vadd.f32 0.0, %v3519
      %3521 = vmatmul.bf16.gmra.mxu0 %v3426
      %v3522 = vpop.f32.mrf.mxu0
      %v3523 = vadd.f32 0.0, %v3522
      %v3524 = vpop.f32.mrf.mxu0
      %v3525 = vadd.f32 0.0, %v3524
      %3526 = vmatmul.bf16.gmra.mxu0 %v3427
      %v3527 = vpop.f32.mrf.mxu0
      %v3528 = vadd.f32 0.0, %v3527
      %v3529 = vpop.f32.mrf.mxu0
      %v3530 = vadd.f32 0.0, %v3529
      %3531 = vmatmul.bf16.gmra.mxu0 %v3428
      %v3532 = vpop.f32.mrf.mxu0
      %v3533 = vadd.f32 0.0, %v3532
      %v3534 = vpop.f32.mrf.mxu0
      %v3535 = vadd.f32 0.0, %v3534
      %3536 = vmatmul.bf16.gmra.mxu0 %v3429
      %v3537 = vpop.f32.mrf.mxu0
      %v3538 = vadd.f32 0.0, %v3537
      %v3539 = vpop.f32.mrf.mxu0
      %v3540 = vadd.f32 0.0, %v3539
      %3541 = vmatmul.bf16.gmra.mxu0 %v3430
      %v3542 = vpop.f32.mrf.mxu0
      %v3543 = vadd.f32 0.0, %v3542
      %v3544 = vpop.f32.mrf.mxu0
      %v3545 = vadd.f32 0.0, %v3544
      %3546 = vmatmul.bf16.gmra.mxu0 %v3431
      %v3547 = vpop.f32.mrf.mxu0
      %v3548 = vadd.f32 0.0, %v3547
      %v3549 = vpop.f32.mrf.mxu0
      %v3550 = vadd.f32 0.0, %v3549
      %3551 = vmatmul.bf16.gmra.mxu0 %v3432
      %v3552 = vpop.f32.mrf.mxu0
      %v3553 = vadd.f32 0.0, %v3552
      %v3554 = vpop.f32.mrf.mxu0
      %v3555 = vadd.f32 0.0, %v3554
      %3556 = vdwg.mxu0
      %v3557 = vadd.f32 %v3403, %v3508
      %v3558 = vadd.f32 %v3404, %v3510
      %v3559 = vadd.f32 %v3405, %v3513
      %v3560 = vadd.f32 %v3406, %v3515
      %v3561 = vadd.f32 %v3407, %v3518
      %v3562 = vadd.f32 %v3408, %v3520
      %v3563 = vadd.f32 %v3409, %v3523
      %v3564 = vadd.f32 %v3410, %v3525
      %v3565 = vadd.f32 %v3411, %v3528
      %v3566 = vadd.f32 %v3412, %v3530
      %v3567 = vadd.f32 %v3413, %v3533
      %v3568 = vadd.f32 %v3414, %v3535
      %v3569 = vadd.f32 %v3415, %v3538
      %v3570 = vadd.f32 %v3416, %v3540
      %v3571 = vadd.f32 %v3417, %v3543
      %v3572 = vadd.f32 %v3418, %v3545
      %v3573 = vadd.f32 %v3419, %v3548
      %v3574 = vadd.f32 %v3420, %v3550
      %v3575 = vadd.f32 %v3421, %v3553
      %v3576 = vadd.f32 %v3422, %v3555
      %s3577 = scalar_lea.vmem %s3, 448
      %v3578 = vld [vmem:[%s3577] sm:$0xf]
      %v3579 = vld [vmem:[%s3577 + $0x4] sm:$0xf]
      %v3580 = vld [vmem:[%s3577 + $0x8] sm:$0xf]
      %v3581 = vld [vmem:[%s3577 + $0xc] sm:$0xf]
      %v3582 = vld [vmem:[%s3577 + $0x10] sm:$0xf]
      %v3583 = vld [vmem:[%s3577 + $0x14] sm:$0xf]
      %v3584 = vld [vmem:[%s3577 + $0x18] sm:$0xf]
      %v3585 = vld [vmem:[%s3577 + $0x1c] sm:$0xf]
      %v3586 = vld [vmem:[%s3577 + $0x20] sm:$0xf]
      %v3587 = vld [vmem:[%s3577 + $0x24] sm:$0xf]
      %v3588 = vld [vmem:[%s3577 + $0x28] sm:$0xf]
      %v3589 = vld [vmem:[%s3577 + $0x2c] sm:$0xf]
      %v3590 = vld [vmem:[%s3577 + $0x30] sm:$0xf]
      %v3591 = vld [vmem:[%s3577 + $0x34] sm:$0xf]
      %v3592 = vld [vmem:[%s3577 + $0x38] sm:$0xf]
      %v3593 = vld [vmem:[%s3577 + $0x3c] sm:$0xf]
      %v3595 = vshrl.u32 %v3423, 16
      %v3597 = vshll.u32 %v3423, 16
      %v3599 = vrot.slane %v3597, 1
      %v3600 = vor.u32 %v3595, %v3599
      %v3602 = vshll.u32 %v3424, 16
      %v3604 = vrot.slane %v3602, 1
      %v3605 = vsel %vm466, %v3600, %v3604
      %v3606 = vshrl.u32 %v3424, 16
      %v3608 = vor.u32 %v3606, %v3604
      %v3610 = vshll.u32 %v3425, 16
      %v3612 = vrot.slane %v3610, 1
      %v3613 = vsel %vm466, %v3608, %v3612
      %v3614 = vshrl.u32 %v3425, 16
      %v3616 = vor.u32 %v3614, %v3612
      %v3618 = vshll.u32 %v3426, 16
      %v3620 = vrot.slane %v3618, 1
      %v3621 = vsel %vm466, %v3616, %v3620
      %v3622 = vshrl.u32 %v3426, 16
      %v3624 = vor.u32 %v3622, %v3620
      %v3626 = vshll.u32 %v3427, 16
      %v3628 = vrot.slane %v3626, 1
      %v3629 = vsel %vm466, %v3624, %v3628
      %v3630 = vshrl.u32 %v3427, 16
      %v3632 = vor.u32 %v3630, %v3628
      %v3634 = vshll.u32 %v3428, 16
      %v3636 = vrot.slane %v3634, 1
      %v3637 = vsel %vm466, %v3632, %v3636
      %v3638 = vshrl.u32 %v3428, 16
      %v3640 = vor.u32 %v3638, %v3636
      %v3642 = vshll.u32 %v3429, 16
      %v3644 = vrot.slane %v3642, 1
      %v3645 = vsel %vm466, %v3640, %v3644
      %v3646 = vshrl.u32 %v3429, 16
      %v3648 = vor.u32 %v3646, %v3644
      %v3650 = vshll.u32 %v3430, 16
      %v3652 = vrot.slane %v3650, 1
      %v3653 = vsel %vm466, %v3648, %v3652
      %v3654 = vshrl.u32 %v3430, 16
      %v3656 = vor.u32 %v3654, %v3652
      %v3658 = vshll.u32 %v3431, 16
      %v3660 = vrot.slane %v3658, 1
      %v3661 = vsel %vm466, %v3656, %v3660
      %v3662 = vshrl.u32 %v3431, 16
      %v3664 = vor.u32 %v3662, %v3660
      %v3666 = vshll.u32 %v3432, 16
      %v3668 = vrot.slane %v3666, 1
      %v3669 = vsel %vm466, %v3664, %v3668
      %v3670 = vshrl.u32 %v3432, 16
      %v3672 = vor.u32 %v3670, %v3668
      %v3699 = vunpack.c.l.b16 %v3578
      %v3700 = vunpack.c.l.b16 %v3579
      %v3701 = vunpack.c.l.b16 %v3580
      %v3702 = vunpack.c.l.b16 %v3581
      %v3703 = vunpack.c.l.b16 %v3582
      %v3704 = vunpack.c.l.b16 %v3583
      %v3705 = vunpack.c.l.b16 %v3584
      %v3706 = vunpack.c.l.b16 %v3585
      %v3707 = vunpack.c.l.b16 %v3586
      %v3708 = vunpack.c.l.b16 %v3587
      %v3709 = vunpack.c.l.b16 %v3588
      %v3710 = vunpack.c.l.b16 %v3589
      %v3711 = vunpack.c.l.b16 %v3590
      %v3712 = vunpack.c.l.b16 %v3591
      %v3713 = vunpack.c.l.b16 %v3592
      %v3714 = vunpack.c.l.b16 %v3593
      %v3715 = vpack.c.b16 %v3700, %v3699
      %v3716 = vpack.c.b16 %v3702, %v3701
      %v3717 = vpack.c.b16 %v3704, %v3703
      %v3718 = vpack.c.b16 %v3706, %v3705
      %v3719 = vpack.c.b16 %v3708, %v3707
      %v3720 = vpack.c.b16 %v3710, %v3709
      %v3721 = vpack.c.b16 %v3712, %v3711
      %v3722 = vpack.c.b16 %v3714, %v3713
      %3731 = vmatpush.bf16.msra.mxu0 %v3722
      %3732 = vmatpush.bf16.msra.mxu0 %v3721
      %3733 = vmatpush.bf16.msra.mxu0 %v3720
      %3734 = vmatpush.bf16.msra.mxu0 %v3719
      %3735 = vmatpush.bf16.msra.mxu0 %v3718
      %3736 = vmatpush.bf16.msra.mxu0 %v3717
      %3737 = vmatpush.bf16.msra.mxu0 %v3716
      %3738 = vmatpush.bf16.msra.mxu0 %v3715
      %3739 = vmatmul.bf16.gmra.mxu0 %v3605
      %v3740 = vpop.f32.mrf.mxu0
      %v3741 = vadd.f32 0.0, %v3740
      %v3742 = vpop.f32.mrf.mxu0
      %v3743 = vadd.f32 0.0, %v3742
      %3744 = vmatmul.bf16.gmra.mxu0 %v3613
      %v3745 = vpop.f32.mrf.mxu0
      %v3746 = vadd.f32 0.0, %v3745
      %v3747 = vpop.f32.mrf.mxu0
      %v3748 = vadd.f32 0.0, %v3747
      %3749 = vmatmul.bf16.gmra.mxu0 %v3621
      %v3750 = vpop.f32.mrf.mxu0
      %v3751 = vadd.f32 0.0, %v3750
      %v3752 = vpop.f32.mrf.mxu0
      %v3753 = vadd.f32 0.0, %v3752
      %3754 = vmatmul.bf16.gmra.mxu0 %v3629
      %v3755 = vpop.f32.mrf.mxu0
      %v3756 = vadd.f32 0.0, %v3755
      %v3757 = vpop.f32.mrf.mxu0
      %v3758 = vadd.f32 0.0, %v3757
      %3759 = vmatmul.bf16.gmra.mxu0 %v3637
      %v3760 = vpop.f32.mrf.mxu0
      %v3761 = vadd.f32 0.0, %v3760
      %v3762 = vpop.f32.mrf.mxu0
      %v3763 = vadd.f32 0.0, %v3762
      %3764 = vmatmul.bf16.gmra.mxu0 %v3645
      %v3765 = vpop.f32.mrf.mxu0
      %v3766 = vadd.f32 0.0, %v3765
      %v3767 = vpop.f32.mrf.mxu0
      %v3768 = vadd.f32 0.0, %v3767
      %3769 = vmatmul.bf16.gmra.mxu0 %v3653
      %v3770 = vpop.f32.mrf.mxu0
      %v3771 = vadd.f32 0.0, %v3770
      %v3772 = vpop.f32.mrf.mxu0
      %v3773 = vadd.f32 0.0, %v3772
      %3774 = vmatmul.bf16.gmra.mxu0 %v3661
      %v3775 = vpop.f32.mrf.mxu0
      %v3776 = vadd.f32 0.0, %v3775
      %v3777 = vpop.f32.mrf.mxu0
      %v3778 = vadd.f32 0.0, %v3777
      %3779 = vmatmul.bf16.gmra.mxu0 %v3669
      %v3780 = vpop.f32.mrf.mxu0
      %v3781 = vadd.f32 0.0, %v3780
      %v3782 = vpop.f32.mrf.mxu0
      %v3783 = vadd.f32 0.0, %v3782
      %3784 = vmatmul.bf16.gmra.mxu0 %v3672
      %v3785 = vpop.f32.mrf.mxu0
      %v3786 = vadd.f32 0.0, %v3785
      %v3787 = vpop.f32.mrf.mxu0
      %v3788 = vadd.f32 0.0, %v3787
      %3789 = vdwg.mxu0
      %v3790 = vadd.f32 %v3557, %v3741
      %v3791 = vadd.f32 %v3558, %v3743
      %v3792 = vadd.f32 %v3559, %v3746
      %v3793 = vadd.f32 %v3560, %v3748
      %v3794 = vadd.f32 %v3561, %v3751
      %v3795 = vadd.f32 %v3562, %v3753
      %v3796 = vadd.f32 %v3563, %v3756
      %v3797 = vadd.f32 %v3564, %v3758
      %v3798 = vadd.f32 %v3565, %v3761
      %v3799 = vadd.f32 %v3566, %v3763
      %v3800 = vadd.f32 %v3567, %v3766
      %v3801 = vadd.f32 %v3568, %v3768
      %v3802 = vadd.f32 %v3569, %v3771
      %v3803 = vadd.f32 %v3570, %v3773
      %v3804 = vadd.f32 %v3571, %v3776
      %v3805 = vadd.f32 %v3572, %v3778
      %v3806 = vadd.f32 %v3573, %v3781
      %v3807 = vadd.f32 %v3574, %v3783
      %v3808 = vadd.f32 %v3575, %v3786
      %v3809 = vadd.f32 %v3576, %v3788
      %s3810 = scalar_lea.vmem %s3, 512
      %v3811 = vld [vmem:[%s3810] sm:$0xf]
      %v3812 = vld [vmem:[%s3810 + $0x4] sm:$0xf]
      %v3813 = vld [vmem:[%s3810 + $0x8] sm:$0xf]
      %v3814 = vld [vmem:[%s3810 + $0xc] sm:$0xf]
      %v3815 = vld [vmem:[%s3810 + $0x10] sm:$0xf]
      %v3816 = vld [vmem:[%s3810 + $0x14] sm:$0xf]
      %v3817 = vld [vmem:[%s3810 + $0x18] sm:$0xf]
      %v3818 = vld [vmem:[%s3810 + $0x1c] sm:$0xf]
      %v3819 = vld [vmem:[%s3810 + $0x20] sm:$0xf]
      %v3820 = vld [vmem:[%s3810 + $0x24] sm:$0xf]
      %v3821 = vld [vmem:[%s3810 + $0x28] sm:$0xf]
      %v3822 = vld [vmem:[%s3810 + $0x2c] sm:$0xf]
      %v3823 = vld [vmem:[%s3810 + $0x30] sm:$0xf]
      %v3824 = vld [vmem:[%s3810 + $0x34] sm:$0xf]
      %v3825 = vld [vmem:[%s3810 + $0x38] sm:$0xf]
      %v3826 = vld [vmem:[%s3810 + $0x3c] sm:$0xf]
      %v3837 = vrot.slane %v3423, 1
      %v3838 = vrot.slane %v3424, 1
      %v3839 = vsel %vm804, %v3837, %v3838
      %v3840 = vrot.slane %v3425, 1
      %v3841 = vsel %vm804, %v3838, %v3840
      %v3842 = vrot.slane %v3426, 1
      %v3843 = vsel %vm804, %v3840, %v3842
      %v3844 = vrot.slane %v3427, 1
      %v3845 = vsel %vm804, %v3842, %v3844
      %v3846 = vrot.slane %v3428, 1
      %v3847 = vsel %vm804, %v3844, %v3846
      %v3848 = vrot.slane %v3429, 1
      %v3849 = vsel %vm804, %v3846, %v3848
      %v3850 = vrot.slane %v3430, 1
      %v3851 = vsel %vm804, %v3848, %v3850
      %v3852 = vrot.slane %v3431, 1
      %v3853 = vsel %vm804, %v3850, %v3852
      %v3854 = vrot.slane %v3432, 1
      %v3855 = vsel %vm804, %v3852, %v3854
      %v3882 = vunpack.c.l.b16 %v3811
      %v3883 = vunpack.c.l.b16 %v3812
      %v3884 = vunpack.c.l.b16 %v3813
      %v3885 = vunpack.c.l.b16 %v3814
      %v3886 = vunpack.c.l.b16 %v3815
      %v3887 = vunpack.c.l.b16 %v3816
      %v3888 = vunpack.c.l.b16 %v3817
      %v3889 = vunpack.c.l.b16 %v3818
      %v3890 = vunpack.c.l.b16 %v3819
      %v3891 = vunpack.c.l.b16 %v3820
      %v3892 = vunpack.c.l.b16 %v3821
      %v3893 = vunpack.c.l.b16 %v3822
      %v3894 = vunpack.c.l.b16 %v3823
      %v3895 = vunpack.c.l.b16 %v3824
      %v3896 = vunpack.c.l.b16 %v3825
      %v3897 = vunpack.c.l.b16 %v3826
      %v3898 = vpack.c.b16 %v3883, %v3882
      %v3899 = vpack.c.b16 %v3885, %v3884
      %v3900 = vpack.c.b16 %v3887, %v3886
      %v3901 = vpack.c.b16 %v3889, %v3888
      %v3902 = vpack.c.b16 %v3891, %v3890
      %v3903 = vpack.c.b16 %v3893, %v3892
      %v3904 = vpack.c.b16 %v3895, %v3894
      %v3905 = vpack.c.b16 %v3897, %v3896
      %3914 = vmatpush.bf16.msra.mxu0 %v3905
      %3915 = vmatpush.bf16.msra.mxu0 %v3904
      %3916 = vmatpush.bf16.msra.mxu0 %v3903
      %3917 = vmatpush.bf16.msra.mxu0 %v3902
      %3918 = vmatpush.bf16.msra.mxu0 %v3901
      %3919 = vmatpush.bf16.msra.mxu0 %v3900
      %3920 = vmatpush.bf16.msra.mxu0 %v3899
      %3921 = vmatpush.bf16.msra.mxu0 %v3898
      %3922 = vmatmul.bf16.gmra.mxu0 %v3839
      %v3923 = vpop.f32.mrf.mxu0
      %v3924 = vadd.f32 0.0, %v3923
      %v3925 = vpop.f32.mrf.mxu0
      %v3926 = vadd.f32 0.0, %v3925
      %3927 = vmatmul.bf16.gmra.mxu0 %v3841
      %v3928 = vpop.f32.mrf.mxu0
      %v3929 = vadd.f32 0.0, %v3928
      %v3930 = vpop.f32.mrf.mxu0
      %v3931 = vadd.f32 0.0, %v3930
      %3932 = vmatmul.bf16.gmra.mxu0 %v3843
      %v3933 = vpop.f32.mrf.mxu0
      %v3934 = vadd.f32 0.0, %v3933
      %v3935 = vpop.f32.mrf.mxu0
      %v3936 = vadd.f32 0.0, %v3935
      %3937 = vmatmul.bf16.gmra.mxu0 %v3845
      %v3938 = vpop.f32.mrf.mxu0
      %v3939 = vadd.f32 0.0, %v3938
      %v3940 = vpop.f32.mrf.mxu0
      %v3941 = vadd.f32 0.0, %v3940
      %3942 = vmatmul.bf16.gmra.mxu0 %v3847
      %v3943 = vpop.f32.mrf.mxu0
      %v3944 = vadd.f32 0.0, %v3943
      %v3945 = vpop.f32.mrf.mxu0
      %v3946 = vadd.f32 0.0, %v3945
      %3947 = vmatmul.bf16.gmra.mxu0 %v3849
      %v3948 = vpop.f32.mrf.mxu0
      %v3949 = vadd.f32 0.0, %v3948
      %v3950 = vpop.f32.mrf.mxu0
      %v3951 = vadd.f32 0.0, %v3950
      %3952 = vmatmul.bf16.gmra.mxu0 %v3851
      %v3953 = vpop.f32.mrf.mxu0
      %v3954 = vadd.f32 0.0, %v3953
      %v3955 = vpop.f32.mrf.mxu0
      %v3956 = vadd.f32 0.0, %v3955
      %3957 = vmatmul.bf16.gmra.mxu0 %v3853
      %v3958 = vpop.f32.mrf.mxu0
      %v3959 = vadd.f32 0.0, %v3958
      %v3960 = vpop.f32.mrf.mxu0
      %v3961 = vadd.f32 0.0, %v3960
      %3962 = vmatmul.bf16.gmra.mxu0 %v3855
      %v3963 = vpop.f32.mrf.mxu0
      %v3964 = vadd.f32 0.0, %v3963
      %v3965 = vpop.f32.mrf.mxu0
      %v3966 = vadd.f32 0.0, %v3965
      %3967 = vmatmul.bf16.gmra.mxu0 %v3854
      %v3968 = vpop.f32.mrf.mxu0
      %v3969 = vadd.f32 0.0, %v3968
      %v3970 = vpop.f32.mrf.mxu0
      %v3971 = vadd.f32 0.0, %v3970
      %3972 = vdwg.mxu0
      %v3973 = vadd.f32 %v3790, %v3924
      %v3974 = vadd.f32 %v3791, %v3926
      %v3975 = vadd.f32 %v3792, %v3929
      %v3976 = vadd.f32 %v3793, %v3931
      %v3977 = vadd.f32 %v3794, %v3934
      %v3978 = vadd.f32 %v3795, %v3936
      %v3979 = vadd.f32 %v3796, %v3939
      %v3980 = vadd.f32 %v3797, %v3941
      %v3981 = vadd.f32 %v3798, %v3944
      %v3982 = vadd.f32 %v3799, %v3946
      %v3983 = vadd.f32 %v3800, %v3949
      %v3984 = vadd.f32 %v3801, %v3951
      %v3985 = vadd.f32 %v3802, %v3954
      %v3986 = vadd.f32 %v3803, %v3956
      %v3987 = vadd.f32 %v3804, %v3959
      %v3988 = vadd.f32 %v3805, %v3961
      %v3989 = vadd.f32 %v3806, %v3964
      %v3990 = vadd.f32 %v3807, %v3966
      %v3991 = vadd.f32 %v3808, %v3969
      %v3992 = vadd.f32 %v3809, %v3971
      %v3993 = vld [vmem:[%s4] sm:$0x3]
      %v3995 = vsel %vm570, %v1933, 0
      %v3998 = vsel %vm610, %v3993, 0
      %4000 = vmatpush.bf16.msra.mxu0 0
      %4001 = vmatpush.bf16.msra.mxu0 0
      %4002 = vmatpush.bf16.msra.mxu0 0
      %4003 = vmatpush.bf16.msra.mxu0 0
      %4004 = vmatpush.bf16.msra.mxu0 0
      %4005 = vmatpush.bf16.msra.mxu0 0
      %4006 = vmatpush.bf16.msra.mxu0 0
      %4007 = vmatpush.bf16.msra.mxu0 %v3998
      %4008 = vmatmul.bf16.gmra.mxu0 %v1942
      %v4009 = vpop.f32.mrf.mxu0
      %v4010 = vadd.f32 0.0, %v4009
      %v4011 = vpop.f32.mrf.mxu0
      %v4012 = vadd.f32 0.0, %v4011
      %4013 = vmatmul.bf16.gmra.mxu0 %v1945
      %v4014 = vpop.f32.mrf.mxu0
      %v4015 = vadd.f32 0.0, %v4014
      %v4016 = vpop.f32.mrf.mxu0
      %v4017 = vadd.f32 0.0, %v4016
      %4018 = vmatmul.bf16.gmra.mxu0 %v1948
      %v4019 = vpop.f32.mrf.mxu0
      %v4020 = vadd.f32 0.0, %v4019
      %v4021 = vpop.f32.mrf.mxu0
      %v4022 = vadd.f32 0.0, %v4021
      %4023 = vmatmul.bf16.gmra.mxu0 %v1951
      %v4024 = vpop.f32.mrf.mxu0
      %v4025 = vadd.f32 0.0, %v4024
      %v4026 = vpop.f32.mrf.mxu0
      %v4027 = vadd.f32 0.0, %v4026
      %4028 = vmatmul.bf16.gmra.mxu0 %v1954
      %v4029 = vpop.f32.mrf.mxu0
      %v4030 = vadd.f32 0.0, %v4029
      %v4031 = vpop.f32.mrf.mxu0
      %v4032 = vadd.f32 0.0, %v4031
      %4033 = vmatmul.bf16.gmra.mxu0 %v1957
      %v4034 = vpop.f32.mrf.mxu0
      %v4035 = vadd.f32 0.0, %v4034
      %v4036 = vpop.f32.mrf.mxu0
      %v4037 = vadd.f32 0.0, %v4036
      %4038 = vmatmul.bf16.gmra.mxu0 %v1960
      %v4039 = vpop.f32.mrf.mxu0
      %v4040 = vadd.f32 0.0, %v4039
      %v4041 = vpop.f32.mrf.mxu0
      %v4042 = vadd.f32 0.0, %v4041
      %4043 = vmatmul.bf16.gmra.mxu0 %v1963
      %v4044 = vpop.f32.mrf.mxu0
      %v4045 = vadd.f32 0.0, %v4044
      %v4046 = vpop.f32.mrf.mxu0
      %v4047 = vadd.f32 0.0, %v4046
      %4048 = vmatmul.bf16.gmra.mxu0 %v1966
      %v4049 = vpop.f32.mrf.mxu0
      %v4050 = vadd.f32 0.0, %v4049
      %v4051 = vpop.f32.mrf.mxu0
      %v4052 = vadd.f32 0.0, %v4051
      %4053 = vmatmul.bf16.gmra.mxu0 %v3995
      %v4054 = vpop.f32.mrf.mxu0
      %v4055 = vadd.f32 0.0, %v4054
      %v4056 = vpop.f32.mrf.mxu0
      %v4057 = vadd.f32 0.0, %v4056
      %4058 = vdwg.mxu0
      %v4059 = vld [vmem:[%s7] sm:$0x1]
      %v4061 = vperm.slane %v4059, 0
      %v4063 = vmul.f32 %v3973, %v4061
      %v4064 = vmul.f32 %v3974, %v4061
      %v4065 = vmul.f32 %v3975, %v4061
      %v4066 = vmul.f32 %v3976, %v4061
      %v4067 = vmul.f32 %v3977, %v4061
      %v4068 = vmul.f32 %v3978, %v4061
      %v4069 = vmul.f32 %v3979, %v4061
      %v4070 = vmul.f32 %v3980, %v4061
      %v4071 = vmul.f32 %v3981, %v4061
      %v4072 = vmul.f32 %v3982, %v4061
      %v4073 = vmul.f32 %v3983, %v4061
      %v4074 = vmul.f32 %v3984, %v4061
      %v4075 = vmul.f32 %v3985, %v4061
      %v4076 = vmul.f32 %v3986, %v4061
      %v4077 = vmul.f32 %v3987, %v4061
      %v4078 = vmul.f32 %v3988, %v4061
      %v4079 = vmul.f32 %v3989, %v4061
      %v4080 = vmul.f32 %v3990, %v4061
      %v4081 = vmul.f32 %v3991, %v4061
      %v4082 = vmul.f32 %v3992, %v4061
      %v4083 = vld [vmem:[%s8] sm:$0x1]
      %v4085 = vperm.slane %v4083, 0
      %v4087 = vadd.f32 %v4063, %v4085
      %v4088 = vadd.f32 %v4064, %v4085
      %v4089 = vadd.f32 %v4065, %v4085
      %v4090 = vadd.f32 %v4066, %v4085
      %v4091 = vadd.f32 %v4067, %v4085
      %v4092 = vadd.f32 %v4068, %v4085
      %v4093 = vadd.f32 %v4069, %v4085
      %v4094 = vadd.f32 %v4070, %v4085
      %v4095 = vadd.f32 %v4071, %v4085
      %v4096 = vadd.f32 %v4072, %v4085
      %v4097 = vadd.f32 %v4073, %v4085
      %v4098 = vadd.f32 %v4074, %v4085
      %v4099 = vadd.f32 %v4075, %v4085
      %v4100 = vadd.f32 %v4076, %v4085
      %v4101 = vadd.f32 %v4077, %v4085
      %v4102 = vadd.f32 %v4078, %v4085
      %v4103 = vadd.f32 %v4079, %v4085
      %v4104 = vadd.f32 %v4080, %v4085
      %v4105 = vadd.f32 %v4081, %v4085
      %v4106 = vadd.f32 %v4082, %v4085
      %v4107 = vadd.f32 %v4087, %v4010
      %v4108 = vadd.f32 %v4088, %v4012
      %v4109 = vadd.f32 %v4089, %v4015
      %v4110 = vadd.f32 %v4090, %v4017
      %v4111 = vadd.f32 %v4091, %v4020
      %v4112 = vadd.f32 %v4092, %v4022
      %v4113 = vadd.f32 %v4093, %v4025
      %v4114 = vadd.f32 %v4094, %v4027
      %v4115 = vadd.f32 %v4095, %v4030
      %v4116 = vadd.f32 %v4096, %v4032
      %v4117 = vadd.f32 %v4097, %v4035
      %v4118 = vadd.f32 %v4098, %v4037
      %v4119 = vadd.f32 %v4099, %v4040
      %v4120 = vadd.f32 %v4100, %v4042
      %v4121 = vadd.f32 %v4101, %v4045
      %v4122 = vadd.f32 %v4102, %v4047
      %v4123 = vadd.f32 %v4103, %v4050
      %v4124 = vadd.f32 %v4104, %v4052
      %v4125 = vadd.f32 %v4105, %v4055
      %v4126 = vadd.f32 %v4106, %v4057
      %v4127 = vmax.f32 %v4107, 0.0
      %v4128 = vmax.f32 %v4108, 0.0
      %v4129 = vmax.f32 %v4109, 0.0
      %v4130 = vmax.f32 %v4110, 0.0
      %v4131 = vmax.f32 %v4111, 0.0
      %v4132 = vmax.f32 %v4112, 0.0
      %v4133 = vmax.f32 %v4113, 0.0
      %v4134 = vmax.f32 %v4114, 0.0
      %v4135 = vmax.f32 %v4115, 0.0
      %v4136 = vmax.f32 %v4116, 0.0
      %v4137 = vmax.f32 %v4117, 0.0
      %v4138 = vmax.f32 %v4118, 0.0
      %v4139 = vmax.f32 %v4119, 0.0
      %v4140 = vmax.f32 %v4120, 0.0
      %v4141 = vmax.f32 %v4121, 0.0
      %v4142 = vmax.f32 %v4122, 0.0
      %v4143 = vmax.f32 %v4123, 0.0
      %v4144 = vmax.f32 %v4124, 0.0
      %v4145 = vmax.f32 %v4125, 0.0
      %v4146 = vmax.f32 %v4126, 0.0
      %4147 = vst [vmem:[%s388] sm:$0xff] %v4127
      %4148 = vst [vmem:[%s388 + $0x8] sm:$0xff] %v4128
      %4149 = vst [vmem:[%s388 + $0x10] sm:$0xff] %v4129
      %4150 = vst [vmem:[%s388 + $0x18] sm:$0xff] %v4130
      %4151 = vst [vmem:[%s388 + $0x20] sm:$0xff] %v4131
      %4152 = vst [vmem:[%s388 + $0x28] sm:$0xff] %v4132
      %4153 = vst [vmem:[%s388 + $0x30] sm:$0xff] %v4133
      %4154 = vst [vmem:[%s388 + $0x38] sm:$0xff] %v4134
      %4155 = vst [vmem:[%s388 + $0x40] sm:$0xff] %v4135
      %4156 = vst [vmem:[%s388 + $0x48] sm:$0xff] %v4136
      %4157 = vst [vmem:[%s388 + $0x50] sm:$0xff] %v4137
      %4158 = vst [vmem:[%s388 + $0x58] sm:$0xff] %v4138
      %4159 = vst [vmem:[%s388 + $0x60] sm:$0xff] %v4139
      %4160 = vst [vmem:[%s388 + $0x68] sm:$0xff] %v4140
      %4161 = vst [vmem:[%s388 + $0x70] sm:$0xff] %v4141
      %4162 = vst [vmem:[%s388 + $0x78] sm:$0xff] %v4142
      %4163 = vst [vmem:[%s388 + $0x80] sm:$0xff] %v4143
      %4164 = vst [vmem:[%s388 + $0x88] sm:$0xff] %v4144
      %4165 = vst [vmem:[%s388 + $0x90] sm:$0xff] %v4145
      %4166 = vst [vmem:[%s388 + $0x98] sm:$0xf] %v4146
      %p4167 = scmp.lt.s32.totalorder %s24, 1
      %s4168 = scalar_select %p4167, %s24, 1
      %p4169 = scmp.lt.s32.totalorder %s25, 1
      %s4170 = scalar_select %p4169, %s25, 1
      %s4171 = smul.addr %s4170, 20
      %s4172 = smul.addr %s4168, 40
      %s4173 = sadd.s32 %s4171, %s4172
      %s4174 = smul.addr %s4173, 8
      %s4175 = scalar_lea.vmem %s9, %s4174
      // Predicated region
      $region57: #{basic_block_forward.1} parent=55 // pred_check
        %p4176 = pneg %p253
      $region58: #{basic_block_forward.1} parent=55 // pred_check_branch
        %4178 = sbr.rel (%p4176) target = $region60
      $region59: #{basic_block_forward.1} parent=55 // pred_region
        _
      $region60: #{basic_block_forward.1} parent=55 // pred_fallthru
        _
    $region56: #{basic_block_forward.1} parent=5 // pred_fallthru
      _
    %p4179 = scmp.le.s32.totalorder 2, %s15
    // Predicated region
    $region61: #{basic_block_forward.1} parent=5 // pred_check
      %p4180 = pneg %p4179
    $region62: #{basic_block_forward.1} parent=5 // pred_check_branch
      %4182 = sbr.rel (%p4180) target = $region64
    $region63: #{basic_block_forward.1} parent=5 // pred_region
      %s4183 = ssub.s32 %s15, 2
      // Predicated region
      $region65: #{basic_block_forward.1} parent=63 // pred_check
        %p4184 = pneg %p259
      $region66: #{basic_block_forward.1} parent=63 // pred_check_branch
        %4186 = sbr.rel (%p4184) target = $region68
      $region67: #{basic_block_forward.1} parent=63 // pred_region
        %p4187 = scmp.lt.s32.totalorder %s26, 1
        %s4188 = scalar_select %p4187, %s26, 1
        %p4189 = scmp.lt.s32.totalorder %s27, 1
        %s4190 = scalar_select %p4189, %s27, 1
        %s4191 = smul.addr %s4190, 20
        %s4192 = smul.addr %s4188, 40
        %s4193 = sadd.s32 %s4191, %s4192
        %s4194 = smul.addr %s4193, 8
        %s4195 = scalar_lea.vmem %s9, %s4194
      $region68: #{basic_block_forward.1} parent=63 // pred_fallthru
        _
    $region64: #{basic_block_forward.1} parent=5 // pred_fallthru
      _
  $region6: #{basic_block_forward.1} parent=0 // loop_footer
    %s19 = sadd.s32 1, %s15
  $region7: #{basic_block_forward.1} parent=0 // loop_footer_branch
    %14 = sbr.rel target = $region3
  $region8: #{basic_block_forward.1} parent=0 // loop_exit
    _

</llo_original>
